<compile_context>
chip_gen: v7x
topology: tpu7x:2x2x1
jax: 0.10.0
libtpu: 0.0.40
codegen_flags: <defaults>
</compile_context>

<pallas_src>
import numpy as np
import jax
import jax.numpy as jnp
from jax.experimental import pallas as pl
from jax.experimental.pallas import tpu as pltpu

VMEM_SPEC = pl.BlockSpec(memory_space=pltpu.MemorySpace.VMEM)

DENSE_PAD = 32    # nn.Linear(3H, 30) padded to 32 output lanes
OUT_PAD = 128     # classifier output padded to one full lane group


def _round_up(x, m):
    return -(-x // m) * m


def make_tree_bilstm_forward(node_order, adjacency_list, edge_order,
                             hidden_size, output_size):
    """Build a jitted forward fn with the (static) tree schedule baked in."""
    H = hidden_size
    T = len(node_order)          # sequence length == number of tree nodes
    N = T
    N_pad = _round_up(N, 8)

    # ---- static tree schedule: level-contiguous node permutation ----------
    max_level = max(node_order)
    level_nodes = [sorted(i for i in range(N) if node_order[i] == lvl)
                   for lvl in range(max_level + 1)]
    perm = [v for nodes in level_nodes for v in nodes]
    pos = {v: k for k, v in enumerate(perm)}
    offsets = [0]
    for nodes in level_nodes:
        offsets.append(offsets[-1] + len(nodes))
    P0 = offsets[1]                                    # number of leaves

    # per-level (l>=1) static gather / replicate / aggregate matrices
    level_mats = []      # flat: [G_1, A_1, R_1, G_2, A_2, R_2, ...]
    level_meta = []      # (off_l, P_l)
    for lvl in range(1, max_level + 1):
        nodes = level_nodes[lvl]
        off_l, P_l = offsets[lvl], len(nodes)
        lvl_edges = [adjacency_list[e] for e in range(len(edge_order))
                     if edge_order[e] == lvl]
        grouped = [(p, [c for (pp, c) in lvl_edges if pp == p]) for p in nodes]
        edges = [(j, p, c) for j, (p, chs) in enumerate(grouped) for c in chs]
        E = len(edges)
        E_pad = max(8, _round_up(E, 8))
        G = np.zeros((E_pad, N_pad), np.float32)   # per-edge child gather
        R = np.zeros((E_pad, N_pad), np.float32)   # per-edge parent replicate
        A = np.zeros((P_l, E_pad), np.float32)     # per-parent child sum
        for e, (j, p, c) in enumerate(edges):
            G[e, pos[c]] = 1.0
            R[e, pos[p]] = 1.0
            A[j, e] = 1.0
        level_mats += [jnp.asarray(G), jnp.asarray(A), jnp.asarray(R)]
        level_meta.append((off_l, P_l))
    n_lm = len(level_mats)

    unperm_np = np.zeros((N, N_pad), np.float32)   # permuted order -> original
    for i in range(N):
        unperm_np[i, pos[i]] = 1.0
    unperm = jnp.asarray(unperm_np)
    perm_idx = jnp.asarray(np.array(perm, np.int32))

    # ---- the single fused kernel ------------------------------------------
    def fused_kernel(x2_ref, xtree_ref,
                     wih_ref, bih_ref, whh_ref,          # BiLSTM (pair layout)
                     wt_ref, bt_ref, ut_ref, unperm_ref,  # TreeLSTM (fused)
                     dw_ref, db_ref, cw_ref, cb_ref,      # head (padded)
                     *rest):
        lvl_refs = rest[:n_lm]
        out_ref = rest[n_lm]
        hsf_scr = rest[n_lm + 1]     # (T, H)  forward hidden, row t
        hsb_scr = rest[n_lm + 2]     # (T, H)  backward hidden, stored at out row
        hc_scr = rest[n_lm + 3]      # (N_pad, 2H) tree [h | c], level order

        f32 = jnp.float32

        def sg(x):  # sigmoid via EUP tanh (no divide on the recurrence path)
            return 0.5 * jnp.tanh(0.5 * x) + 0.5

        # ================= BiLSTM: fwd & bwd interleaved ===================
        # x2 = [x | reverse(x)]; stacked weight -> one matmul for both
        # directions.  Gate columns: [i_f i_b f_f f_b g_f g_b o_f o_b].
        gin = jnp.dot(x2_ref[...], wih_ref[...],
                      preferred_element_type=f32) + bih_ref[...]         # (T, 8H)
        whh = whh_ref[...]                                               # (2H, 8H)
        hc = jnp.zeros((1, 2 * H), f32)     # [h_f | h_b]
        cc = jnp.zeros((1, 2 * H), f32)
        for t in range(T):                  # T serial steps (both directions)
            g = gin[t:t + 1, :] + jnp.dot(hc, whh, preferred_element_type=f32)
            i = sg(g[:, 0:2 * H])
            f = sg(g[:, 2 * H:4 * H])
            u = jnp.tanh(g[:, 4 * H:6 * H])
            o = sg(g[:, 6 * H:8 * H])
            cc = f * cc + i * u
            hc = o * jnp.tanh(cc)
            hsf_scr[t:t + 1, :] = hc[:, 0:H]                  # output row t
            hsb_scr[T - 1 - t:T - t, :] = hc[:, H:2 * H]      # output row T-1-t
        lstm_out = jnp.concatenate([hsf_scr[...], hsb_scr[...]], axis=1)  # (T, 2H)

        # ================= child-sum TreeLSTM (level-contiguous) ===========
        # fused projection columns: [iou (3H) | f (H)]
        tproj = jnp.dot(xtree_ref[...], wt_ref[...],
                        preferred_element_type=f32) + bt_ref[...]        # (N_pad, 4H)
        ut = ut_ref[...]                                                 # (H, 4H)

        hc_scr[...] = jnp.zeros((N_pad, 2 * H), f32)   # padded rows must be 0

        # level 0 (leaves): permuted rows [0, P0)
        iou0 = tproj[0:P0, 0:3 * H]
        i0 = sg(iou0[:, 0:H])
        o0 = sg(iou0[:, H:2 * H])
        u0 = jnp.tanh(iou0[:, 2 * H:3 * H])
        c0 = i0 * u0
        h0 = o0 * jnp.tanh(c0)
        hc_scr[0:P0, :] = jnp.concatenate([h0, c0], axis=1)

        for li, (off_l, P_l) in enumerate(level_meta):
            G = lvl_refs[3 * li][...]        # (E_pad, N_pad)
            A = lvl_refs[3 * li + 1][...]    # (P_l, E_pad)
            R = lvl_refs[3 * li + 2][...]    # (E_pad, N_pad)
            prev = hc_scr[...]                                           # (N_pad, 2H)
            child = jnp.dot(G, prev, preferred_element_type=f32)         # (E_pad, 2H)
            child_h = child[:, 0:H]
            child_c = child[:, H:2 * H]
            uproj = jnp.dot(child_h, ut, preferred_element_type=f32)     # (E_pad, 4H)
            uiou_sum = jnp.dot(A, uproj[:, 0:3 * H],
                               preferred_element_type=f32)               # (P_l, 3H)
            xf_e = jnp.dot(R, tproj[:, 3 * H:4 * H],
                           preferred_element_type=f32)                   # (E_pad, H)
            fgate = sg(xf_e + uproj[:, 3 * H:4 * H])
            c_sum = jnp.dot(A, fgate * child_c,
                            preferred_element_type=f32)                  # (P_l, H)
            iou = tproj[off_l:off_l + P_l, 0:3 * H] + uiou_sum
            i = sg(iou[:, 0:H])
            o = sg(iou[:, H:2 * H])
            u = jnp.tanh(iou[:, 2 * H:3 * H])
            c_lvl = i * u + c_sum
            h_lvl = o * jnp.tanh(c_lvl)
            hc_scr[off_l:off_l + P_l, :] = jnp.concatenate([h_lvl, c_lvl], axis=1)

        hc_all = hc_scr[...]
        tree_h = jnp.dot(unperm_ref[...], hc_all[:, 0:H],
                         preferred_element_type=f32)                     # (N, H)

        # ========== head: dense -> tanh -> classifier -> LogSoftmax(dim=0)
        feat = jnp.concatenate([tree_h, lstm_out], axis=1)               # (T, 3H)
        d = jnp.tanh(jnp.dot(feat, dw_ref[...], preferred_element_type=f32)
                     + db_ref[...])                                      # (T, 32)
        logits = jnp.dot(d, cw_ref[...], preferred_element_type=f32) + cb_ref[...]
        m = jnp.max(logits, axis=0, keepdims=True)    # reduce over the T real rows
        z = logits - m
        lse = jnp.log(jnp.sum(jnp.exp(z), axis=0, keepdims=True))
        out_ref[...] = z - lse                                           # (T, OUT_PAD)

    # ---- wrapper-side weight fusion / pre-transposition --------------------
    def prep(params):
        lp, tp = params["lstm"], params["tree"]
        IN = lp["wih_f"].shape[1]

        def gate_split_t(w):      # (4H, X) -> 4 x (X, H), PyTorch order i,f,g,o
            return [w[k * H:(k + 1) * H, :].T for k in range(4)]

        # stacked input projection: rows 0:IN drive fwd gate columns,
        # rows IN:2IN drive bwd gate columns (pair column layout).
        wi_f = gate_split_t(lp["wih_f"])
        wi_b = gate_split_t(lp["wih_b"])
        Zi = jnp.zeros((IN, H), jnp.float32)
        wih_stacked = jnp.concatenate(
            [jnp.concatenate([wi_f[0], Zi, wi_f[1], Zi, wi_f[2], Zi, wi_f[3], Zi],
                             axis=1),
             jnp.concatenate([Zi, wi_b[0], Zi, wi_b[1], Zi, wi_b[2], Zi, wi_b[3]],
                             axis=1)], axis=0)                           # (2*IN, 8H)

        bf = lp["b_f"].reshape(4, H)          # b_ih + b_hh combined (PyTorch conv.)
        bb = lp["b_b"].reshape(4, H)
        b_pair = jnp.concatenate(
            [bf[0], bb[0], bf[1], bb[1], bf[2], bb[2], bf[3], bb[3]],
            axis=0).reshape(1, 8 * H)

        hh_f = gate_split_t(lp["whh_f"])
        hh_b = gate_split_t(lp["whh_b"])
        Zh = jnp.zeros((H, H), jnp.float32)
        whh_pair = jnp.concatenate(
            [jnp.concatenate([hh_f[0], Zh, hh_f[1], Zh, hh_f[2], Zh, hh_f[3], Zh],
                             axis=1),
             jnp.concatenate([Zh, hh_b[0], Zh, hh_b[1], Zh, hh_b[2], Zh, hh_b[3]],
                             axis=1)], axis=0)                           # (2H, 8H)

        w_tree_t = jnp.concatenate([tp["w_iou"].T, tp["w_f"].T], axis=1)  # (IN, 4H)
        b_tree = jnp.concatenate([tp["b_iou"], tp["b_f"]]).reshape(1, 4 * H)
        u_tree_t = jnp.concatenate([tp["u_iou"].T, tp["u_f"].T], axis=1)  # (H, 4H)

        d_out = params["dense_w"].shape[0]                                # 30
        dw_t = jnp.zeros((3 * H, DENSE_PAD), jnp.float32).at[:, :d_out].set(
            params["dense_w"].T)
        db = jnp.zeros((1, DENSE_PAD), jnp.float32).at[:, :d_out].set(
            params["dense_b"][None, :])
        cw_t = jnp.zeros((DENSE_PAD, OUT_PAD), jnp.float32).at[:d_out, :output_size].set(
            params["cls_w"].T)
        cb = jnp.zeros((1, OUT_PAD), jnp.float32).at[:, :output_size].set(
            params["cls_b"][None, :])
        return (wih_stacked, b_pair, whh_pair, w_tree_t, b_tree, u_tree_t,
                unperm, dw_t, db, cw_t, cb)

    n_inputs = 13 + n_lm

    @jax.jit
    def forward(params, tree_features, features_tensor):
        # host/XLA-side prep: time-reversed copy + level-contiguous node order
        x2 = jnp.concatenate(
            [features_tensor, jnp.flip(features_tensor, axis=0)], axis=1)  # (T, 2*IN)
        xtree_perm = jnp.take(tree_features, perm_idx, axis=0)
        if N_pad > N:
            xtree_perm = jnp.concatenate(
                [xtree_perm,
                 jnp.zeros((N_pad - N, tree_features.shape[1]), jnp.float32)], axis=0)
        args = prep(params)
        out_full = pl.pallas_call(
            fused_kernel,
            out_shape=jax.ShapeDtypeStruct((T, OUT_PAD), jnp.float32),
            in_specs=[VMEM_SPEC] * n_inputs,
            out_specs=VMEM_SPEC,
            scratch_shapes=[pltpu.VMEM((T, H), jnp.float32),       # fwd hidden
                            pltpu.VMEM((T, H), jnp.float32),       # bwd hidden
                            pltpu.VMEM((N_pad, 2 * H), jnp.float32)],  # tree [h|c]
        )(x2, xtree_perm, *args, *level_mats)
        return out_full[:, :output_size]

    return forward


if __name__ == "__main__":
    SEQ = 8            # number of tokens == number of tree nodes
    INPUT_SIZE = 16
    HIDDEN = 32
    OUTPUT_SIZE = 4

    key = jax.random.PRNGKey(0)
    keys = jax.random.split(key, 20)

    def init(k, shape, scale=0.1):
        return (scale * jax.random.normal(k, shape)).astype(jnp.float32)

    params = {
        "lstm": {
            "wih_f": init(keys[0], (4 * HIDDEN, INPUT_SIZE)),
            "whh_f": init(keys[1], (4 * HIDDEN, HIDDEN)),
            "b_f":   init(keys[2], (1, 4 * HIDDEN)),   # b_ih + b_hh combined
            "wih_b": init(keys[3], (4 * HIDDEN, INPUT_SIZE)),
            "whh_b": init(keys[4], (4 * HIDDEN, HIDDEN)),
            "b_b":   init(keys[5], (1, 4 * HIDDEN)),
        },
        "tree": {
            "w_iou": init(keys[6], (3 * HIDDEN, INPUT_SIZE)),
            "b_iou": init(keys[7], (3 * HIDDEN,)),
            "u_iou": init(keys[8], (3 * HIDDEN, HIDDEN)),
            "w_f":   init(keys[9], (HIDDEN, INPUT_SIZE)),
            "b_f":   init(keys[10], (HIDDEN,)),
            "u_f":   init(keys[11], (HIDDEN, HIDDEN)),
        },
        "dense_w": init(keys[12], (30, 3 * HIDDEN)),
        "dense_b": init(keys[13], (30,)),
        "cls_w":   init(keys[14], (OUTPUT_SIZE, 30)),
        "cls_b":   init(keys[15], (OUTPUT_SIZE,)),
    }

    features_tensor = init(keys[16], (SEQ, INPUT_SIZE), scale=1.0)  # BiLSTM input
    tree_features = init(keys[17], (SEQ, INPUT_SIZE), scale=1.0)    # TreeLSTM input

    # Deterministic tree over SEQ nodes: parent(i) = (i-1)//2, node 0 = root.
    parents = [None] + [(i - 1) // 2 for i in range(1, SEQ)]
    children = {i: [j for j in range(1, SEQ) if parents[j] == i] for i in range(SEQ)}
    node_order = [0] * SEQ
    for i in range(SEQ - 1, -1, -1):
        node_order[i] = 0 if not children[i] else 1 + max(node_order[ch]
                                                          for ch in children[i])
    adjacency_list, edge_order = [], []
    for p in range(SEQ):
        for ch in children[p]:
            adjacency_list.append((p, ch))
            edge_order.append(node_order[p])

    forward = make_tree_bilstm_forward(node_order, adjacency_list, edge_order,
                                       HIDDEN, OUTPUT_SIZE)
    out = forward(params, tree_features, features_tensor)
    out = jax.block_until_ready(out)
    assert out.shape == (SEQ, OUTPUT_SIZE)
    assert bool(jnp.all(jnp.isfinite(out)))
    print("KERNEL_OK")
</pallas_src>

<mosaic_0001>
module attributes {stable_mosaic.version = 11 : i64} {
  func.func @fused_kernel(%arg0: memref<8x32xf32, #tpu.memory_space<vmem>>, %arg1: memref<8x16xf32, #tpu.memory_space<vmem>>, %arg2: memref<32x256xf32, #tpu.memory_space<vmem>>, %arg3: memref<1x256xf32, #tpu.memory_space<vmem>>, %arg4: memref<64x256xf32, #tpu.memory_space<vmem>>, %arg5: memref<16x128xf32, #tpu.memory_space<vmem>>, %arg6: memref<1x128xf32, #tpu.memory_space<vmem>>, %arg7: memref<32x128xf32, #tpu.memory_space<vmem>>, %arg8: memref<8x8xf32, #tpu.memory_space<vmem>>, %arg9: memref<96x32xf32, #tpu.memory_space<vmem>>, %arg10: memref<1x32xf32, #tpu.memory_space<vmem>>, %arg11: memref<32x128xf32, #tpu.memory_space<vmem>>, %arg12: memref<1x128xf32, #tpu.memory_space<vmem>>, %arg13: memref<8x8xf32, #tpu.memory_space<vmem>>, %arg14: memref<2x8xf32, #tpu.memory_space<vmem>>, %arg15: memref<8x8xf32, #tpu.memory_space<vmem>>, %arg16: memref<8x8xf32, #tpu.memory_space<vmem>>, %arg17: memref<1x8xf32, #tpu.memory_space<vmem>>, %arg18: memref<8x8xf32, #tpu.memory_space<vmem>>, %arg19: memref<8x8xf32, #tpu.memory_space<vmem>>, %arg20: memref<1x8xf32, #tpu.memory_space<vmem>>, %arg21: memref<8x8xf32, #tpu.memory_space<vmem>>, %arg22: memref<8x128xf32, #tpu.memory_space<vmem>>, %arg23: memref<8x32xf32, #tpu.memory_space<vmem>>, %arg24: memref<8x32xf32, #tpu.memory_space<vmem>>, %arg25: memref<8x64xf32, #tpu.memory_space<vmem>>) attributes {dimension_semantics = [], scalar_prefetch = 0 : i64, scratch_operands = 3 : i64, tpu.core_type = #tpu.core_type<tc>} {
    %c0 = arith.constant 0 : index
    %c0_0 = arith.constant 0 : index
    %0 = vector.load %arg0[%c0, %c0_0] : memref<8x32xf32, #tpu.memory_space<vmem>>, vector<8x32xf32>
    %c0_1 = arith.constant 0 : index
    %c0_2 = arith.constant 0 : index
    %1 = vector.load %arg2[%c0_1, %c0_2] : memref<32x256xf32, #tpu.memory_space<vmem>>, vector<32x256xf32>
    %cst = arith.constant dense<0.000000e+00> : vector<8x256xf32>
    %2 = tpu.matmul %0, %1, %cst {dimension_numbers = #tpu.dot_dimension_numbers<[1], [0], [0], [1], [0, 0, 1, 1], [], []>} : vector<8x32xf32>, vector<32x256xf32>, vector<8x256xf32> -> vector<8x256xf32>
    %c0_3 = arith.constant 0 : index
    %c0_4 = arith.constant 0 : index
    %3 = vector.load %arg3[%c0_3, %c0_4] : memref<1x256xf32, #tpu.memory_space<vmem>>, vector<1x256xf32>
    %4 = vector.broadcast %3 : vector<1x256xf32> to vector<8x256xf32>
    %5 = arith.addf %2, %4 : vector<8x256xf32>
    %c0_5 = arith.constant 0 : index
    %c0_6 = arith.constant 0 : index
    %6 = vector.load %arg4[%c0_5, %c0_6] : memref<64x256xf32, #tpu.memory_space<vmem>>, vector<64x256xf32>
    %cst_7 = arith.constant 0.000000e+00 : f32
    %7 = vector.broadcast %cst_7 : f32 to vector<1x64xf32>
    %cst_8 = arith.constant 0.000000e+00 : f32
    %8 = vector.broadcast %cst_8 : f32 to vector<1x64xf32>
    %9 = vector.extract_strided_slice %5 {offsets = [0, 0], sizes = [1, 256], strides = [1, 1]} : vector<8x256xf32> to vector<1x256xf32>
    %cst_9 = arith.constant dense<0.000000e+00> : vector<1x256xf32>
    %10 = tpu.matmul %7, %6, %cst_9 {dimension_numbers = #tpu.dot_dimension_numbers<[1], [0], [0], [1], [0, 0, 1, 1], [], []>} : vector<1x64xf32>, vector<64x256xf32>, vector<1x256xf32> -> vector<1x256xf32>
    %11 = arith.addf %9, %10 : vector<1x256xf32>
    %12 = vector.extract_strided_slice %11 {offsets = [0, 0], sizes = [1, 64], strides = [1, 1]} : vector<1x256xf32> to vector<1x64xf32>
    %cst_10 = arith.constant 5.000000e-01 : f32
    %13 = vector.broadcast %cst_10 : f32 to vector<1x64xf32>
    %14 = arith.mulf %13, %12 : vector<1x64xf32>
    %15 = math.tanh %14 : vector<1x64xf32>
    %cst_11 = arith.constant 5.000000e-01 : f32
    %16 = vector.broadcast %cst_11 : f32 to vector<1x64xf32>
    %17 = arith.mulf %16, %15 : vector<1x64xf32>
    %cst_12 = arith.constant 5.000000e-01 : f32
    %18 = vector.broadcast %cst_12 : f32 to vector<1x64xf32>
    %19 = arith.addf %17, %18 : vector<1x64xf32>
    %20 = vector.extract_strided_slice %11 {offsets = [0, 64], sizes = [1, 64], strides = [1, 1]} : vector<1x256xf32> to vector<1x64xf32>
    %cst_13 = arith.constant 5.000000e-01 : f32
    %21 = vector.broadcast %cst_13 : f32 to vector<1x64xf32>
    %22 = arith.mulf %21, %20 : vector<1x64xf32>
    %23 = math.tanh %22 : vector<1x64xf32>
    %cst_14 = arith.constant 5.000000e-01 : f32
    %24 = vector.broadcast %cst_14 : f32 to vector<1x64xf32>
    %25 = arith.mulf %24, %23 : vector<1x64xf32>
    %cst_15 = arith.constant 5.000000e-01 : f32
    %26 = vector.broadcast %cst_15 : f32 to vector<1x64xf32>
    %27 = arith.addf %25, %26 : vector<1x64xf32>
    %28 = vector.extract_strided_slice %11 {offsets = [0, 128], sizes = [1, 64], strides = [1, 1]} : vector<1x256xf32> to vector<1x64xf32>
    %29 = math.tanh %28 : vector<1x64xf32>
    %30 = vector.extract_strided_slice %11 {offsets = [0, 192], sizes = [1, 64], strides = [1, 1]} : vector<1x256xf32> to vector<1x64xf32>
    %cst_16 = arith.constant 5.000000e-01 : f32
    %31 = vector.broadcast %cst_16 : f32 to vector<1x64xf32>
    %32 = arith.mulf %31, %30 : vector<1x64xf32>
    %33 = math.tanh %32 : vector<1x64xf32>
    %cst_17 = arith.constant 5.000000e-01 : f32
    %34 = vector.broadcast %cst_17 : f32 to vector<1x64xf32>
    %35 = arith.mulf %34, %33 : vector<1x64xf32>
    %cst_18 = arith.constant 5.000000e-01 : f32
    %36 = vector.broadcast %cst_18 : f32 to vector<1x64xf32>
    %37 = arith.addf %35, %36 : vector<1x64xf32>
    %38 = arith.mulf %27, %8 : vector<1x64xf32>
    %39 = arith.mulf %19, %29 : vector<1x64xf32>
    %40 = arith.addf %38, %39 : vector<1x64xf32>
    %41 = math.tanh %40 : vector<1x64xf32>
    %42 = arith.mulf %37, %41 : vector<1x64xf32>
    %43 = vector.extract_strided_slice %42 {offsets = [0, 0], sizes = [1, 32], strides = [1, 1]} : vector<1x64xf32> to vector<1x32xf32>
    %c0_19 = arith.constant 0 : index
    %c0_20 = arith.constant 0 : index
    %44 = vector.load %arg23[%c0_19, %c0_20] : memref<8x32xf32, #tpu.memory_space<vmem>>, vector<1x32xf32>
    tpu.vector_store %arg23[%c0_19, %c0_20], %43 {strides = array<i32>} : memref<8x32xf32, #tpu.memory_space<vmem>>, vector<1x32xf32>,
    %45 = vector.extract_strided_slice %42 {offsets = [0, 32], sizes = [1, 32], strides = [1, 1]} : vector<1x64xf32> to vector<1x32xf32>
    %c7 = arith.constant 7 : index
    %c0_21 = arith.constant 0 : index
    %46 = vector.load %arg24[%c7, %c0_21] : memref<8x32xf32, #tpu.memory_space<vmem>>, vector<1x32xf32>
    tpu.vector_store %arg24[%c7, %c0_21], %45 {strides = array<i32>} : memref<8x32xf32, #tpu.memory_space<vmem>>, vector<1x32xf32>,
    %47 = vector.extract_strided_slice %5 {offsets = [1, 0], sizes = [1, 256], strides = [1, 1]} : vector<8x256xf32> to vector<1x256xf32>
    %cst_22 = arith.constant dense<0.000000e+00> : vector<1x256xf32>
    %48 = tpu.matmul %42, %6, %cst_22 {dimension_numbers = #tpu.dot_dimension_numbers<[1], [0], [0], [1], [0, 0, 1, 1], [], []>} : vector<1x64xf32>, vector<64x256xf32>, vector<1x256xf32> -> vector<1x256xf32>
    %49 = arith.addf %47, %48 : vector<1x256xf32>
    %50 = vector.extract_strided_slice %49 {offsets = [0, 0], sizes = [1, 64], strides = [1, 1]} : vector<1x256xf32> to vector<1x64xf32>
    %cst_23 = arith.constant 5.000000e-01 : f32
    %51 = vector.broadcast %cst_23 : f32 to vector<1x64xf32>
    %52 = arith.mulf %51, %50 : vector<1x64xf32>
    %53 = math.tanh %52 : vector<1x64xf32>
    %cst_24 = arith.constant 5.000000e-01 : f32
    %54 = vector.broadcast %cst_24 : f32 to vector<1x64xf32>
    %55 = arith.mulf %54, %53 : vector<1x64xf32>
    %cst_25 = arith.constant 5.000000e-01 : f32
    %56 = vector.broadcast %cst_25 : f32 to vector<1x64xf32>
    %57 = arith.addf %55, %56 : vector<1x64xf32>
    %58 = vector.extract_strided_slice %49 {offsets = [0, 64], sizes = [1, 64], strides = [1, 1]} : vector<1x256xf32> to vector<1x64xf32>
    %cst_26 = arith.constant 5.000000e-01 : f32
    %59 = vector.broadcast %cst_26 : f32 to vector<1x64xf32>
    %60 = arith.mulf %59, %58 : vector<1x64xf32>
    %61 = math.tanh %60 : vector<1x64xf32>
    %cst_27 = arith.constant 5.000000e-01 : f32
    %62 = vector.broadcast %cst_27 : f32 to vector<1x64xf32>
    %63 = arith.mulf %62, %61 : vector<1x64xf32>
    %cst_28 = arith.constant 5.000000e-01 : f32
    %64 = vector.broadcast %cst_28 : f32 to vector<1x64xf32>
    %65 = arith.addf %63, %64 : vector<1x64xf32>
    %66 = vector.extract_strided_slice %49 {offsets = [0, 128], sizes = [1, 64], strides = [1, 1]} : vector<1x256xf32> to vector<1x64xf32>
    %67 = math.tanh %66 : vector<1x64xf32>
    %68 = vector.extract_strided_slice %49 {offsets = [0, 192], sizes = [1, 64], strides = [1, 1]} : vector<1x256xf32> to vector<1x64xf32>
    %cst_29 = arith.constant 5.000000e-01 : f32
    %69 = vector.broadcast %cst_29 : f32 to vector<1x64xf32>
    %70 = arith.mulf %69, %68 : vector<1x64xf32>
    %71 = math.tanh %70 : vector<1x64xf32>
    %cst_30 = arith.constant 5.000000e-01 : f32
    %72 = vector.broadcast %cst_30 : f32 to vector<1x64xf32>
    %73 = arith.mulf %72, %71 : vector<1x64xf32>
    %cst_31 = arith.constant 5.000000e-01 : f32
    %74 = vector.broadcast %cst_31 : f32 to vector<1x64xf32>
    %75 = arith.addf %73, %74 : vector<1x64xf32>
    %76 = arith.mulf %65, %40 : vector<1x64xf32>
    %77 = arith.mulf %57, %67 : vector<1x64xf32>
    %78 = arith.addf %76, %77 : vector<1x64xf32>
    %79 = math.tanh %78 : vector<1x64xf32>
    %80 = arith.mulf %75, %79 : vector<1x64xf32>
    %81 = vector.extract_strided_slice %80 {offsets = [0, 0], sizes = [1, 32], strides = [1, 1]} : vector<1x64xf32> to vector<1x32xf32>
    %c1 = arith.constant 1 : index
    %c0_32 = arith.constant 0 : index
    %82 = vector.load %arg23[%c1, %c0_32] : memref<8x32xf32, #tpu.memory_space<vmem>>, vector<1x32xf32>
    tpu.vector_store %arg23[%c1, %c0_32], %81 {strides = array<i32>} : memref<8x32xf32, #tpu.memory_space<vmem>>, vector<1x32xf32>,
    %83 = vector.extract_strided_slice %80 {offsets = [0, 32], sizes = [1, 32], strides = [1, 1]} : vector<1x64xf32> to vector<1x32xf32>
    %c6 = arith.constant 6 : index
    %c0_33 = arith.constant 0 : index
    %84 = vector.load %arg24[%c6, %c0_33] : memref<8x32xf32, #tpu.memory_space<vmem>>, vector<1x32xf32>
    tpu.vector_store %arg24[%c6, %c0_33], %83 {strides = array<i32>} : memref<8x32xf32, #tpu.memory_space<vmem>>, vector<1x32xf32>,
    %85 = vector.extract_strided_slice %5 {offsets = [2, 0], sizes = [1, 256], strides = [1, 1]} : vector<8x256xf32> to vector<1x256xf32>
    %cst_34 = arith.constant dense<0.000000e+00> : vector<1x256xf32>
    %86 = tpu.matmul %80, %6, %cst_34 {dimension_numbers = #tpu.dot_dimension_numbers<[1], [0], [0], [1], [0, 0, 1, 1], [], []>} : vector<1x64xf32>, vector<64x256xf32>, vector<1x256xf32> -> vector<1x256xf32>
    %87 = arith.addf %85, %86 : vector<1x256xf32>
    %88 = vector.extract_strided_slice %87 {offsets = [0, 0], sizes = [1, 64], strides = [1, 1]} : vector<1x256xf32> to vector<1x64xf32>
    %cst_35 = arith.constant 5.000000e-01 : f32
    %89 = vector.broadcast %cst_35 : f32 to vector<1x64xf32>
    %90 = arith.mulf %89, %88 : vector<1x64xf32>
    %91 = math.tanh %90 : vector<1x64xf32>
    %cst_36 = arith.constant 5.000000e-01 : f32
    %92 = vector.broadcast %cst_36 : f32 to vector<1x64xf32>
    %93 = arith.mulf %92, %91 : vector<1x64xf32>
    %cst_37 = arith.constant 5.000000e-01 : f32
    %94 = vector.broadcast %cst_37 : f32 to vector<1x64xf32>
    %95 = arith.addf %93, %94 : vector<1x64xf32>
    %96 = vector.extract_strided_slice %87 {offsets = [0, 64], sizes = [1, 64], strides = [1, 1]} : vector<1x256xf32> to vector<1x64xf32>
    %cst_38 = arith.constant 5.000000e-01 : f32
    %97 = vector.broadcast %cst_38 : f32 to vector<1x64xf32>
    %98 = arith.mulf %97, %96 : vector<1x64xf32>
    %99 = math.tanh %98 : vector<1x64xf32>
    %cst_39 = arith.constant 5.000000e-01 : f32
    %100 = vector.broadcast %cst_39 : f32 to vector<1x64xf32>
    %101 = arith.mulf %100, %99 : vector<1x64xf32>
    %cst_40 = arith.constant 5.000000e-01 : f32
    %102 = vector.broadcast %cst_40 : f32 to vector<1x64xf32>
    %103 = arith.addf %101, %102 : vector<1x64xf32>
    %104 = vector.extract_strided_slice %87 {offsets = [0, 128], sizes = [1, 64], strides = [1, 1]} : vector<1x256xf32> to vector<1x64xf32>
    %105 = math.tanh %104 : vector<1x64xf32>
    %106 = vector.extract_strided_slice %87 {offsets = [0, 192], sizes = [1, 64], strides = [1, 1]} : vector<1x256xf32> to vector<1x64xf32>
    %cst_41 = arith.constant 5.000000e-01 : f32
    %107 = vector.broadcast %cst_41 : f32 to vector<1x64xf32>
    %108 = arith.mulf %107, %106 : vector<1x64xf32>
    %109 = math.tanh %108 : vector<1x64xf32>
    %cst_42 = arith.constant 5.000000e-01 : f32
    %110 = vector.broadcast %cst_42 : f32 to vector<1x64xf32>
    %111 = arith.mulf %110, %109 : vector<1x64xf32>
    %cst_43 = arith.constant 5.000000e-01 : f32
    %112 = vector.broadcast %cst_43 : f32 to vector<1x64xf32>
    %113 = arith.addf %111, %112 : vector<1x64xf32>
    %114 = arith.mulf %103, %78 : vector<1x64xf32>
    %115 = arith.mulf %95, %105 : vector<1x64xf32>
    %116 = arith.addf %114, %115 : vector<1x64xf32>
    %117 = math.tanh %116 : vector<1x64xf32>
    %118 = arith.mulf %113, %117 : vector<1x64xf32>
    %119 = vector.extract_strided_slice %118 {offsets = [0, 0], sizes = [1, 32], strides = [1, 1]} : vector<1x64xf32> to vector<1x32xf32>
    %c2 = arith.constant 2 : index
    %c0_44 = arith.constant 0 : index
    %120 = vector.load %arg23[%c2, %c0_44] : memref<8x32xf32, #tpu.memory_space<vmem>>, vector<1x32xf32>
    tpu.vector_store %arg23[%c2, %c0_44], %119 {strides = array<i32>} : memref<8x32xf32, #tpu.memory_space<vmem>>, vector<1x32xf32>,
    %121 = vector.extract_strided_slice %118 {offsets = [0, 32], sizes = [1, 32], strides = [1, 1]} : vector<1x64xf32> to vector<1x32xf32>
    %c5 = arith.constant 5 : index
    %c0_45 = arith.constant 0 : index
    %122 = vector.load %arg24[%c5, %c0_45] : memref<8x32xf32, #tpu.memory_space<vmem>>, vector<1x32xf32>
    tpu.vector_store %arg24[%c5, %c0_45], %121 {strides = array<i32>} : memref<8x32xf32, #tpu.memory_space<vmem>>, vector<1x32xf32>,
    %123 = vector.extract_strided_slice %5 {offsets = [3, 0], sizes = [1, 256], strides = [1, 1]} : vector<8x256xf32> to vector<1x256xf32>
    %cst_46 = arith.constant dense<0.000000e+00> : vector<1x256xf32>
    %124 = tpu.matmul %118, %6, %cst_46 {dimension_numbers = #tpu.dot_dimension_numbers<[1], [0], [0], [1], [0, 0, 1, 1], [], []>} : vector<1x64xf32>, vector<64x256xf32>, vector<1x256xf32> -> vector<1x256xf32>
    %125 = arith.addf %123, %124 : vector<1x256xf32>
    %126 = vector.extract_strided_slice %125 {offsets = [0, 0], sizes = [1, 64], strides = [1, 1]} : vector<1x256xf32> to vector<1x64xf32>
    %cst_47 = arith.constant 5.000000e-01 : f32
    %127 = vector.broadcast %cst_47 : f32 to vector<1x64xf32>
    %128 = arith.mulf %127, %126 : vector<1x64xf32>
    %129 = math.tanh %128 : vector<1x64xf32>
    %cst_48 = arith.constant 5.000000e-01 : f32
    %130 = vector.broadcast %cst_48 : f32 to vector<1x64xf32>
    %131 = arith.mulf %130, %129 : vector<1x64xf32>
    %cst_49 = arith.constant 5.000000e-01 : f32
    %132 = vector.broadcast %cst_49 : f32 to vector<1x64xf32>
    %133 = arith.addf %131, %132 : vector<1x64xf32>
    %134 = vector.extract_strided_slice %125 {offsets = [0, 64], sizes = [1, 64], strides = [1, 1]} : vector<1x256xf32> to vector<1x64xf32>
    %cst_50 = arith.constant 5.000000e-01 : f32
    %135 = vector.broadcast %cst_50 : f32 to vector<1x64xf32>
    %136 = arith.mulf %135, %134 : vector<1x64xf32>
    %137 = math.tanh %136 : vector<1x64xf32>
    %cst_51 = arith.constant 5.000000e-01 : f32
    %138 = vector.broadcast %cst_51 : f32 to vector<1x64xf32>
    %139 = arith.mulf %138, %137 : vector<1x64xf32>
    %cst_52 = arith.constant 5.000000e-01 : f32
    %140 = vector.broadcast %cst_52 : f32 to vector<1x64xf32>
    %141 = arith.addf %139, %140 : vector<1x64xf32>
    %142 = vector.extract_strided_slice %125 {offsets = [0, 128], sizes = [1, 64], strides = [1, 1]} : vector<1x256xf32> to vector<1x64xf32>
    %143 = math.tanh %142 : vector<1x64xf32>
    %144 = vector.extract_strided_slice %125 {offsets = [0, 192], sizes = [1, 64], strides = [1, 1]} : vector<1x256xf32> to vector<1x64xf32>
    %cst_53 = arith.constant 5.000000e-01 : f32
    %145 = vector.broadcast %cst_53 : f32 to vector<1x64xf32>
    %146 = arith.mulf %145, %144 : vector<1x64xf32>
    %147 = math.tanh %146 : vector<1x64xf32>
    %cst_54 = arith.constant 5.000000e-01 : f32
    %148 = vector.broadcast %cst_54 : f32 to vector<1x64xf32>
    %149 = arith.mulf %148, %147 : vector<1x64xf32>
    %cst_55 = arith.constant 5.000000e-01 : f32
    %150 = vector.broadcast %cst_55 : f32 to vector<1x64xf32>
    %151 = arith.addf %149, %150 : vector<1x64xf32>
    %152 = arith.mulf %141, %116 : vector<1x64xf32>
    %153 = arith.mulf %133, %143 : vector<1x64xf32>
    %154 = arith.addf %152, %153 : vector<1x64xf32>
    %155 = math.tanh %154 : vector<1x64xf32>
    %156 = arith.mulf %151, %155 : vector<1x64xf32>
    %157 = vector.extract_strided_slice %156 {offsets = [0, 0], sizes = [1, 32], strides = [1, 1]} : vector<1x64xf32> to vector<1x32xf32>
    %c3 = arith.constant 3 : index
    %c0_56 = arith.constant 0 : index
    %158 = vector.load %arg23[%c3, %c0_56] : memref<8x32xf32, #tpu.memory_space<vmem>>, vector<1x32xf32>
    tpu.vector_store %arg23[%c3, %c0_56], %157 {strides = array<i32>} : memref<8x32xf32, #tpu.memory_space<vmem>>, vector<1x32xf32>,
    %159 = vector.extract_strided_slice %156 {offsets = [0, 32], sizes = [1, 32], strides = [1, 1]} : vector<1x64xf32> to vector<1x32xf32>
    %c4 = arith.constant 4 : index
    %c0_57 = arith.constant 0 : index
    %160 = vector.load %arg24[%c4, %c0_57] : memref<8x32xf32, #tpu.memory_space<vmem>>, vector<1x32xf32>
    tpu.vector_store %arg24[%c4, %c0_57], %159 {strides = array<i32>} : memref<8x32xf32, #tpu.memory_space<vmem>>, vector<1x32xf32>,
    %161 = vector.extract_strided_slice %5 {offsets = [4, 0], sizes = [1, 256], strides = [1, 1]} : vector<8x256xf32> to vector<1x256xf32>
    %cst_58 = arith.constant dense<0.000000e+00> : vector<1x256xf32>
    %162 = tpu.matmul %156, %6, %cst_58 {dimension_numbers = #tpu.dot_dimension_numbers<[1], [0], [0], [1], [0, 0, 1, 1], [], []>} : vector<1x64xf32>, vector<64x256xf32>, vector<1x256xf32> -> vector<1x256xf32>
    %163 = arith.addf %161, %162 : vector<1x256xf32>
    %164 = vector.extract_strided_slice %163 {offsets = [0, 0], sizes = [1, 64], strides = [1, 1]} : vector<1x256xf32> to vector<1x64xf32>
    %cst_59 = arith.constant 5.000000e-01 : f32
    %165 = vector.broadcast %cst_59 : f32 to vector<1x64xf32>
    %166 = arith.mulf %165, %164 : vector<1x64xf32>
    %167 = math.tanh %166 : vector<1x64xf32>
    %cst_60 = arith.constant 5.000000e-01 : f32
    %168 = vector.broadcast %cst_60 : f32 to vector<1x64xf32>
    %169 = arith.mulf %168, %167 : vector<1x64xf32>
    %cst_61 = arith.constant 5.000000e-01 : f32
    %170 = vector.broadcast %cst_61 : f32 to vector<1x64xf32>
    %171 = arith.addf %169, %170 : vector<1x64xf32>
    %172 = vector.extract_strided_slice %163 {offsets = [0, 64], sizes = [1, 64], strides = [1, 1]} : vector<1x256xf32> to vector<1x64xf32>
    %cst_62 = arith.constant 5.000000e-01 : f32
    %173 = vector.broadcast %cst_62 : f32 to vector<1x64xf32>
    %174 = arith.mulf %173, %172 : vector<1x64xf32>
    %175 = math.tanh %174 : vector<1x64xf32>
    %cst_63 = arith.constant 5.000000e-01 : f32
    %176 = vector.broadcast %cst_63 : f32 to vector<1x64xf32>
    %177 = arith.mulf %176, %175 : vector<1x64xf32>
    %cst_64 = arith.constant 5.000000e-01 : f32
    %178 = vector.broadcast %cst_64 : f32 to vector<1x64xf32>
    %179 = arith.addf %177, %178 : vector<1x64xf32>
    %180 = vector.extract_strided_slice %163 {offsets = [0, 128], sizes = [1, 64], strides = [1, 1]} : vector<1x256xf32> to vector<1x64xf32>
    %181 = math.tanh %180 : vector<1x64xf32>
    %182 = vector.extract_strided_slice %163 {offsets = [0, 192], sizes = [1, 64], strides = [1, 1]} : vector<1x256xf32> to vector<1x64xf32>
    %cst_65 = arith.constant 5.000000e-01 : f32
    %183 = vector.broadcast %cst_65 : f32 to vector<1x64xf32>
    %184 = arith.mulf %183, %182 : vector<1x64xf32>
    %185 = math.tanh %184 : vector<1x64xf32>
    %cst_66 = arith.constant 5.000000e-01 : f32
    %186 = vector.broadcast %cst_66 : f32 to vector<1x64xf32>
    %187 = arith.mulf %186, %185 : vector<1x64xf32>
    %cst_67 = arith.constant 5.000000e-01 : f32
    %188 = vector.broadcast %cst_67 : f32 to vector<1x64xf32>
    %189 = arith.addf %187, %188 : vector<1x64xf32>
    %190 = arith.mulf %179, %154 : vector<1x64xf32>
    %191 = arith.mulf %171, %181 : vector<1x64xf32>
    %192 = arith.addf %190, %191 : vector<1x64xf32>
    %193 = math.tanh %192 : vector<1x64xf32>
    %194 = arith.mulf %189, %193 : vector<1x64xf32>
    %195 = vector.extract_strided_slice %194 {offsets = [0, 0], sizes = [1, 32], strides = [1, 1]} : vector<1x64xf32> to vector<1x32xf32>
    %c4_68 = arith.constant 4 : index
    %c0_69 = arith.constant 0 : index
    %196 = vector.load %arg23[%c4_68, %c0_69] : memref<8x32xf32, #tpu.memory_space<vmem>>, vector<1x32xf32>
    tpu.vector_store %arg23[%c4_68, %c0_69], %195 {strides = array<i32>} : memref<8x32xf32, #tpu.memory_space<vmem>>, vector<1x32xf32>,
    %197 = vector.extract_strided_slice %194 {offsets = [0, 32], sizes = [1, 32], strides = [1, 1]} : vector<1x64xf32> to vector<1x32xf32>
    %c3_70 = arith.constant 3 : index
    %c0_71 = arith.constant 0 : index
    %198 = vector.load %arg24[%c3_70, %c0_71] : memref<8x32xf32, #tpu.memory_space<vmem>>, vector<1x32xf32>
    tpu.vector_store %arg24[%c3_70, %c0_71], %197 {strides = array<i32>} : memref<8x32xf32, #tpu.memory_space<vmem>>, vector<1x32xf32>,
    %199 = vector.extract_strided_slice %5 {offsets = [5, 0], sizes = [1, 256], strides = [1, 1]} : vector<8x256xf32> to vector<1x256xf32>
    %cst_72 = arith.constant dense<0.000000e+00> : vector<1x256xf32>
    %200 = tpu.matmul %194, %6, %cst_72 {dimension_numbers = #tpu.dot_dimension_numbers<[1], [0], [0], [1], [0, 0, 1, 1], [], []>} : vector<1x64xf32>, vector<64x256xf32>, vector<1x256xf32> -> vector<1x256xf32>
    %201 = arith.addf %199, %200 : vector<1x256xf32>
    %202 = vector.extract_strided_slice %201 {offsets = [0, 0], sizes = [1, 64], strides = [1, 1]} : vector<1x256xf32> to vector<1x64xf32>
    %cst_73 = arith.constant 5.000000e-01 : f32
    %203 = vector.broadcast %cst_73 : f32 to vector<1x64xf32>
    %204 = arith.mulf %203, %202 : vector<1x64xf32>
    %205 = math.tanh %204 : vector<1x64xf32>
    %cst_74 = arith.constant 5.000000e-01 : f32
    %206 = vector.broadcast %cst_74 : f32 to vector<1x64xf32>
    %207 = arith.mulf %206, %205 : vector<1x64xf32>
    %cst_75 = arith.constant 5.000000e-01 : f32
    %208 = vector.broadcast %cst_75 : f32 to vector<1x64xf32>
    %209 = arith.addf %207, %208 : vector<1x64xf32>
    %210 = vector.extract_strided_slice %201 {offsets = [0, 64], sizes = [1, 64], strides = [1, 1]} : vector<1x256xf32> to vector<1x64xf32>
    %cst_76 = arith.constant 5.000000e-01 : f32
    %211 = vector.broadcast %cst_76 : f32 to vector<1x64xf32>
    %212 = arith.mulf %211, %210 : vector<1x64xf32>
    %213 = math.tanh %212 : vector<1x64xf32>
    %cst_77 = arith.constant 5.000000e-01 : f32
    %214 = vector.broadcast %cst_77 : f32 to vector<1x64xf32>
    %215 = arith.mulf %214, %213 : vector<1x64xf32>
    %cst_78 = arith.constant 5.000000e-01 : f32
    %216 = vector.broadcast %cst_78 : f32 to vector<1x64xf32>
    %217 = arith.addf %215, %216 : vector<1x64xf32>
    %218 = vector.extract_strided_slice %201 {offsets = [0, 128], sizes = [1, 64], strides = [1, 1]} : vector<1x256xf32> to vector<1x64xf32>
    %219 = math.tanh %218 : vector<1x64xf32>
    %220 = vector.extract_strided_slice %201 {offsets = [0, 192], sizes = [1, 64], strides = [1, 1]} : vector<1x256xf32> to vector<1x64xf32>
    %cst_79 = arith.constant 5.000000e-01 : f32
    %221 = vector.broadcast %cst_79 : f32 to vector<1x64xf32>
    %222 = arith.mulf %221, %220 : vector<1x64xf32>
    %223 = math.tanh %222 : vector<1x64xf32>
    %cst_80 = arith.constant 5.000000e-01 : f32
    %224 = vector.broadcast %cst_80 : f32 to vector<1x64xf32>
    %225 = arith.mulf %224, %223 : vector<1x64xf32>
    %cst_81 = arith.constant 5.000000e-01 : f32
    %226 = vector.broadcast %cst_81 : f32 to vector<1x64xf32>
    %227 = arith.addf %225, %226 : vector<1x64xf32>
    %228 = arith.mulf %217, %192 : vector<1x64xf32>
    %229 = arith.mulf %209, %219 : vector<1x64xf32>
    %230 = arith.addf %228, %229 : vector<1x64xf32>
    %231 = math.tanh %230 : vector<1x64xf32>
    %232 = arith.mulf %227, %231 : vector<1x64xf32>
    %233 = vector.extract_strided_slice %232 {offsets = [0, 0], sizes = [1, 32], strides = [1, 1]} : vector<1x64xf32> to vector<1x32xf32>
    %c5_82 = arith.constant 5 : index
    %c0_83 = arith.constant 0 : index
    %234 = vector.load %arg23[%c5_82, %c0_83] : memref<8x32xf32, #tpu.memory_space<vmem>>, vector<1x32xf32>
    tpu.vector_store %arg23[%c5_82, %c0_83], %233 {strides = array<i32>} : memref<8x32xf32, #tpu.memory_space<vmem>>, vector<1x32xf32>,
    %235 = vector.extract_strided_slice %232 {offsets = [0, 32], sizes = [1, 32], strides = [1, 1]} : vector<1x64xf32> to vector<1x32xf32>
    %c2_84 = arith.constant 2 : index
    %c0_85 = arith.constant 0 : index
    %236 = vector.load %arg24[%c2_84, %c0_85] : memref<8x32xf32, #tpu.memory_space<vmem>>, vector<1x32xf32>
    tpu.vector_store %arg24[%c2_84, %c0_85], %235 {strides = array<i32>} : memref<8x32xf32, #tpu.memory_space<vmem>>, vector<1x32xf32>,
    %237 = vector.extract_strided_slice %5 {offsets = [6, 0], sizes = [1, 256], strides = [1, 1]} : vector<8x256xf32> to vector<1x256xf32>
    %cst_86 = arith.constant dense<0.000000e+00> : vector<1x256xf32>
    %238 = tpu.matmul %232, %6, %cst_86 {dimension_numbers = #tpu.dot_dimension_numbers<[1], [0], [0], [1], [0, 0, 1, 1], [], []>} : vector<1x64xf32>, vector<64x256xf32>, vector<1x256xf32> -> vector<1x256xf32>
    %239 = arith.addf %237, %238 : vector<1x256xf32>
    %240 = vector.extract_strided_slice %239 {offsets = [0, 0], sizes = [1, 64], strides = [1, 1]} : vector<1x256xf32> to vector<1x64xf32>
    %cst_87 = arith.constant 5.000000e-01 : f32
    %241 = vector.broadcast %cst_87 : f32 to vector<1x64xf32>
    %242 = arith.mulf %241, %240 : vector<1x64xf32>
    %243 = math.tanh %242 : vector<1x64xf32>
    %cst_88 = arith.constant 5.000000e-01 : f32
    %244 = vector.broadcast %cst_88 : f32 to vector<1x64xf32>
    %245 = arith.mulf %244, %243 : vector<1x64xf32>
    %cst_89 = arith.constant 5.000000e-01 : f32
    %246 = vector.broadcast %cst_89 : f32 to vector<1x64xf32>
    %247 = arith.addf %245, %246 : vector<1x64xf32>
    %248 = vector.extract_strided_slice %239 {offsets = [0, 64], sizes = [1, 64], strides = [1, 1]} : vector<1x256xf32> to vector<1x64xf32>
    %cst_90 = arith.constant 5.000000e-01 : f32
    %249 = vector.broadcast %cst_90 : f32 to vector<1x64xf32>
    %250 = arith.mulf %249, %248 : vector<1x64xf32>
    %251 = math.tanh %250 : vector<1x64xf32>
    %cst_91 = arith.constant 5.000000e-01 : f32
    %252 = vector.broadcast %cst_91 : f32 to vector<1x64xf32>
    %253 = arith.mulf %252, %251 : vector<1x64xf32>
    %cst_92 = arith.constant 5.000000e-01 : f32
    %254 = vector.broadcast %cst_92 : f32 to vector<1x64xf32>
    %255 = arith.addf %253, %254 : vector<1x64xf32>
    %256 = vector.extract_strided_slice %239 {offsets = [0, 128], sizes = [1, 64], strides = [1, 1]} : vector<1x256xf32> to vector<1x64xf32>
    %257 = math.tanh %256 : vector<1x64xf32>
    %258 = vector.extract_strided_slice %239 {offsets = [0, 192], sizes = [1, 64], strides = [1, 1]} : vector<1x256xf32> to vector<1x64xf32>
    %cst_93 = arith.constant 5.000000e-01 : f32
    %259 = vector.broadcast %cst_93 : f32 to vector<1x64xf32>
    %260 = arith.mulf %259, %258 : vector<1x64xf32>
    %261 = math.tanh %260 : vector<1x64xf32>
    %cst_94 = arith.constant 5.000000e-01 : f32
    %262 = vector.broadcast %cst_94 : f32 to vector<1x64xf32>
    %263 = arith.mulf %262, %261 : vector<1x64xf32>
    %cst_95 = arith.constant 5.000000e-01 : f32
    %264 = vector.broadcast %cst_95 : f32 to vector<1x64xf32>
    %265 = arith.addf %263, %264 : vector<1x64xf32>
    %266 = arith.mulf %255, %230 : vector<1x64xf32>
    %267 = arith.mulf %247, %257 : vector<1x64xf32>
    %268 = arith.addf %266, %267 : vector<1x64xf32>
    %269 = math.tanh %268 : vector<1x64xf32>
    %270 = arith.mulf %265, %269 : vector<1x64xf32>
    %271 = vector.extract_strided_slice %270 {offsets = [0, 0], sizes = [1, 32], strides = [1, 1]} : vector<1x64xf32> to vector<1x32xf32>
    %c6_96 = arith.constant 6 : index
    %c0_97 = arith.constant 0 : index
    %272 = vector.load %arg23[%c6_96, %c0_97] : memref<8x32xf32, #tpu.memory_space<vmem>>, vector<1x32xf32>
    tpu.vector_store %arg23[%c6_96, %c0_97], %271 {strides = array<i32>} : memref<8x32xf32, #tpu.memory_space<vmem>>, vector<1x32xf32>,
    %273 = vector.extract_strided_slice %270 {offsets = [0, 32], sizes = [1, 32], strides = [1, 1]} : vector<1x64xf32> to vector<1x32xf32>
    %c1_98 = arith.constant 1 : index
    %c0_99 = arith.constant 0 : index
    %274 = vector.load %arg24[%c1_98, %c0_99] : memref<8x32xf32, #tpu.memory_space<vmem>>, vector<1x32xf32>
    tpu.vector_store %arg24[%c1_98, %c0_99], %273 {strides = array<i32>} : memref<8x32xf32, #tpu.memory_space<vmem>>, vector<1x32xf32>,
    %275 = vector.extract_strided_slice %5 {offsets = [7, 0], sizes = [1, 256], strides = [1, 1]} : vector<8x256xf32> to vector<1x256xf32>
    %cst_100 = arith.constant dense<0.000000e+00> : vector<1x256xf32>
    %276 = tpu.matmul %270, %6, %cst_100 {dimension_numbers = #tpu.dot_dimension_numbers<[1], [0], [0], [1], [0, 0, 1, 1], [], []>} : vector<1x64xf32>, vector<64x256xf32>, vector<1x256xf32> -> vector<1x256xf32>
    %277 = arith.addf %275, %276 : vector<1x256xf32>
    %278 = vector.extract_strided_slice %277 {offsets = [0, 0], sizes = [1, 64], strides = [1, 1]} : vector<1x256xf32> to vector<1x64xf32>
    %cst_101 = arith.constant 5.000000e-01 : f32
    %279 = vector.broadcast %cst_101 : f32 to vector<1x64xf32>
    %280 = arith.mulf %279, %278 : vector<1x64xf32>
    %281 = math.tanh %280 : vector<1x64xf32>
    %cst_102 = arith.constant 5.000000e-01 : f32
    %282 = vector.broadcast %cst_102 : f32 to vector<1x64xf32>
    %283 = arith.mulf %282, %281 : vector<1x64xf32>
    %cst_103 = arith.constant 5.000000e-01 : f32
    %284 = vector.broadcast %cst_103 : f32 to vector<1x64xf32>
    %285 = arith.addf %283, %284 : vector<1x64xf32>
    %286 = vector.extract_strided_slice %277 {offsets = [0, 64], sizes = [1, 64], strides = [1, 1]} : vector<1x256xf32> to vector<1x64xf32>
    %cst_104 = arith.constant 5.000000e-01 : f32
    %287 = vector.broadcast %cst_104 : f32 to vector<1x64xf32>
    %288 = arith.mulf %287, %286 : vector<1x64xf32>
    %289 = math.tanh %288 : vector<1x64xf32>
    %cst_105 = arith.constant 5.000000e-01 : f32
    %290 = vector.broadcast %cst_105 : f32 to vector<1x64xf32>
    %291 = arith.mulf %290, %289 : vector<1x64xf32>
    %cst_106 = arith.constant 5.000000e-01 : f32
    %292 = vector.broadcast %cst_106 : f32 to vector<1x64xf32>
    %293 = arith.addf %291, %292 : vector<1x64xf32>
    %294 = vector.extract_strided_slice %277 {offsets = [0, 128], sizes = [1, 64], strides = [1, 1]} : vector<1x256xf32> to vector<1x64xf32>
    %295 = math.tanh %294 : vector<1x64xf32>
    %296 = vector.extract_strided_slice %277 {offsets = [0, 192], sizes = [1, 64], strides = [1, 1]} : vector<1x256xf32> to vector<1x64xf32>
    %cst_107 = arith.constant 5.000000e-01 : f32
    %297 = vector.broadcast %cst_107 : f32 to vector<1x64xf32>
    %298 = arith.mulf %297, %296 : vector<1x64xf32>
    %299 = math.tanh %298 : vector<1x64xf32>
    %cst_108 = arith.constant 5.000000e-01 : f32
    %300 = vector.broadcast %cst_108 : f32 to vector<1x64xf32>
    %301 = arith.mulf %300, %299 : vector<1x64xf32>
    %cst_109 = arith.constant 5.000000e-01 : f32
    %302 = vector.broadcast %cst_109 : f32 to vector<1x64xf32>
    %303 = arith.addf %301, %302 : vector<1x64xf32>
    %304 = arith.mulf %293, %268 : vector<1x64xf32>
    %305 = arith.mulf %285, %295 : vector<1x64xf32>
    %306 = arith.addf %304, %305 : vector<1x64xf32>
    %307 = math.tanh %306 : vector<1x64xf32>
    %308 = arith.mulf %303, %307 : vector<1x64xf32>
    %309 = vector.extract_strided_slice %308 {offsets = [0, 0], sizes = [1, 32], strides = [1, 1]} : vector<1x64xf32> to vector<1x32xf32>
    %c7_110 = arith.constant 7 : index
    %c0_111 = arith.constant 0 : index
    %310 = vector.load %arg23[%c7_110, %c0_111] : memref<8x32xf32, #tpu.memory_space<vmem>>, vector<1x32xf32>
    tpu.vector_store %arg23[%c7_110, %c0_111], %309 {strides = array<i32>} : memref<8x32xf32, #tpu.memory_space<vmem>>, vector<1x32xf32>,
    %311 = vector.extract_strided_slice %308 {offsets = [0, 32], sizes = [1, 32], strides = [1, 1]} : vector<1x64xf32> to vector<1x32xf32>
    %c0_112 = arith.constant 0 : index
    %c0_113 = arith.constant 0 : index
    %312 = vector.load %arg24[%c0_112, %c0_113] : memref<8x32xf32, #tpu.memory_space<vmem>>, vector<1x32xf32>
    tpu.vector_store %arg24[%c0_112, %c0_113], %311 {strides = array<i32>} : memref<8x32xf32, #tpu.memory_space<vmem>>, vector<1x32xf32>,
    %c0_114 = arith.constant 0 : index
    %c0_115 = arith.constant 0 : index
    %313 = vector.load %arg23[%c0_114, %c0_115] : memref<8x32xf32, #tpu.memory_space<vmem>>, vector<8x32xf32>
    %c0_116 = arith.constant 0 : index
    %c0_117 = arith.constant 0 : index
    %314 = vector.load %arg24[%c0_116, %c0_117] : memref<8x32xf32, #tpu.memory_space<vmem>>, vector<8x32xf32>
    %315 = tpu.concatenate %313, %314 in 1 : vector<8x32xf32>, vector<8x32xf32> -> vector<8x64xf32>
    %c0_118 = arith.constant 0 : index
    %c0_119 = arith.constant 0 : index
    %316 = vector.load %arg1[%c0_118, %c0_119] : memref<8x16xf32, #tpu.memory_space<vmem>>, vector<8x16xf32>
    %c0_120 = arith.constant 0 : index
    %c0_121 = arith.constant 0 : index
    %317 = vector.load %arg5[%c0_120, %c0_121] : memref<16x128xf32, #tpu.memory_space<vmem>>, vector<16x128xf32>
    %cst_122 = arith.constant dense<0.000000e+00> : vector<8x128xf32>
    %318 = tpu.matmul %316, %317, %cst_122 {dimension_numbers = #tpu.dot_dimension_numbers<[1], [0], [0], [1], [0, 0, 1, 1], [], []>} : vector<8x16xf32>, vector<16x128xf32>, vector<8x128xf32> -> vector<8x128xf32>
    %c0_123 = arith.constant 0 : index
    %c0_124 = arith.constant 0 : index
    %319 = vector.load %arg6[%c0_123, %c0_124] : memref<1x128xf32, #tpu.memory_space<vmem>>, vector<1x128xf32>
    %320 = vector.broadcast %319 : vector<1x128xf32> to vector<8x128xf32>
    %321 = arith.addf %318, %320 : vector<8x128xf32>
    %c0_125 = arith.constant 0 : index
    %c0_126 = arith.constant 0 : index
    %322 = vector.load %arg7[%c0_125, %c0_126] : memref<32x128xf32, #tpu.memory_space<vmem>>, vector<32x128xf32>
    %cst_127 = arith.constant 0.000000e+00 : f32
    %323 = vector.broadcast %cst_127 : f32 to vector<8x64xf32>
    %c0_128 = arith.constant 0 : index
    %c0_129 = arith.constant 0 : index
    %324 = vector.load %arg25[%c0_128, %c0_129] : memref<8x64xf32, #tpu.memory_space<vmem>>, vector<8x64xf32>
    tpu.vector_store %arg25[%c0_128, %c0_129], %323 {strides = array<i32>} : memref<8x64xf32, #tpu.memory_space<vmem>>, vector<8x64xf32>,
    %325 = vector.extract_strided_slice %321 {offsets = [0, 0], sizes = [4, 96], strides = [1, 1]} : vector<8x128xf32> to vector<4x96xf32>
    %326 = vector.extract_strided_slice %325 {offsets = [0, 0], sizes = [4, 32], strides = [1, 1]} : vector<4x96xf32> to vector<4x32xf32>
    %cst_130 = arith.constant 5.000000e-01 : f32
    %327 = vector.broadcast %cst_130 : f32 to vector<4x32xf32>
    %328 = arith.mulf %327, %326 : vector<4x32xf32>
    %329 = math.tanh %328 : vector<4x32xf32>
    %cst_131 = arith.constant 5.000000e-01 : f32
    %330 = vector.broadcast %cst_131 : f32 to vector<4x32xf32>
    %331 = arith.mulf %330, %329 : vector<4x32xf32>
    %cst_132 = arith.constant 5.000000e-01 : f32
    %332 = vector.broadcast %cst_132 : f32 to vector<4x32xf32>
    %333 = arith.addf %331, %332 : vector<4x32xf32>
    %334 = vector.extract_strided_slice %325 {offsets = [0, 32], sizes = [4, 32], strides = [1, 1]} : vector<4x96xf32> to vector<4x32xf32>
    %cst_133 = arith.constant 5.000000e-01 : f32
    %335 = vector.broadcast %cst_133 : f32 to vector<4x32xf32>
    %336 = arith.mulf %335, %334 : vector<4x32xf32>
    %337 = math.tanh %336 : vector<4x32xf32>
    %cst_134 = arith.constant 5.000000e-01 : f32
    %338 = vector.broadcast %cst_134 : f32 to vector<4x32xf32>
    %339 = arith.mulf %338, %337 : vector<4x32xf32>
    %cst_135 = arith.constant 5.000000e-01 : f32
    %340 = vector.broadcast %cst_135 : f32 to vector<4x32xf32>
    %341 = arith.addf %339, %340 : vector<4x32xf32>
    %342 = vector.extract_strided_slice %325 {offsets = [0, 64], sizes = [4, 32], strides = [1, 1]} : vector<4x96xf32> to vector<4x32xf32>
    %343 = math.tanh %342 : vector<4x32xf32>
    %344 = arith.mulf %333, %343 : vector<4x32xf32>
    %345 = math.tanh %344 : vector<4x32xf32>
    %346 = arith.mulf %341, %345 : vector<4x32xf32>
    %347 = tpu.concatenate %346, %344 in 1 : vector<4x32xf32>, vector<4x32xf32> -> vector<4x64xf32>
    %c0_136 = arith.constant 0 : index
    %c0_137 = arith.constant 0 : index
    %348 = vector.load %arg25[%c0_136, %c0_137] : memref<8x64xf32, #tpu.memory_space<vmem>>, vector<4x64xf32>
    tpu.vector_store %arg25[%c0_136, %c0_137], %347 {strides = array<i32>} : memref<8x64xf32, #tpu.memory_space<vmem>>, vector<4x64xf32>,
    %c0_138 = arith.constant 0 : index
    %c0_139 = arith.constant 0 : index
    %349 = vector.load %arg13[%c0_138, %c0_139] : memref<8x8xf32, #tpu.memory_space<vmem>>, vector<8x8xf32>
    %c0_140 = arith.constant 0 : index
    %c0_141 = arith.constant 0 : index
    %350 = vector.load %arg14[%c0_140, %c0_141] : memref<2x8xf32, #tpu.memory_space<vmem>>, vector<2x8xf32>
    %c0_142 = arith.constant 0 : index
    %c0_143 = arith.constant 0 : index
    %351 = vector.load %arg15[%c0_142, %c0_143] : memref<8x8xf32, #tpu.memory_space<vmem>>, vector<8x8xf32>
    %c0_144 = arith.constant 0 : index
    %c0_145 = arith.constant 0 : index
    %352 = vector.load %arg25[%c0_144, %c0_145] : memref<8x64xf32, #tpu.memory_space<vmem>>, vector<8x64xf32>
    %cst_146 = arith.constant dense<0.000000e+00> : vector<8x64xf32>
    %353 = tpu.matmul %349, %352, %cst_146 {dimension_numbers = #tpu.dot_dimension_numbers<[1], [0], [0], [1], [0, 0, 1, 1], [], []>} : vector<8x8xf32>, vector<8x64xf32>, vector<8x64xf32> -> vector<8x64xf32>
    %354 = vector.extract_strided_slice %353 {offsets = [0, 0], sizes = [8, 32], strides = [1, 1]} : vector<8x64xf32> to vector<8x32xf32>
    %355 = vector.extract_strided_slice %353 {offsets = [0, 32], sizes = [8, 32], strides = [1, 1]} : vector<8x64xf32> to vector<8x32xf32>
    %cst_147 = arith.constant dense<0.000000e+00> : vector<8x128xf32>
    %356 = tpu.matmul %354, %322, %cst_147 {dimension_numbers = #tpu.dot_dimension_numbers<[1], [0], [0], [1], [0, 0, 1, 1], [], []>} : vector<8x32xf32>, vector<32x128xf32>, vector<8x128xf32> -> vector<8x128xf32>
    %357 = vector.extract_strided_slice %356 {offsets = [0, 0], sizes = [8, 96], strides = [1, 1]} : vector<8x128xf32> to vector<8x96xf32>
    %cst_148 = arith.constant dense<0.000000e+00> : vector<2x96xf32>
    %358 = tpu.matmul %350, %357, %cst_148 {dimension_numbers = #tpu.dot_dimension_numbers<[1], [0], [0], [1], [0, 0, 1, 1], [], []>} : vector<2x8xf32>, vector<8x96xf32>, vector<2x96xf32> -> vector<2x96xf32>
    %359 = vector.extract_strided_slice %321 {offsets = [0, 96], sizes = [8, 32], strides = [1, 1]} : vector<8x128xf32> to vector<8x32xf32>
    %cst_149 = arith.constant dense<0.000000e+00> : vector<8x32xf32>
    %360 = tpu.matmul %351, %359, %cst_149 {dimension_numbers = #tpu.dot_dimension_numbers<[1], [0], [0], [1], [0, 0, 1, 1], [], []>} : vector<8x8xf32>, vector<8x32xf32>, vector<8x32xf32> -> vector<8x32xf32>
    %361 = vector.extract_strided_slice %356 {offsets = [0, 96], sizes = [8, 32], strides = [1, 1]} : vector<8x128xf32> to vector<8x32xf32>
    %362 = arith.addf %360, %361 : vector<8x32xf32>
    %cst_150 = arith.constant 5.000000e-01 : f32
    %363 = vector.broadcast %cst_150 : f32 to vector<8x32xf32>
    %364 = arith.mulf %363, %362 : vector<8x32xf32>
    %365 = math.tanh %364 : vector<8x32xf32>
    %cst_151 = arith.constant 5.000000e-01 : f32
    %366 = vector.broadcast %cst_151 : f32 to vector<8x32xf32>
    %367 = arith.mulf %366, %365 : vector<8x32xf32>
    %cst_152 = arith.constant 5.000000e-01 : f32
    %368 = vector.broadcast %cst_152 : f32 to vector<8x32xf32>
    %369 = arith.addf %367, %368 : vector<8x32xf32>
    %370 = arith.mulf %369, %355 : vector<8x32xf32>
    %cst_153 = arith.constant dense<0.000000e+00> : vector<2x32xf32>
    %371 = tpu.matmul %350, %370, %cst_153 {dimension_numbers = #tpu.dot_dimension_numbers<[1], [0], [0], [1], [0, 0, 1, 1], [], []>} : vector<2x8xf32>, vector<8x32xf32>, vector<2x32xf32> -> vector<2x32xf32>
    %372 = vector.extract_strided_slice %321 {offsets = [4, 0], sizes = [2, 96], strides = [1, 1]} : vector<8x128xf32> to vector<2x96xf32>
    %373 = arith.addf %372, %358 : vector<2x96xf32>
    %374 = vector.extract_strided_slice %373 {offsets = [0, 0], sizes = [2, 32], strides = [1, 1]} : vector<2x96xf32> to vector<2x32xf32>
    %cst_154 = arith.constant 5.000000e-01 : f32
    %375 = vector.broadcast %cst_154 : f32 to vector<2x32xf32>
    %376 = arith.mulf %375, %374 : vector<2x32xf32>
    %377 = math.tanh %376 : vector<2x32xf32>
    %cst_155 = arith.constant 5.000000e-01 : f32
    %378 = vector.broadcast %cst_155 : f32 to vector<2x32xf32>
    %379 = arith.mulf %378, %377 : vector<2x32xf32>
    %cst_156 = arith.constant 5.000000e-01 : f32
    %380 = vector.broadcast %cst_156 : f32 to vector<2x32xf32>
    %381 = arith.addf %379, %380 : vector<2x32xf32>
    %382 = vector.extract_strided_slice %373 {offsets = [0, 32], sizes = [2, 32], strides = [1, 1]} : vector<2x96xf32> to vector<2x32xf32>
    %cst_157 = arith.constant 5.000000e-01 : f32
    %383 = vector.broadcast %cst_157 : f32 to vector<2x32xf32>
    %384 = arith.mulf %383, %382 : vector<2x32xf32>
    %385 = math.tanh %384 : vector<2x32xf32>
    %cst_158 = arith.constant 5.000000e-01 : f32
    %386 = vector.broadcast %cst_158 : f32 to vector<2x32xf32>
    %387 = arith.mulf %386, %385 : vector<2x32xf32>
    %cst_159 = arith.constant 5.000000e-01 : f32
    %388 = vector.broadcast %cst_159 : f32 to vector<2x32xf32>
    %389 = arith.addf %387, %388 : vector<2x32xf32>
    %390 = vector.extract_strided_slice %373 {offsets = [0, 64], sizes = [2, 32], strides = [1, 1]} : vector<2x96xf32> to vector<2x32xf32>
    %391 = math.tanh %390 : vector<2x32xf32>
    %392 = arith.mulf %381, %391 : vector<2x32xf32>
    %393 = arith.addf %392, %371 : vector<2x32xf32>
    %394 = math.tanh %393 : vector<2x32xf32>
    %395 = arith.mulf %389, %394 : vector<2x32xf32>
    %396 = tpu.concatenate %395, %393 in 1 : vector<2x32xf32>, vector<2x32xf32> -> vector<2x64xf32>
    %c4_160 = arith.constant 4 : index
    %c0_161 = arith.constant 0 : index
    %397 = vector.load %arg25[%c4_160, %c0_161] : memref<8x64xf32, #tpu.memory_space<vmem>>, vector<2x64xf32>
    tpu.vector_store %arg25[%c4_160, %c0_161], %396 {strides = array<i32>} : memref<8x64xf32, #tpu.memory_space<vmem>>, vector<2x64xf32>,
    %c0_162 = arith.constant 0 : index
    %c0_163 = arith.constant 0 : index
    %398 = vector.load %arg16[%c0_162, %c0_163] : memref<8x8xf32, #tpu.memory_space<vmem>>, vector<8x8xf32>
    %c0_164 = arith.constant 0 : index
    %c0_165 = arith.constant 0 : index
    %399 = vector.load %arg17[%c0_164, %c0_165] : memref<1x8xf32, #tpu.memory_space<vmem>>, vector<1x8xf32>
    %c0_166 = arith.constant 0 : index
    %c0_167 = arith.constant 0 : index
    %400 = vector.load %arg18[%c0_166, %c0_167] : memref<8x8xf32, #tpu.memory_space<vmem>>, vector<8x8xf32>
    %c0_168 = arith.constant 0 : index
    %c0_169 = arith.constant 0 : index
    %401 = vector.load %arg25[%c0_168, %c0_169] : memref<8x64xf32, #tpu.memory_space<vmem>>, vector<8x64xf32>
    %cst_170 = arith.constant dense<0.000000e+00> : vector<8x64xf32>
    %402 = tpu.matmul %398, %401, %cst_170 {dimension_numbers = #tpu.dot_dimension_numbers<[1], [0], [0], [1], [0, 0, 1, 1], [], []>} : vector<8x8xf32>, vector<8x64xf32>, vector<8x64xf32> -> vector<8x64xf32>
    %403 = vector.extract_strided_slice %402 {offsets = [0, 0], sizes = [8, 32], strides = [1, 1]} : vector<8x64xf32> to vector<8x32xf32>
    %404 = vector.extract_strided_slice %402 {offsets = [0, 32], sizes = [8, 32], strides = [1, 1]} : vector<8x64xf32> to vector<8x32xf32>
    %cst_171 = arith.constant dense<0.000000e+00> : vector<8x128xf32>
    %405 = tpu.matmul %403, %322, %cst_171 {dimension_numbers = #tpu.dot_dimension_numbers<[1], [0], [0], [1], [0, 0, 1, 1], [], []>} : vector<8x32xf32>, vector<32x128xf32>, vector<8x128xf32> -> vector<8x128xf32>
    %406 = vector.extract_strided_slice %405 {offsets = [0, 0], sizes = [8, 96], strides = [1, 1]} : vector<8x128xf32> to vector<8x96xf32>
    %cst_172 = arith.constant dense<0.000000e+00> : vector<1x96xf32>
    %407 = tpu.matmul %399, %406, %cst_172 {dimension_numbers = #tpu.dot_dimension_numbers<[1], [0], [0], [1], [0, 0, 1, 1], [], []>} : vector<1x8xf32>, vector<8x96xf32>, vector<1x96xf32> -> vector<1x96xf32>
    %408 = vector.extract_strided_slice %321 {offsets = [0, 96], sizes = [8, 32], strides = [1, 1]} : vector<8x128xf32> to vector<8x32xf32>
    %cst_173 = arith.constant dense<0.000000e+00> : vector<8x32xf32>
    %409 = tpu.matmul %400, %408, %cst_173 {dimension_numbers = #tpu.dot_dimension_numbers<[1], [0], [0], [1], [0, 0, 1, 1], [], []>} : vector<8x8xf32>, vector<8x32xf32>, vector<8x32xf32> -> vector<8x32xf32>
    %410 = vector.extract_strided_slice %405 {offsets = [0, 96], sizes = [8, 32], strides = [1, 1]} : vector<8x128xf32> to vector<8x32xf32>
    %411 = arith.addf %409, %410 : vector<8x32xf32>
    %cst_174 = arith.constant 5.000000e-01 : f32
    %412 = vector.broadcast %cst_174 : f32 to vector<8x32xf32>
    %413 = arith.mulf %412, %411 : vector<8x32xf32>
    %414 = math.tanh %413 : vector<8x32xf32>
    %cst_175 = arith.constant 5.000000e-01 : f32
    %415 = vector.broadcast %cst_175 : f32 to vector<8x32xf32>
    %416 = arith.mulf %415, %414 : vector<8x32xf32>
    %cst_176 = arith.constant 5.000000e-01 : f32
    %417 = vector.broadcast %cst_176 : f32 to vector<8x32xf32>
    %418 = arith.addf %416, %417 : vector<8x32xf32>
    %419 = arith.mulf %418, %404 : vector<8x32xf32>
    %cst_177 = arith.constant dense<0.000000e+00> : vector<1x32xf32>
    %420 = tpu.matmul %399, %419, %cst_177 {dimension_numbers = #tpu.dot_dimension_numbers<[1], [0], [0], [1], [0, 0, 1, 1], [], []>} : vector<1x8xf32>, vector<8x32xf32>, vector<1x32xf32> -> vector<1x32xf32>
    %421 = vector.extract_strided_slice %321 {offsets = [6, 0], sizes = [1, 96], strides = [1, 1]} : vector<8x128xf32> to vector<1x96xf32>
    %422 = arith.addf %421, %407 : vector<1x96xf32>
    %423 = vector.extract_strided_slice %422 {offsets = [0, 0], sizes = [1, 32], strides = [1, 1]} : vector<1x96xf32> to vector<1x32xf32>
    %cst_178 = arith.constant 5.000000e-01 : f32
    %424 = vector.broadcast %cst_178 : f32 to vector<1x32xf32>
    %425 = arith.mulf %424, %423 : vector<1x32xf32>
    %426 = math.tanh %425 : vector<1x32xf32>
    %cst_179 = arith.constant 5.000000e-01 : f32
    %427 = vector.broadcast %cst_179 : f32 to vector<1x32xf32>
    %428 = arith.mulf %427, %426 : vector<1x32xf32>
    %cst_180 = arith.constant 5.000000e-01 : f32
    %429 = vector.broadcast %cst_180 : f32 to vector<1x32xf32>
    %430 = arith.addf %428, %429 : vector<1x32xf32>
    %431 = vector.extract_strided_slice %422 {offsets = [0, 32], sizes = [1, 32], strides = [1, 1]} : vector<1x96xf32> to vector<1x32xf32>
    %cst_181 = arith.constant 5.000000e-01 : f32
    %432 = vector.broadcast %cst_181 : f32 to vector<1x32xf32>
    %433 = arith.mulf %432, %431 : vector<1x32xf32>
    %434 = math.tanh %433 : vector<1x32xf32>
    %cst_182 = arith.constant 5.000000e-01 : f32
    %435 = vector.broadcast %cst_182 : f32 to vector<1x32xf32>
    %436 = arith.mulf %435, %434 : vector<1x32xf32>
    %cst_183 = arith.constant 5.000000e-01 : f32
    %437 = vector.broadcast %cst_183 : f32 to vector<1x32xf32>
    %438 = arith.addf %436, %437 : vector<1x32xf32>
    %439 = vector.extract_strided_slice %422 {offsets = [0, 64], sizes = [1, 32], strides = [1, 1]} : vector<1x96xf32> to vector<1x32xf32>
    %440 = math.tanh %439 : vector<1x32xf32>
    %441 = arith.mulf %430, %440 : vector<1x32xf32>
    %442 = arith.addf %441, %420 : vector<1x32xf32>
    %443 = math.tanh %442 : vector<1x32xf32>
    %444 = arith.mulf %438, %443 : vector<1x32xf32>
    %445 = tpu.concatenate %444, %442 in 1 : vector<1x32xf32>, vector<1x32xf32> -> vector<1x64xf32>
    %c6_184 = arith.constant 6 : index
    %c0_185 = arith.constant 0 : index
    %446 = vector.load %arg25[%c6_184, %c0_185] : memref<8x64xf32, #tpu.memory_space<vmem>>, vector<1x64xf32>
    tpu.vector_store %arg25[%c6_184, %c0_185], %445 {strides = array<i32>} : memref<8x64xf32, #tpu.memory_space<vmem>>, vector<1x64xf32>,
    %c0_186 = arith.constant 0 : index
    %c0_187 = arith.constant 0 : index
    %447 = vector.load %arg19[%c0_186, %c0_187] : memref<8x8xf32, #tpu.memory_space<vmem>>, vector<8x8xf32>
    %c0_188 = arith.constant 0 : index
    %c0_189 = arith.constant 0 : index
    %448 = vector.load %arg20[%c0_188, %c0_189] : memref<1x8xf32, #tpu.memory_space<vmem>>, vector<1x8xf32>
    %c0_190 = arith.constant 0 : index
    %c0_191 = arith.constant 0 : index
    %449 = vector.load %arg21[%c0_190, %c0_191] : memref<8x8xf32, #tpu.memory_space<vmem>>, vector<8x8xf32>
    %c0_192 = arith.constant 0 : index
    %c0_193 = arith.constant 0 : index
    %450 = vector.load %arg25[%c0_192, %c0_193] : memref<8x64xf32, #tpu.memory_space<vmem>>, vector<8x64xf32>
    %cst_194 = arith.constant dense<0.000000e+00> : vector<8x64xf32>
    %451 = tpu.matmul %447, %450, %cst_194 {dimension_numbers = #tpu.dot_dimension_numbers<[1], [0], [0], [1], [0, 0, 1, 1], [], []>} : vector<8x8xf32>, vector<8x64xf32>, vector<8x64xf32> -> vector<8x64xf32>
    %452 = vector.extract_strided_slice %451 {offsets = [0, 0], sizes = [8, 32], strides = [1, 1]} : vector<8x64xf32> to vector<8x32xf32>
    %453 = vector.extract_strided_slice %451 {offsets = [0, 32], sizes = [8, 32], strides = [1, 1]} : vector<8x64xf32> to vector<8x32xf32>
    %cst_195 = arith.constant dense<0.000000e+00> : vector<8x128xf32>
    %454 = tpu.matmul %452, %322, %cst_195 {dimension_numbers = #tpu.dot_dimension_numbers<[1], [0], [0], [1], [0, 0, 1, 1], [], []>} : vector<8x32xf32>, vector<32x128xf32>, vector<8x128xf32> -> vector<8x128xf32>
    %455 = vector.extract_strided_slice %454 {offsets = [0, 0], sizes = [8, 96], strides = [1, 1]} : vector<8x128xf32> to vector<8x96xf32>
    %cst_196 = arith.constant dense<0.000000e+00> : vector<1x96xf32>
    %456 = tpu.matmul %448, %455, %cst_196 {dimension_numbers = #tpu.dot_dimension_numbers<[1], [0], [0], [1], [0, 0, 1, 1], [], []>} : vector<1x8xf32>, vector<8x96xf32>, vector<1x96xf32> -> vector<1x96xf32>
    %457 = vector.extract_strided_slice %321 {offsets = [0, 96], sizes = [8, 32], strides = [1, 1]} : vector<8x128xf32> to vector<8x32xf32>
    %cst_197 = arith.constant dense<0.000000e+00> : vector<8x32xf32>
    %458 = tpu.matmul %449, %457, %cst_197 {dimension_numbers = #tpu.dot_dimension_numbers<[1], [0], [0], [1], [0, 0, 1, 1], [], []>} : vector<8x8xf32>, vector<8x32xf32>, vector<8x32xf32> -> vector<8x32xf32>
    %459 = vector.extract_strided_slice %454 {offsets = [0, 96], sizes = [8, 32], strides = [1, 1]} : vector<8x128xf32> to vector<8x32xf32>
    %460 = arith.addf %458, %459 : vector<8x32xf32>
    %cst_198 = arith.constant 5.000000e-01 : f32
    %461 = vector.broadcast %cst_198 : f32 to vector<8x32xf32>
    %462 = arith.mulf %461, %460 : vector<8x32xf32>
    %463 = math.tanh %462 : vector<8x32xf32>
    %cst_199 = arith.constant 5.000000e-01 : f32
    %464 = vector.broadcast %cst_199 : f32 to vector<8x32xf32>
    %465 = arith.mulf %464, %463 : vector<8x32xf32>
    %cst_200 = arith.constant 5.000000e-01 : f32
    %466 = vector.broadcast %cst_200 : f32 to vector<8x32xf32>
    %467 = arith.addf %465, %466 : vector<8x32xf32>
    %468 = arith.mulf %467, %453 : vector<8x32xf32>
    %cst_201 = arith.constant dense<0.000000e+00> : vector<1x32xf32>
    %469 = tpu.matmul %448, %468, %cst_201 {dimension_numbers = #tpu.dot_dimension_numbers<[1], [0], [0], [1], [0, 0, 1, 1], [], []>} : vector<1x8xf32>, vector<8x32xf32>, vector<1x32xf32> -> vector<1x32xf32>
    %470 = vector.extract_strided_slice %321 {offsets = [7, 0], sizes = [1, 96], strides = [1, 1]} : vector<8x128xf32> to vector<1x96xf32>
    %471 = arith.addf %470, %456 : vector<1x96xf32>
    %472 = vector.extract_strided_slice %471 {offsets = [0, 0], sizes = [1, 32], strides = [1, 1]} : vector<1x96xf32> to vector<1x32xf32>
    %cst_202 = arith.constant 5.000000e-01 : f32
    %473 = vector.broadcast %cst_202 : f32 to vector<1x32xf32>
    %474 = arith.mulf %473, %472 : vector<1x32xf32>
    %475 = math.tanh %474 : vector<1x32xf32>
    %cst_203 = arith.constant 5.000000e-01 : f32
    %476 = vector.broadcast %cst_203 : f32 to vector<1x32xf32>
    %477 = arith.mulf %476, %475 : vector<1x32xf32>
    %cst_204 = arith.constant 5.000000e-01 : f32
    %478 = vector.broadcast %cst_204 : f32 to vector<1x32xf32>
    %479 = arith.addf %477, %478 : vector<1x32xf32>
    %480 = vector.extract_strided_slice %471 {offsets = [0, 32], sizes = [1, 32], strides = [1, 1]} : vector<1x96xf32> to vector<1x32xf32>
    %cst_205 = arith.constant 5.000000e-01 : f32
    %481 = vector.broadcast %cst_205 : f32 to vector<1x32xf32>
    %482 = arith.mulf %481, %480 : vector<1x32xf32>
    %483 = math.tanh %482 : vector<1x32xf32>
    %cst_206 = arith.constant 5.000000e-01 : f32
    %484 = vector.broadcast %cst_206 : f32 to vector<1x32xf32>
    %485 = arith.mulf %484, %483 : vector<1x32xf32>
    %cst_207 = arith.constant 5.000000e-01 : f32
    %486 = vector.broadcast %cst_207 : f32 to vector<1x32xf32>
    %487 = arith.addf %485, %486 : vector<1x32xf32>
    %488 = vector.extract_strided_slice %471 {offsets = [0, 64], sizes = [1, 32], strides = [1, 1]} : vector<1x96xf32> to vector<1x32xf32>
    %489 = math.tanh %488 : vector<1x32xf32>
    %490 = arith.mulf %479, %489 : vector<1x32xf32>
    %491 = arith.addf %490, %469 : vector<1x32xf32>
    %492 = math.tanh %491 : vector<1x32xf32>
    %493 = arith.mulf %487, %492 : vector<1x32xf32>
    %494 = tpu.concatenate %493, %491 in 1 : vector<1x32xf32>, vector<1x32xf32> -> vector<1x64xf32>
    %c7_208 = arith.constant 7 : index
    %c0_209 = arith.constant 0 : index
    %495 = vector.load %arg25[%c7_208, %c0_209] : memref<8x64xf32, #tpu.memory_space<vmem>>, vector<1x64xf32>
    tpu.vector_store %arg25[%c7_208, %c0_209], %494 {strides = array<i32>} : memref<8x64xf32, #tpu.memory_space<vmem>>, vector<1x64xf32>,
    %c0_210 = arith.constant 0 : index
    %c0_211 = arith.constant 0 : index
    %496 = vector.load %arg25[%c0_210, %c0_211] : memref<8x64xf32, #tpu.memory_space<vmem>>, vector<8x64xf32>
    %c0_212 = arith.constant 0 : index
    %c0_213 = arith.constant 0 : index
    %497 = vector.load %arg8[%c0_212, %c0_213] : memref<8x8xf32, #tpu.memory_space<vmem>>, vector<8x8xf32>
    %498 = vector.extract_strided_slice %496 {offsets = [0, 0], sizes = [8, 32], strides = [1, 1]} : vector<8x64xf32> to vector<8x32xf32>
    %cst_214 = arith.constant dense<0.000000e+00> : vector<8x32xf32>
    %499 = tpu.matmul %497, %498, %cst_214 {dimension_numbers = #tpu.dot_dimension_numbers<[1], [0], [0], [1], [0, 0, 1, 1], [], []>} : vector<8x8xf32>, vector<8x32xf32>, vector<8x32xf32> -> vector<8x32xf32>
    %500 = tpu.concatenate %499, %315 in 1 : vector<8x32xf32>, vector<8x64xf32> -> vector<8x96xf32>
    %c0_215 = arith.constant 0 : index
    %c0_216 = arith.constant 0 : index
    %501 = vector.load %arg9[%c0_215, %c0_216] : memref<96x32xf32, #tpu.memory_space<vmem>>, vector<96x32xf32>
    %cst_217 = arith.constant dense<0.000000e+00> : vector<8x32xf32>
    %502 = tpu.matmul %500, %501, %cst_217 {dimension_numbers = #tpu.dot_dimension_numbers<[1], [0], [0], [1], [0, 0, 1, 1], [], []>} : vector<8x96xf32>, vector<96x32xf32>, vector<8x32xf32> -> vector<8x32xf32>
    %c0_218 = arith.constant 0 : index
    %c0_219 = arith.constant 0 : index
    %503 = vector.load %arg10[%c0_218, %c0_219] : memref<1x32xf32, #tpu.memory_space<vmem>>, vector<1x32xf32>
    %504 = vector.broadcast %503 : vector<1x32xf32> to vector<8x32xf32>
    %505 = arith.addf %502, %504 : vector<8x32xf32>
    %506 = math.tanh %505 : vector<8x32xf32>
    %c0_220 = arith.constant 0 : index
    %c0_221 = arith.constant 0 : index
    %507 = vector.load %arg11[%c0_220, %c0_221] : memref<32x128xf32, #tpu.memory_space<vmem>>, vector<32x128xf32>
    %cst_222 = arith.constant dense<0.000000e+00> : vector<8x128xf32>
    %508 = tpu.matmul %506, %507, %cst_222 {dimension_numbers = #tpu.dot_dimension_numbers<[1], [0], [0], [1], [0, 0, 1, 1], [], []>} : vector<8x32xf32>, vector<32x128xf32>, vector<8x128xf32> -> vector<8x128xf32>
    %c0_223 = arith.constant 0 : index
    %c0_224 = arith.constant 0 : index
    %509 = vector.load %arg12[%c0_223, %c0_224] : memref<1x128xf32, #tpu.memory_space<vmem>>, vector<1x128xf32>
    %510 = vector.broadcast %509 : vector<1x128xf32> to vector<8x128xf32>
    %511 = arith.addf %508, %510 : vector<8x128xf32>
    %cst_225 = arith.constant dense<0xFF800000> : vector<128xf32>
    %512 = vector.multi_reduction <maximumf>, %511, %cst_225 [0] : vector<8x128xf32> to vector<128xf32>
    %513 = vector.shape_cast %512 : vector<128xf32> to vector<1x128xf32>
    %514 = vector.broadcast %513 : vector<1x128xf32> to vector<8x128xf32>
    %515 = arith.subf %511, %514 : vector<8x128xf32>
    %516 = math.exp %515 : vector<8x128xf32>
    %cst_226 = arith.constant dense<0.000000e+00> : vector<128xf32>
    %517 = vector.multi_reduction <add>, %516, %cst_226 [0] : vector<8x128xf32> to vector<128xf32>
    %518 = vector.shape_cast %517 : vector<128xf32> to vector<1x128xf32>
    %519 = math.log %518 : vector<1x128xf32>
    %520 = vector.broadcast %519 : vector<1x128xf32> to vector<8x128xf32>
    %521 = arith.subf %515, %520 : vector<8x128xf32>
    %c0_227 = arith.constant 0 : index
    %c0_228 = arith.constant 0 : index
    %522 = vector.load %arg22[%c0_227, %c0_228] : memref<8x128xf32, #tpu.memory_space<vmem>>, vector<8x128xf32>
    tpu.vector_store %arg22[%c0_227, %c0_228], %521 {strides = array<i32>} : memref<8x128xf32, #tpu.memory_space<vmem>>, vector<8x128xf32>,
    return
  }
}

</mosaic_0001>

<llo_original>
// kernel: forward.1
$region0: #{forward.1}
  #allocation0 [shape = 'u32[]', space=smem, size = 0x4, offset = 0x4, fixed_abs, tag = 'smem constant byte address 0x4 - core index']
  #allocation1 [shape = 'u32[144,128]{1,0:T(1,128)}', space=vmem, size = 0x12000, scoped, tag = 'internal scratch']
  #allocation2 [shape = 'f32[8,32]{1,0:T(8,128)}', space=vmem, size = 0x1000, scoped, tag = 'scratch operand']
  #allocation3 [shape = 'f32[8,32]{1,0:T(8,128)}', space=vmem, size = 0x1000, scoped, tag = 'scratch operand']
  #allocation4 [shape = 'f32[8,64]{1,0:T(8,128)}', space=vmem, size = 0x1000, scoped, tag = 'scratch operand']
  %s0 = inlined_call_operand.vmem [shape: f32[8,32], index: 0, kind: input, shape index: {}]
  %s1 = inlined_call_operand.vmem [shape: f32[8,16], index: 1, kind: input, shape index: {}]
  %s2 = inlined_call_operand.vmem [shape: f32[32,256], index: 2, kind: input, shape index: {}]
  %s3 = inlined_call_operand.vmem [shape: f32[1,256], index: 3, kind: input, shape index: {}]
  %s4 = inlined_call_operand.vmem [shape: f32[64,256], index: 4, kind: input, shape index: {}]
  %s5 = inlined_call_operand.vmem [shape: f32[16,128], index: 5, kind: input, shape index: {}]
  %s6 = inlined_call_operand.vmem [shape: f32[1,128], index: 6, kind: input, shape index: {}]
  %s7 = inlined_call_operand.vmem [shape: f32[32,128], index: 7, kind: input, shape index: {}]
  %s8 = inlined_call_operand.vmem [shape: f32[8,8], index: 8, kind: input, shape index: {}]
  %s9 = inlined_call_operand.vmem [shape: f32[96,32], index: 9, kind: input, shape index: {}]
  %s10 = inlined_call_operand.vmem [shape: f32[1,32], index: 10, kind: input, shape index: {}]
  %s11 = inlined_call_operand.vmem [shape: f32[32,128], index: 11, kind: input, shape index: {}]
  %s12 = inlined_call_operand.vmem [shape: f32[1,128], index: 12, kind: input, shape index: {}]
  %s13 = inlined_call_operand.vmem [shape: f32[8,8], index: 13, kind: input, shape index: {}]
  %s14 = inlined_call_operand.vmem [shape: f32[2,8], index: 14, kind: input, shape index: {}]
  %s15 = inlined_call_operand.vmem [shape: f32[8,8], index: 15, kind: input, shape index: {}]
  %s16 = inlined_call_operand.vmem [shape: f32[8,8], index: 16, kind: input, shape index: {}]
  %s17 = inlined_call_operand.vmem [shape: f32[1,8], index: 17, kind: input, shape index: {}, may-alias: {17,20}]
  %s18 = inlined_call_operand.vmem [shape: f32[8,8], index: 18, kind: input, shape index: {}]
  %s19 = inlined_call_operand.vmem [shape: f32[8,8], index: 19, kind: input, shape index: {}]
  %s20 = inlined_call_operand.vmem [shape: f32[1,8], index: 20, kind: input, shape index: {}, may-alias: {17,20}]
  %s21 = inlined_call_operand.vmem [shape: f32[8,8], index: 21, kind: input, shape index: {}]
  %s22 = inlined_call_operand.vmem [shape: f32[8,128], index: 22, kind: output, shape index: {}]
  %s23 = sld [smem:[#allocation0]]
  $region98: #{forward.1} parent=0
    _
  %s25 = ssub.s32 1, %s23
  %s26 = scalar_select 0, %s25, %s23
  // Predicated region
  $region2: #{forward.1} parent=0 // pred_check
    _
  $region3: #{forward.1} parent=0 // pred_check_branch
    %28 = sbr.rel (0) target = $region5
  $region4: #{forward.1} parent=0 // pred_region
    _
  $region5: #{forward.1} parent=0 // pred_fallthru
    _
  // Predicated region
  $region6: #{forward.1} parent=0 // pred_check
    _
  $region7: #{forward.1} parent=0 // pred_check_branch
    %30 = sbr.rel (0) target = $region9
  $region8: #{forward.1} parent=0 // pred_region
    _
  $region9: #{forward.1} parent=0 // pred_fallthru
    _
  // Predicated region
  $region10: #{forward.1} parent=0 // pred_check
    _
  $region11: #{forward.1} parent=0 // pred_check_branch
    %32 = sbr.rel (0) target = $region13
  $region12: #{forward.1} parent=0 // pred_region
    _
  $region13: #{forward.1} parent=0 // pred_fallthru
    _
  // Predicated region
  $region14: #{forward.1} parent=0 // pred_check
    _
  $region15: #{forward.1} parent=0 // pred_check_branch
    %34 = sbr.rel (0) target = $region17
  $region16: #{forward.1} parent=0 // pred_region
    _
  $region17: #{forward.1} parent=0 // pred_fallthru
    _
  // Predicated region
  $region18: #{forward.1} parent=0 // pred_check
    _
  $region19: #{forward.1} parent=0 // pred_check_branch
    %36 = sbr.rel (0) target = $region21
  $region20: #{forward.1} parent=0 // pred_region
    _
  $region21: #{forward.1} parent=0 // pred_fallthru
    _
  // Predicated region
  $region22: #{forward.1} parent=0 // pred_check
    _
  $region23: #{forward.1} parent=0 // pred_check_branch
    %38 = sbr.rel (0) target = $region25
  $region24: #{forward.1} parent=0 // pred_region
    _
  $region25: #{forward.1} parent=0 // pred_fallthru
    _
  // Predicated region
  $region26: #{forward.1} parent=0 // pred_check
    _
  $region27: #{forward.1} parent=0 // pred_check_branch
    %40 = sbr.rel (0) target = $region29
  $region28: #{forward.1} parent=0 // pred_region
    _
  $region29: #{forward.1} parent=0 // pred_fallthru
    _
  // Predicated region
  $region30: #{forward.1} parent=0 // pred_check
    _
  $region31: #{forward.1} parent=0 // pred_check_branch
    %42 = sbr.rel (0) target = $region33
  $region32: #{forward.1} parent=0 // pred_region
    _
  $region33: #{forward.1} parent=0 // pred_fallthru
    _
  // Predicated region
  $region34: #{forward.1} parent=0 // pred_check
    _
  $region35: #{forward.1} parent=0 // pred_check_branch
    %44 = sbr.rel (0) target = $region37
  $region36: #{forward.1} parent=0 // pred_region
    _
  $region37: #{forward.1} parent=0 // pred_fallthru
    _
  // Predicated region
  $region38: #{forward.1} parent=0 // pred_check
    _
  $region39: #{forward.1} parent=0 // pred_check_branch
    %46 = sbr.rel (0) target = $region41
  $region40: #{forward.1} parent=0 // pred_region
    _
  $region41: #{forward.1} parent=0 // pred_fallthru
    _
  // Predicated region
  $region42: #{forward.1} parent=0 // pred_check
    _
  $region43: #{forward.1} parent=0 // pred_check_branch
    %48 = sbr.rel (0) target = $region45
  $region44: #{forward.1} parent=0 // pred_region
    _
  $region45: #{forward.1} parent=0 // pred_fallthru
    _
  // Predicated region
  $region46: #{forward.1} parent=0 // pred_check
    _
  $region47: #{forward.1} parent=0 // pred_check_branch
    %50 = sbr.rel (0) target = $region49
  $region48: #{forward.1} parent=0 // pred_region
    _
  $region49: #{forward.1} parent=0 // pred_fallthru
    _
  // Predicated region
  $region50: #{forward.1} parent=0 // pred_check
    _
  $region51: #{forward.1} parent=0 // pred_check_branch
    %52 = sbr.rel (0) target = $region53
  $region52: #{forward.1} parent=0 // pred_region
    _
  $region53: #{forward.1} parent=0 // pred_fallthru
    _
  // Predicated region
  $region54: #{forward.1} parent=0 // pred_check
    _
  $region55: #{forward.1} parent=0 // pred_check_branch
    %54 = sbr.rel (0) target = $region57
  $region56: #{forward.1} parent=0 // pred_region
    _
  $region57: #{forward.1} parent=0 // pred_fallthru
    _
  // Predicated region
  $region58: #{forward.1} parent=0 // pred_check
    _
  $region59: #{forward.1} parent=0 // pred_check_branch
    %56 = sbr.rel (0) target = $region61
  $region60: #{forward.1} parent=0 // pred_region
    _
  $region61: #{forward.1} parent=0 // pred_fallthru
    _
  // Predicated region
  $region62: #{forward.1} parent=0 // pred_check
    _
  $region63: #{forward.1} parent=0 // pred_check_branch
    %58 = sbr.rel (0) target = $region65
  $region64: #{forward.1} parent=0 // pred_region
    _
  $region65: #{forward.1} parent=0 // pred_fallthru
    _
  // Predicated region
  $region66: #{forward.1} parent=0 // pred_check
    _
  $region67: #{forward.1} parent=0 // pred_check_branch
    %60 = sbr.rel (0) target = $region69
  $region68: #{forward.1} parent=0 // pred_region
    _
  $region69: #{forward.1} parent=0 // pred_fallthru
    _
  // Predicated region
  $region70: #{forward.1} parent=0 // pred_check
    _
  $region71: #{forward.1} parent=0 // pred_check_branch
    %62 = sbr.rel (0) target = $region73
  $region72: #{forward.1} parent=0 // pred_region
    _
  $region73: #{forward.1} parent=0 // pred_fallthru
    _
  // Predicated region
  $region74: #{forward.1} parent=0 // pred_check
    _
  $region75: #{forward.1} parent=0 // pred_check_branch
    %64 = sbr.rel (0) target = $region77
  $region76: #{forward.1} parent=0 // pred_region
    _
  $region77: #{forward.1} parent=0 // pred_fallthru
    _
  // Predicated region
  $region78: #{forward.1} parent=0 // pred_check
    _
  $region79: #{forward.1} parent=0 // pred_check_branch
    %66 = sbr.rel (0) target = $region81
  $region80: #{forward.1} parent=0 // pred_region
    _
  $region81: #{forward.1} parent=0 // pred_fallthru
    _
  // Predicated region
  $region82: #{forward.1} parent=0 // pred_check
    _
  $region83: #{forward.1} parent=0 // pred_check_branch
    %68 = sbr.rel (0) target = $region85
  $region84: #{forward.1} parent=0 // pred_region
    _
  $region85: #{forward.1} parent=0 // pred_fallthru
    _
  // Predicated region
  $region86: #{forward.1} parent=0 // pred_check
    _
  $region87: #{forward.1} parent=0 // pred_check_branch
    %70 = sbr.rel (0) target = $region89
  $region88: #{forward.1} parent=0 // pred_region
    _
  $region89: #{forward.1} parent=0 // pred_fallthru
    _
  %v71 = vld [vmem:[%s0] sm:$0xff]
  %v72 = vld [vmem:[%s2] sm:$0xff]
  %v73 = vld [vmem:[%s2 + $0x8] sm:$0xff]
  %v74 = vld [vmem:[%s2 + $0x10] sm:$0xff]
  %v75 = vld [vmem:[%s2 + $0x18] sm:$0xff]
  %v76 = vld [vmem:[%s2 + $0x20] sm:$0xff]
  %v77 = vld [vmem:[%s2 + $0x28] sm:$0xff]
  %v78 = vld [vmem:[%s2 + $0x30] sm:$0xff]
  %v79 = vld [vmem:[%s2 + $0x38] sm:$0xff]
  %v80 = vld [vmem:[%s3] sm:$0x3]
  %v82 = vlaneseq
  %v83 = vshrl.u32 %v82, 7
  %v84 = vsub.s32 0, %v83
  %v85 = vrot.slane %v80, %v84
  %v86 = vlaneseq
  %v87 = vshrl.u32 %v86, 7
  %v88 = vsub.s32 1, %v87
  %v89 = vrot.slane %v80, %v88
  %vm92 = vcmask 261120
  %v94 = vsel %vm92, %v71, 0
  %96 = vmatprep.subr.mxu0 %v73
  %97 = vmatpush1.msra.mxu0 %v72
  %98 = vmatprep.subr.mxu0 %v75
  %99 = vmatpush1.msra.mxu0 %v74
  %100 = vmatprep.subr.mxu0 %v77
  %101 = vmatpush1.msra.mxu0 %v76
  %102 = vmatprep.subr.mxu0 %v79
  %103 = vmatpush1.msra.mxu0 %v78
  %104 = vmatprep.subr.mxu0 0.0
  %105 = vmatpush1.msra.mxu0 0.0
  %106 = vmatprep.subr.mxu0 0.0
  %107 = vmatpush1.msra.mxu0 0.0
  %108 = vmatprep.subr.mxu0 0.0
  %109 = vmatpush1.msra.mxu0 0.0
  %110 = vmatprep.subr.mxu0 0.0
  %111 = vmatpush1.msra.mxu0 0.0
  %112 = vmatprep.subr.mxu0 0.0
  %113 = vmatpush1.msra.mxu0 0.0
  %114 = vmatprep.subr.mxu0 0.0
  %115 = vmatpush1.msra.mxu0 0.0
  %116 = vmatprep.subr.mxu0 0.0
  %117 = vmatpush1.msra.mxu0 0.0
  %118 = vmatprep.subr.mxu0 0.0
  %119 = vmatpush1.msra.mxu0 0.0
  %120 = vmatprep.subr.mxu0 0.0
  %121 = vmatpush1.msra.mxu0 0.0
  %122 = vmatprep.subr.mxu0 0.0
  %123 = vmatpush1.msra.mxu0 0.0
  %124 = vmatprep.subr.mxu0 0.0
  %125 = vmatpush1.msra.mxu0 0.0
  %126 = vmatprep.subr.mxu0 0.0
  %127 = vmatpush1.msra.mxu0 0.0
  %128 = vmatprep.subr.mxu0 0.0
  %129 = vmatpush1.msra.mxu0 0.0
  %130 = vmatprep.subr.mxu0 0.0
  %131 = vmatpush1.msra.mxu0 0.0
  %132 = vmatprep.subr.mxu0 0.0
  %133 = vmatpush1.msra.mxu0 0.0
  %134 = vmatprep.subr.mxu0 0.0
  %135 = vmatpush1.msra.mxu0 0.0
  %136 = vmatprep.subr.mxu0 0.0
  %137 = vmatpush1.msra.mxu0 0.0
  %138 = vmatprep.subr.mxu0 0.0
  %139 = vmatpush1.msra.mxu0 0.0
  %140 = vmatprep.subr.mxu0 0.0
  %141 = vmatpush1.msra.mxu0 0.0
  %142 = vmatprep.subr.mxu0 0.0
  %143 = vmatpush1.msra.mxu0 0.0
  %144 = vmatprep.subr.mxu0 0.0
  %145 = vmatpush1.msra.mxu0 0.0
  %146 = vmatprep.subr.mxu0 0.0
  %147 = vmatpush1.msra.mxu0 0.0
  %148 = vmatprep.subr.mxu0 0.0
  %149 = vmatpush1.msra.mxu0 0.0
  %150 = vmatprep.subr.mxu0 0.0
  %151 = vmatpush1.msra.mxu0 0.0
  %152 = vmatprep.subr.mxu0 0.0
  %153 = vmatpush1.msra.mxu0 0.0
  %154 = vmatprep.subr.mxu0 0.0
  %155 = vmatpush1.msra.mxu0 0.0
  %156 = vmatprep.subr.mxu0 0.0
  %157 = vmatpush1.msra.mxu0 0.0
  %158 = vmatprep.subr.mxu0 0.0
  %159 = vmatpush1.msra.mxu0 0.0
  %160 = vmatprep.mubr.f32.mxu0 0.0
  %161 = vmatmul.mubr.f32.gmra.mrb[0].mxu0 %v94
  %v162 = vpop.f32.mrb[0].mxu0
  %v163 = vadd.f32 %v85, %v162
  %v164 = vpop.f32.mrb[0].mxu0
  %v165 = vadd.f32 %v89, %v164
  %166 = vdwg.mxu0
  %v167 = vld [vmem:[%s4] sm:$0xff]
  %v168 = vld [vmem:[%s4 + $0x8] sm:$0xff]
  %v169 = vld [vmem:[%s4 + $0x10] sm:$0xff]
  %v170 = vld [vmem:[%s4 + $0x18] sm:$0xff]
  %v171 = vld [vmem:[%s4 + $0x20] sm:$0xff]
  %v172 = vld [vmem:[%s4 + $0x28] sm:$0xff]
  %v173 = vld [vmem:[%s4 + $0x30] sm:$0xff]
  %v174 = vld [vmem:[%s4 + $0x38] sm:$0xff]
  %v175 = vld [vmem:[%s4 + $0x40] sm:$0xff]
  %v176 = vld [vmem:[%s4 + $0x48] sm:$0xff]
  %v177 = vld [vmem:[%s4 + $0x50] sm:$0xff]
  %v178 = vld [vmem:[%s4 + $0x58] sm:$0xff]
  %v179 = vld [vmem:[%s4 + $0x60] sm:$0xff]
  %v180 = vld [vmem:[%s4 + $0x68] sm:$0xff]
  %v181 = vld [vmem:[%s4 + $0x70] sm:$0xff]
  %v182 = vld [vmem:[%s4 + $0x78] sm:$0xff]
  %vm183 = vcmask 523264
  %v185 = vsel %vm183, 0.0, 0
  %187 = vmatprep.subr.mxu0 %v168
  %188 = vmatpush1.msra.mxu0 %v167
  %189 = vmatprep.subr.mxu0 %v170
  %190 = vmatpush1.msra.mxu0 %v169
  %191 = vmatprep.subr.mxu0 %v172
  %192 = vmatpush1.msra.mxu0 %v171
  %193 = vmatprep.subr.mxu0 %v174
  %194 = vmatpush1.msra.mxu0 %v173
  %195 = vmatprep.subr.mxu0 %v176
  %196 = vmatpush1.msra.mxu0 %v175
  %197 = vmatprep.subr.mxu0 %v178
  %198 = vmatpush1.msra.mxu0 %v177
  %199 = vmatprep.subr.mxu0 %v180
  %200 = vmatpush1.msra.mxu0 %v179
  %201 = vmatprep.subr.mxu0 %v182
  %202 = vmatpush1.msra.mxu0 %v181
  %203 = vmatprep.subr.mxu0 0.0
  %204 = vmatpush1.msra.mxu0 0.0
  %205 = vmatprep.subr.mxu0 0.0
  %206 = vmatpush1.msra.mxu0 0.0
  %207 = vmatprep.subr.mxu0 0.0
  %208 = vmatpush1.msra.mxu0 0.0
  %209 = vmatprep.subr.mxu0 0.0
  %210 = vmatpush1.msra.mxu0 0.0
  %211 = vmatprep.subr.mxu0 0.0
  %212 = vmatpush1.msra.mxu0 0.0
  %213 = vmatprep.subr.mxu0 0.0
  %214 = vmatpush1.msra.mxu0 0.0
  %215 = vmatprep.subr.mxu0 0.0
  %216 = vmatpush1.msra.mxu0 0.0
  %217 = vmatprep.subr.mxu0 0.0
  %218 = vmatpush1.msra.mxu0 0.0
  %219 = vmatprep.subr.mxu0 0.0
  %220 = vmatpush1.msra.mxu0 0.0
  %221 = vmatprep.subr.mxu0 0.0
  %222 = vmatpush1.msra.mxu0 0.0
  %223 = vmatprep.subr.mxu0 0.0
  %224 = vmatpush1.msra.mxu0 0.0
  %225 = vmatprep.subr.mxu0 0.0
  %226 = vmatpush1.msra.mxu0 0.0
  %227 = vmatprep.subr.mxu0 0.0
  %228 = vmatpush1.msra.mxu0 0.0
  %229 = vmatprep.subr.mxu0 0.0
  %230 = vmatpush1.msra.mxu0 0.0
  %231 = vmatprep.subr.mxu0 0.0
  %232 = vmatpush1.msra.mxu0 0.0
  %233 = vmatprep.subr.mxu0 0.0
  %234 = vmatpush1.msra.mxu0 0.0
  %235 = vmatprep.subr.mxu0 0.0
  %236 = vmatpush1.msra.mxu0 0.0
  %237 = vmatprep.subr.mxu0 0.0
  %238 = vmatpush1.msra.mxu0 0.0
  %239 = vmatprep.subr.mxu0 0.0
  %240 = vmatpush1.msra.mxu0 0.0
  %241 = vmatprep.subr.mxu0 0.0
  %242 = vmatpush1.msra.mxu0 0.0
  %243 = vmatprep.subr.mxu0 0.0
  %244 = vmatpush1.msra.mxu0 0.0
  %245 = vmatprep.subr.mxu0 0.0
  %246 = vmatpush1.msra.mxu0 0.0
  %247 = vmatprep.subr.mxu0 0.0
  %248 = vmatpush1.msra.mxu0 0.0
  %249 = vmatprep.subr.mxu0 0.0
  %250 = vmatpush1.msra.mxu0 0.0
  %251 = vmatprep.mubr.f32.mxu0 0.0
  %252 = vmatmul.mubr.f32.gmra.mrb[0].mxu0 %v185
  %v253 = vpop.f32.mrb[0].mxu0
  %v254 = vadd.f32 0.0, %v253
  %v255 = vpop.f32.mrb[0].mxu0
  %v256 = vadd.f32 0.0, %v255
  %257 = vdwg.mxu0
  %v258 = vadd.f32 %v163, %v254
  %v259 = vadd.f32 %v165, %v256
  %v260 = vmul.f32 %v258, 0.5
  %v261 = vtanh.pop %v260
  %v262 = vmul.f32 %v261, 0.5
  %v263 = vadd.f32 %v262, 0.5
  %v264 = vtanh.pop %v259
  %v265 = vmul.f32 %v259, 0.5
  %v266 = vtanh.pop %v265
  %v267 = vmul.f32 %v266, 0.5
  %v268 = vadd.f32 %v267, 0.5
  %v269 = vmul.f32 %v263, 0.0
  %v270 = vmul.f32 %v263, %v264
  %272 = vrot.lane.b32.xlu0 %v270, 64
  %v273 = vpop.permute.xlu0 %272
  %v275 = vadd.f32 %v269, %v273
  %v276 = vtanh.pop %v275
  %v277 = vmul.f32 %v268, %v276
  %279 = vrot.lane.b32.xlu0 %v277, 64
  %v280 = vpop.permute.xlu0 %279
  %vm282 = vcmask 253952
  %283 = vst.msk [vmem:[#allocation2] sm:$0x1] %vm282, %v280
  %284 = vrot.lane.b32.xlu0 %v277, 32
  %v285 = vpop.permute.xlu0 %284
  %287 = vst.msk [vmem:[#allocation3 + $0x7] sm:$0x1] %vm282, %v285
  %v288 = vsel %vm183, %v280, 0
  %290 = vmatprep.subr.mxu0 %v168
  %291 = vmatpush1.msra.mxu0 %v167
  %292 = vmatprep.subr.mxu0 %v170
  %293 = vmatpush1.msra.mxu0 %v169
  %294 = vmatprep.subr.mxu0 %v172
  %295 = vmatpush1.msra.mxu0 %v171
  %296 = vmatprep.subr.mxu0 %v174
  %297 = vmatpush1.msra.mxu0 %v173
  %298 = vmatprep.subr.mxu0 %v176
  %299 = vmatpush1.msra.mxu0 %v175
  %300 = vmatprep.subr.mxu0 %v178
  %301 = vmatpush1.msra.mxu0 %v177
  %302 = vmatprep.subr.mxu0 %v180
  %303 = vmatpush1.msra.mxu0 %v179
  %304 = vmatprep.subr.mxu0 %v182
  %305 = vmatpush1.msra.mxu0 %v181
  %306 = vmatprep.subr.mxu0 0.0
  %307 = vmatpush1.msra.mxu0 0.0
  %308 = vmatprep.subr.mxu0 0.0
  %309 = vmatpush1.msra.mxu0 0.0
  %310 = vmatprep.subr.mxu0 0.0
  %311 = vmatpush1.msra.mxu0 0.0
  %312 = vmatprep.subr.mxu0 0.0
  %313 = vmatpush1.msra.mxu0 0.0
  %314 = vmatprep.subr.mxu0 0.0
  %315 = vmatpush1.msra.mxu0 0.0
  %316 = vmatprep.subr.mxu0 0.0
  %317 = vmatpush1.msra.mxu0 0.0
  %318 = vmatprep.subr.mxu0 0.0
  %319 = vmatpush1.msra.mxu0 0.0
  %320 = vmatprep.subr.mxu0 0.0
  %321 = vmatpush1.msra.mxu0 0.0
  %322 = vmatprep.subr.mxu0 0.0
  %323 = vmatpush1.msra.mxu0 0.0
  %324 = vmatprep.subr.mxu0 0.0
  %325 = vmatpush1.msra.mxu0 0.0
  %326 = vmatprep.subr.mxu0 0.0
  %327 = vmatpush1.msra.mxu0 0.0
  %328 = vmatprep.subr.mxu0 0.0
  %329 = vmatpush1.msra.mxu0 0.0
  %330 = vmatprep.subr.mxu0 0.0
  %331 = vmatpush1.msra.mxu0 0.0
  %332 = vmatprep.subr.mxu0 0.0
  %333 = vmatpush1.msra.mxu0 0.0
  %334 = vmatprep.subr.mxu0 0.0
  %335 = vmatpush1.msra.mxu0 0.0
  %336 = vmatprep.subr.mxu0 0.0
  %337 = vmatpush1.msra.mxu0 0.0
  %338 = vmatprep.subr.mxu0 0.0
  %339 = vmatpush1.msra.mxu0 0.0
  %340 = vmatprep.subr.mxu0 0.0
  %341 = vmatpush1.msra.mxu0 0.0
  %342 = vmatprep.subr.mxu0 0.0
  %343 = vmatpush1.msra.mxu0 0.0
  %344 = vmatprep.subr.mxu0 0.0
  %345 = vmatpush1.msra.mxu0 0.0
  %346 = vmatprep.subr.mxu0 0.0
  %347 = vmatpush1.msra.mxu0 0.0
  %348 = vmatprep.subr.mxu0 0.0
  %349 = vmatpush1.msra.mxu0 0.0
  %350 = vmatprep.subr.mxu0 0.0
  %351 = vmatpush1.msra.mxu0 0.0
  %352 = vmatprep.subr.mxu0 0.0
  %353 = vmatpush1.msra.mxu0 0.0
  %354 = vmatprep.mubr.f32.mxu0 0.0
  %355 = vmatmul.mubr.f32.gmra.mrb[0].mxu0 %v288
  %v356 = vpop.f32.mrb[0].mxu0
  %v357 = vadd.f32 0.0, %v356
  %v358 = vpop.f32.mrb[0].mxu0
  %v359 = vadd.f32 0.0, %v358
  %360 = vdwg.mxu0
  %v363 = vrot.slane %v357, 7
  %v364 = vrot.slane %v359, 7
  %v367 = vadd.f32 %v163, %v363
  %v368 = vadd.f32 %v165, %v364
  %v369 = vmul.f32 %v367, 0.5
  %v370 = vtanh.pop %v369
  %v371 = vmul.f32 %v370, 0.5
  %v372 = vadd.f32 %v371, 0.5
  %v373 = vtanh.pop %v368
  %v374 = vmul.f32 %v368, 0.5
  %v375 = vtanh.pop %v374
  %v376 = vmul.f32 %v375, 0.5
  %v377 = vadd.f32 %v376, 0.5
  %v379 = vrot.slane %v275, 7
  %v381 = vmul.f32 %v372, %v379
  %v382 = vmul.f32 %v372, %v373
  %384 = vrot.lane.b32.xlu0 %v382, 64
  %v385 = vpop.permute.xlu0 %384
  %v387 = vadd.f32 %v381, %v385
  %v388 = vtanh.pop %v387
  %v389 = vmul.f32 %v377, %v388
  %391 = vrot.lane.b32.xlu0 %v389, 64
  %v392 = vpop.permute.xlu0 %391
  %vm394 = vcmask 254977
  %395 = vst.msk [vmem:[#allocation2] sm:$0x2] %vm394, %v392
  %396 = vrot.lane.b32.xlu0 %v389, 32
  %v397 = vpop.permute.xlu0 %396
  %399 = vst.msk [vmem:[#allocation3 + $0x5] sm:$0x2] %vm394, %v397
  %v400 = vrot.slane %v389, 1
  %401 = vrot.lane.b32.xlu0 %v400, 64
  %v402 = vpop.permute.xlu0 %401
  %v403 = vsel %vm183, %v402, 0
  %405 = vmatprep.subr.mxu0 %v168
  %406 = vmatpush1.msra.mxu0 %v167
  %407 = vmatprep.subr.mxu0 %v170
  %408 = vmatpush1.msra.mxu0 %v169
  %409 = vmatprep.subr.mxu0 %v172
  %410 = vmatpush1.msra.mxu0 %v171
  %411 = vmatprep.subr.mxu0 %v174
  %412 = vmatpush1.msra.mxu0 %v173
  %413 = vmatprep.subr.mxu0 %v176
  %414 = vmatpush1.msra.mxu0 %v175
  %415 = vmatprep.subr.mxu0 %v178
  %416 = vmatpush1.msra.mxu0 %v177
  %417 = vmatprep.subr.mxu0 %v180
  %418 = vmatpush1.msra.mxu0 %v179
  %419 = vmatprep.subr.mxu0 %v182
  %420 = vmatpush1.msra.mxu0 %v181
  %421 = vmatprep.subr.mxu0 0.0
  %422 = vmatpush1.msra.mxu0 0.0
  %423 = vmatprep.subr.mxu0 0.0
  %424 = vmatpush1.msra.mxu0 0.0
  %425 = vmatprep.subr.mxu0 0.0
  %426 = vmatpush1.msra.mxu0 0.0
  %427 = vmatprep.subr.mxu0 0.0
  %428 = vmatpush1.msra.mxu0 0.0
  %429 = vmatprep.subr.mxu0 0.0
  %430 = vmatpush1.msra.mxu0 0.0
  %431 = vmatprep.subr.mxu0 0.0
  %432 = vmatpush1.msra.mxu0 0.0
  %433 = vmatprep.subr.mxu0 0.0
  %434 = vmatpush1.msra.mxu0 0.0
  %435 = vmatprep.subr.mxu0 0.0
  %436 = vmatpush1.msra.mxu0 0.0
  %437 = vmatprep.subr.mxu0 0.0
  %438 = vmatpush1.msra.mxu0 0.0
  %439 = vmatprep.subr.mxu0 0.0
  %440 = vmatpush1.msra.mxu0 0.0
  %441 = vmatprep.subr.mxu0 0.0
  %442 = vmatpush1.msra.mxu0 0.0
  %443 = vmatprep.subr.mxu0 0.0
  %444 = vmatpush1.msra.mxu0 0.0
  %445 = vmatprep.subr.mxu0 0.0
  %446 = vmatpush1.msra.mxu0 0.0
  %447 = vmatprep.subr.mxu0 0.0
  %448 = vmatpush1.msra.mxu0 0.0
  %449 = vmatprep.subr.mxu0 0.0
  %450 = vmatpush1.msra.mxu0 0.0
  %451 = vmatprep.subr.mxu0 0.0
  %452 = vmatpush1.msra.mxu0 0.0
  %453 = vmatprep.subr.mxu0 0.0
  %454 = vmatpush1.msra.mxu0 0.0
  %455 = vmatprep.subr.mxu0 0.0
  %456 = vmatpush1.msra.mxu0 0.0
  %457 = vmatprep.subr.mxu0 0.0
  %458 = vmatpush1.msra.mxu0 0.0
  %459 = vmatprep.subr.mxu0 0.0
  %460 = vmatpush1.msra.mxu0 0.0
  %461 = vmatprep.subr.mxu0 0.0
  %462 = vmatpush1.msra.mxu0 0.0
  %463 = vmatprep.subr.mxu0 0.0
  %464 = vmatpush1.msra.mxu0 0.0
  %465 = vmatprep.subr.mxu0 0.0
  %466 = vmatpush1.msra.mxu0 0.0
  %467 = vmatprep.subr.mxu0 0.0
  %468 = vmatpush1.msra.mxu0 0.0
  %469 = vmatprep.mubr.f32.mxu0 0.0
  %470 = vmatmul.mubr.f32.gmra.mrb[0].mxu0 %v403
  %v471 = vpop.f32.mrb[0].mxu0
  %v472 = vadd.f32 0.0, %v471
  %v473 = vpop.f32.mrb[0].mxu0
  %v474 = vadd.f32 0.0, %v473
  %475 = vdwg.mxu0
  %v478 = vrot.slane %v472, 6
  %v479 = vrot.slane %v474, 6
  %v482 = vadd.f32 %v163, %v478
  %v483 = vadd.f32 %v165, %v479
  %v484 = vmul.f32 %v482, 0.5
  %v485 = vtanh.pop %v484
  %v486 = vmul.f32 %v485, 0.5
  %v487 = vadd.f32 %v486, 0.5
  %v488 = vtanh.pop %v483
  %v489 = vmul.f32 %v483, 0.5
  %v490 = vtanh.pop %v489
  %v491 = vmul.f32 %v490, 0.5
  %v492 = vadd.f32 %v491, 0.5
  %v494 = vrot.slane %v387, 7
  %v496 = vmul.f32 %v487, %v494
  %v497 = vmul.f32 %v487, %v488
  %499 = vrot.lane.b32.xlu0 %v497, 64
  %v500 = vpop.permute.xlu0 %499
  %v502 = vadd.f32 %v496, %v500
  %v503 = vtanh.pop %v502
  %v504 = vmul.f32 %v492, %v503
  %506 = vrot.lane.b32.xlu0 %v504, 64
  %v507 = vpop.permute.xlu0 %506
  %vm509 = vcmask 256002
  %510 = vst.msk [vmem:[#allocation2] sm:$0x4] %vm509, %v507
  %511 = vrot.lane.b32.xlu0 %v504, 32
  %v512 = vpop.permute.xlu0 %511
  %514 = vst.msk [vmem:[#allocation3 + $0x3] sm:$0x4] %vm509, %v512
  %v515 = vrot.slane %v504, 2
  %516 = vrot.lane.b32.xlu0 %v515, 64
  %v517 = vpop.permute.xlu0 %516
  %v518 = vsel %vm183, %v517, 0
  %520 = vmatprep.subr.mxu0 %v168
  %521 = vmatpush1.msra.mxu0 %v167
  %522 = vmatprep.subr.mxu0 %v170
  %523 = vmatpush1.msra.mxu0 %v169
  %524 = vmatprep.subr.mxu0 %v172
  %525 = vmatpush1.msra.mxu0 %v171
  %526 = vmatprep.subr.mxu0 %v174
  %527 = vmatpush1.msra.mxu0 %v173
  %528 = vmatprep.subr.mxu0 %v176
  %529 = vmatpush1.msra.mxu0 %v175
  %530 = vmatprep.subr.mxu0 %v178
  %531 = vmatpush1.msra.mxu0 %v177
  %532 = vmatprep.subr.mxu0 %v180
  %533 = vmatpush1.msra.mxu0 %v179
  %534 = vmatprep.subr.mxu0 %v182
  %535 = vmatpush1.msra.mxu0 %v181
  %536 = vmatprep.subr.mxu0 0.0
  %537 = vmatpush1.msra.mxu0 0.0
  %538 = vmatprep.subr.mxu0 0.0
  %539 = vmatpush1.msra.mxu0 0.0
  %540 = vmatprep.subr.mxu0 0.0
  %541 = vmatpush1.msra.mxu0 0.0
  %542 = vmatprep.subr.mxu0 0.0
  %543 = vmatpush1.msra.mxu0 0.0
  %544 = vmatprep.subr.mxu0 0.0
  %545 = vmatpush1.msra.mxu0 0.0
  %546 = vmatprep.subr.mxu0 0.0
  %547 = vmatpush1.msra.mxu0 0.0
  %548 = vmatprep.subr.mxu0 0.0
  %549 = vmatpush1.msra.mxu0 0.0
  %550 = vmatprep.subr.mxu0 0.0
  %551 = vmatpush1.msra.mxu0 0.0
  %552 = vmatprep.subr.mxu0 0.0
  %553 = vmatpush1.msra.mxu0 0.0
  %554 = vmatprep.subr.mxu0 0.0
  %555 = vmatpush1.msra.mxu0 0.0
  %556 = vmatprep.subr.mxu0 0.0
  %557 = vmatpush1.msra.mxu0 0.0
  %558 = vmatprep.subr.mxu0 0.0
  %559 = vmatpush1.msra.mxu0 0.0
  %560 = vmatprep.subr.mxu0 0.0
  %561 = vmatpush1.msra.mxu0 0.0
  %562 = vmatprep.subr.mxu0 0.0
  %563 = vmatpush1.msra.mxu0 0.0
  %564 = vmatprep.subr.mxu0 0.0
  %565 = vmatpush1.msra.mxu0 0.0
  %566 = vmatprep.subr.mxu0 0.0
  %567 = vmatpush1.msra.mxu0 0.0
  %568 = vmatprep.subr.mxu0 0.0
  %569 = vmatpush1.msra.mxu0 0.0
  %570 = vmatprep.subr.mxu0 0.0
  %571 = vmatpush1.msra.mxu0 0.0
  %572 = vmatprep.subr.mxu0 0.0
  %573 = vmatpush1.msra.mxu0 0.0
  %574 = vmatprep.subr.mxu0 0.0
  %575 = vmatpush1.msra.mxu0 0.0
  %576 = vmatprep.subr.mxu0 0.0
  %577 = vmatpush1.msra.mxu0 0.0
  %578 = vmatprep.subr.mxu0 0.0
  %579 = vmatpush1.msra.mxu0 0.0
  %580 = vmatprep.subr.mxu0 0.0
  %581 = vmatpush1.msra.mxu0 0.0
  %582 = vmatprep.subr.mxu0 0.0
  %583 = vmatpush1.msra.mxu0 0.0
  %584 = vmatprep.mubr.f32.mxu0 0.0
  %585 = vmatmul.mubr.f32.gmra.mrb[0].mxu0 %v518
  %v586 = vpop.f32.mrb[0].mxu0
  %v587 = vadd.f32 0.0, %v586
  %v588 = vpop.f32.mrb[0].mxu0
  %v589 = vadd.f32 0.0, %v588
  %590 = vdwg.mxu0
  %v593 = vrot.slane %v587, 5
  %v594 = vrot.slane %v589, 5
  %v597 = vadd.f32 %v163, %v593
  %v598 = vadd.f32 %v165, %v594
  %v599 = vmul.f32 %v597, 0.5
  %v600 = vtanh.pop %v599
  %v601 = vmul.f32 %v600, 0.5
  %v602 = vadd.f32 %v601, 0.5
  %v603 = vtanh.pop %v598
  %v604 = vmul.f32 %v598, 0.5
  %v605 = vtanh.pop %v604
  %v606 = vmul.f32 %v605, 0.5
  %v607 = vadd.f32 %v606, 0.5
  %v609 = vrot.slane %v502, 7
  %v611 = vmul.f32 %v602, %v609
  %v612 = vmul.f32 %v602, %v603
  %614 = vrot.lane.b32.xlu0 %v612, 64
  %v615 = vpop.permute.xlu0 %614
  %v617 = vadd.f32 %v611, %v615
  %v618 = vtanh.pop %v617
  %v619 = vmul.f32 %v607, %v618
  %621 = vrot.lane.b32.xlu0 %v619, 64
  %v622 = vpop.permute.xlu0 %621
  %vm624 = vcmask 257027
  %625 = vst.msk [vmem:[#allocation2] sm:$0x8] %vm624, %v622
  %626 = vrot.lane.b32.xlu0 %v619, 32
  %v627 = vpop.permute.xlu0 %626
  %629 = vst.msk [vmem:[#allocation3 + $0x1] sm:$0x8] %vm624, %v627
  %v630 = vrot.slane %v619, 3
  %631 = vrot.lane.b32.xlu0 %v630, 64
  %v632 = vpop.permute.xlu0 %631
  %v633 = vsel %vm183, %v632, 0
  %635 = vmatprep.subr.mxu0 %v168
  %636 = vmatpush1.msra.mxu0 %v167
  %637 = vmatprep.subr.mxu0 %v170
  %638 = vmatpush1.msra.mxu0 %v169
  %639 = vmatprep.subr.mxu0 %v172
  %640 = vmatpush1.msra.mxu0 %v171
  %641 = vmatprep.subr.mxu0 %v174
  %642 = vmatpush1.msra.mxu0 %v173
  %643 = vmatprep.subr.mxu0 %v176
  %644 = vmatpush1.msra.mxu0 %v175
  %645 = vmatprep.subr.mxu0 %v178
  %646 = vmatpush1.msra.mxu0 %v177
  %647 = vmatprep.subr.mxu0 %v180
  %648 = vmatpush1.msra.mxu0 %v179
  %649 = vmatprep.subr.mxu0 %v182
  %650 = vmatpush1.msra.mxu0 %v181
  %651 = vmatprep.subr.mxu0 0.0
  %652 = vmatpush1.msra.mxu0 0.0
  %653 = vmatprep.subr.mxu0 0.0
  %654 = vmatpush1.msra.mxu0 0.0
  %655 = vmatprep.subr.mxu0 0.0
  %656 = vmatpush1.msra.mxu0 0.0
  %657 = vmatprep.subr.mxu0 0.0
  %658 = vmatpush1.msra.mxu0 0.0
  %659 = vmatprep.subr.mxu0 0.0
  %660 = vmatpush1.msra.mxu0 0.0
  %661 = vmatprep.subr.mxu0 0.0
  %662 = vmatpush1.msra.mxu0 0.0
  %663 = vmatprep.subr.mxu0 0.0
  %664 = vmatpush1.msra.mxu0 0.0
  %665 = vmatprep.subr.mxu0 0.0
  %666 = vmatpush1.msra.mxu0 0.0
  %667 = vmatprep.subr.mxu0 0.0
  %668 = vmatpush1.msra.mxu0 0.0
  %669 = vmatprep.subr.mxu0 0.0
  %670 = vmatpush1.msra.mxu0 0.0
  %671 = vmatprep.subr.mxu0 0.0
  %672 = vmatpush1.msra.mxu0 0.0
  %673 = vmatprep.subr.mxu0 0.0
  %674 = vmatpush1.msra.mxu0 0.0
  %675 = vmatprep.subr.mxu0 0.0
  %676 = vmatpush1.msra.mxu0 0.0
  %677 = vmatprep.subr.mxu0 0.0
  %678 = vmatpush1.msra.mxu0 0.0
  %679 = vmatprep.subr.mxu0 0.0
  %680 = vmatpush1.msra.mxu0 0.0
  %681 = vmatprep.subr.mxu0 0.0
  %682 = vmatpush1.msra.mxu0 0.0
  %683 = vmatprep.subr.mxu0 0.0
  %684 = vmatpush1.msra.mxu0 0.0
  %685 = vmatprep.subr.mxu0 0.0
  %686 = vmatpush1.msra.mxu0 0.0
  %687 = vmatprep.subr.mxu0 0.0
  %688 = vmatpush1.msra.mxu0 0.0
  %689 = vmatprep.subr.mxu0 0.0
  %690 = vmatpush1.msra.mxu0 0.0
  %691 = vmatprep.subr.mxu0 0.0
  %692 = vmatpush1.msra.mxu0 0.0
  %693 = vmatprep.subr.mxu0 0.0
  %694 = vmatpush1.msra.mxu0 0.0
  %695 = vmatprep.subr.mxu0 0.0
  %696 = vmatpush1.msra.mxu0 0.0
  %697 = vmatprep.subr.mxu0 0.0
  %698 = vmatpush1.msra.mxu0 0.0
  %699 = vmatprep.mubr.f32.mxu0 0.0
  %700 = vmatmul.mubr.f32.gmra.mrb[0].mxu0 %v633
  %v701 = vpop.f32.mrb[0].mxu0
  %v702 = vadd.f32 0.0, %v701
  %v703 = vpop.f32.mrb[0].mxu0
  %v704 = vadd.f32 0.0, %v703
  %705 = vdwg.mxu0
  %v708 = vrot.slane %v702, 4
  %v709 = vrot.slane %v704, 4
  %v712 = vadd.f32 %v163, %v708
  %v713 = vadd.f32 %v165, %v709
  %v714 = vmul.f32 %v712, 0.5
  %v715 = vtanh.pop %v714
  %v716 = vmul.f32 %v715, 0.5
  %v717 = vadd.f32 %v716, 0.5
  %v718 = vtanh.pop %v713
  %v719 = vmul.f32 %v713, 0.5
  %v720 = vtanh.pop %v719
  %v721 = vmul.f32 %v720, 0.5
  %v722 = vadd.f32 %v721, 0.5
  %v724 = vrot.slane %v617, 7
  %v726 = vmul.f32 %v717, %v724
  %v727 = vmul.f32 %v717, %v718
  %729 = vrot.lane.b32.xlu0 %v727, 64
  %v730 = vpop.permute.xlu0 %729
  %v732 = vadd.f32 %v726, %v730
  %v733 = vtanh.pop %v732
  %v734 = vmul.f32 %v722, %v733
  %736 = vrot.lane.b32.xlu0 %v734, 64
  %v737 = vpop.permute.xlu0 %736
  %vm739 = vcmask 258052
  %740 = vst.msk [vmem:[#allocation2] sm:$0x10] %vm739, %v737
  %741 = vrot.lane.b32.xlu0 %v734, 32
  %v742 = vpop.permute.xlu0 %741
  %744 = vst.msk [vmem:[#allocation3 - $0x1] sm:$0x10] %vm739, %v742
  %v745 = vrot.slane %v734, 4
  %746 = vrot.lane.b32.xlu0 %v745, 64
  %v747 = vpop.permute.xlu0 %746
  %v748 = vsel %vm183, %v747, 0
  %750 = vmatprep.subr.mxu0 %v168
  %751 = vmatpush1.msra.mxu0 %v167
  %752 = vmatprep.subr.mxu0 %v170
  %753 = vmatpush1.msra.mxu0 %v169
  %754 = vmatprep.subr.mxu0 %v172
  %755 = vmatpush1.msra.mxu0 %v171
  %756 = vmatprep.subr.mxu0 %v174
  %757 = vmatpush1.msra.mxu0 %v173
  %758 = vmatprep.subr.mxu0 %v176
  %759 = vmatpush1.msra.mxu0 %v175
  %760 = vmatprep.subr.mxu0 %v178
  %761 = vmatpush1.msra.mxu0 %v177
  %762 = vmatprep.subr.mxu0 %v180
  %763 = vmatpush1.msra.mxu0 %v179
  %764 = vmatprep.subr.mxu0 %v182
  %765 = vmatpush1.msra.mxu0 %v181
  %766 = vmatprep.subr.mxu0 0.0
  %767 = vmatpush1.msra.mxu0 0.0
  %768 = vmatprep.subr.mxu0 0.0
  %769 = vmatpush1.msra.mxu0 0.0
  %770 = vmatprep.subr.mxu0 0.0
  %771 = vmatpush1.msra.mxu0 0.0
  %772 = vmatprep.subr.mxu0 0.0
  %773 = vmatpush1.msra.mxu0 0.0
  %774 = vmatprep.subr.mxu0 0.0
  %775 = vmatpush1.msra.mxu0 0.0
  %776 = vmatprep.subr.mxu0 0.0
  %777 = vmatpush1.msra.mxu0 0.0
  %778 = vmatprep.subr.mxu0 0.0
  %779 = vmatpush1.msra.mxu0 0.0
  %780 = vmatprep.subr.mxu0 0.0
  %781 = vmatpush1.msra.mxu0 0.0
  %782 = vmatprep.subr.mxu0 0.0
  %783 = vmatpush1.msra.mxu0 0.0
  %784 = vmatprep.subr.mxu0 0.0
  %785 = vmatpush1.msra.mxu0 0.0
  %786 = vmatprep.subr.mxu0 0.0
  %787 = vmatpush1.msra.mxu0 0.0
  %788 = vmatprep.subr.mxu0 0.0
  %789 = vmatpush1.msra.mxu0 0.0
  %790 = vmatprep.subr.mxu0 0.0
  %791 = vmatpush1.msra.mxu0 0.0
  %792 = vmatprep.subr.mxu0 0.0
  %793 = vmatpush1.msra.mxu0 0.0
  %794 = vmatprep.subr.mxu0 0.0
  %795 = vmatpush1.msra.mxu0 0.0
  %796 = vmatprep.subr.mxu0 0.0
  %797 = vmatpush1.msra.mxu0 0.0
  %798 = vmatprep.subr.mxu0 0.0
  %799 = vmatpush1.msra.mxu0 0.0
  %800 = vmatprep.subr.mxu0 0.0
  %801 = vmatpush1.msra.mxu0 0.0
  %802 = vmatprep.subr.mxu0 0.0
  %803 = vmatpush1.msra.mxu0 0.0
  %804 = vmatprep.subr.mxu0 0.0
  %805 = vmatpush1.msra.mxu0 0.0
  %806 = vmatprep.subr.mxu0 0.0
  %807 = vmatpush1.msra.mxu0 0.0
  %808 = vmatprep.subr.mxu0 0.0
  %809 = vmatpush1.msra.mxu0 0.0
  %810 = vmatprep.subr.mxu0 0.0
  %811 = vmatpush1.msra.mxu0 0.0
  %812 = vmatprep.subr.mxu0 0.0
  %813 = vmatpush1.msra.mxu0 0.0
  %814 = vmatprep.mubr.f32.mxu0 0.0
  %815 = vmatmul.mubr.f32.gmra.mrb[0].mxu0 %v748
  %v816 = vpop.f32.mrb[0].mxu0
  %v817 = vadd.f32 0.0, %v816
  %v818 = vpop.f32.mrb[0].mxu0
  %v819 = vadd.f32 0.0, %v818
  %820 = vdwg.mxu0
  %v823 = vrot.slane %v817, 3
  %v824 = vrot.slane %v819, 3
  %v827 = vadd.f32 %v163, %v823
  %v828 = vadd.f32 %v165, %v824
  %v829 = vmul.f32 %v827, 0.5
  %v830 = vtanh.pop %v829
  %v831 = vmul.f32 %v830, 0.5
  %v832 = vadd.f32 %v831, 0.5
  %v833 = vtanh.pop %v828
  %v834 = vmul.f32 %v828, 0.5
  %v835 = vtanh.pop %v834
  %v836 = vmul.f32 %v835, 0.5
  %v837 = vadd.f32 %v836, 0.5
  %v839 = vrot.slane %v732, 7
  %v841 = vmul.f32 %v832, %v839
  %v842 = vmul.f32 %v832, %v833
  %844 = vrot.lane.b32.xlu0 %v842, 64
  %v845 = vpop.permute.xlu0 %844
  %v847 = vadd.f32 %v841, %v845
  %v848 = vtanh.pop %v847
  %v849 = vmul.f32 %v837, %v848
  %851 = vrot.lane.b32.xlu0 %v849, 64
  %v852 = vpop.permute.xlu0 %851
  %vm854 = vcmask 259077
  %855 = vst.msk [vmem:[#allocation2] sm:$0x20] %vm854, %v852
  %856 = vrot.lane.b32.xlu0 %v849, 32
  %v857 = vpop.permute.xlu0 %856
  %859 = vst.msk [vmem:[#allocation3 - $0x3] sm:$0x20] %vm854, %v857
  %v860 = vrot.slane %v849, 5
  %861 = vrot.lane.b32.xlu0 %v860, 64
  %v862 = vpop.permute.xlu0 %861
  %v863 = vsel %vm183, %v862, 0
  %865 = vmatprep.subr.mxu0 %v168
  %866 = vmatpush1.msra.mxu0 %v167
  %867 = vmatprep.subr.mxu0 %v170
  %868 = vmatpush1.msra.mxu0 %v169
  %869 = vmatprep.subr.mxu0 %v172
  %870 = vmatpush1.msra.mxu0 %v171
  %871 = vmatprep.subr.mxu0 %v174
  %872 = vmatpush1.msra.mxu0 %v173
  %873 = vmatprep.subr.mxu0 %v176
  %874 = vmatpush1.msra.mxu0 %v175
  %875 = vmatprep.subr.mxu0 %v178
  %876 = vmatpush1.msra.mxu0 %v177
  %877 = vmatprep.subr.mxu0 %v180
  %878 = vmatpush1.msra.mxu0 %v179
  %879 = vmatprep.subr.mxu0 %v182
  %880 = vmatpush1.msra.mxu0 %v181
  %881 = vmatprep.subr.mxu0 0.0
  %882 = vmatpush1.msra.mxu0 0.0
  %883 = vmatprep.subr.mxu0 0.0
  %884 = vmatpush1.msra.mxu0 0.0
  %885 = vmatprep.subr.mxu0 0.0
  %886 = vmatpush1.msra.mxu0 0.0
  %887 = vmatprep.subr.mxu0 0.0
  %888 = vmatpush1.msra.mxu0 0.0
  %889 = vmatprep.subr.mxu0 0.0
  %890 = vmatpush1.msra.mxu0 0.0
  %891 = vmatprep.subr.mxu0 0.0
  %892 = vmatpush1.msra.mxu0 0.0
  %893 = vmatprep.subr.mxu0 0.0
  %894 = vmatpush1.msra.mxu0 0.0
  %895 = vmatprep.subr.mxu0 0.0
  %896 = vmatpush1.msra.mxu0 0.0
  %897 = vmatprep.subr.mxu0 0.0
  %898 = vmatpush1.msra.mxu0 0.0
  %899 = vmatprep.subr.mxu0 0.0
  %900 = vmatpush1.msra.mxu0 0.0
  %901 = vmatprep.subr.mxu0 0.0
  %902 = vmatpush1.msra.mxu0 0.0
  %903 = vmatprep.subr.mxu0 0.0
  %904 = vmatpush1.msra.mxu0 0.0
  %905 = vmatprep.subr.mxu0 0.0
  %906 = vmatpush1.msra.mxu0 0.0
  %907 = vmatprep.subr.mxu0 0.0
  %908 = vmatpush1.msra.mxu0 0.0
  %909 = vmatprep.subr.mxu0 0.0
  %910 = vmatpush1.msra.mxu0 0.0
  %911 = vmatprep.subr.mxu0 0.0
  %912 = vmatpush1.msra.mxu0 0.0
  %913 = vmatprep.subr.mxu0 0.0
  %914 = vmatpush1.msra.mxu0 0.0
  %915 = vmatprep.subr.mxu0 0.0
  %916 = vmatpush1.msra.mxu0 0.0
  %917 = vmatprep.subr.mxu0 0.0
  %918 = vmatpush1.msra.mxu0 0.0
  %919 = vmatprep.subr.mxu0 0.0
  %920 = vmatpush1.msra.mxu0 0.0
  %921 = vmatprep.subr.mxu0 0.0
  %922 = vmatpush1.msra.mxu0 0.0
  %923 = vmatprep.subr.mxu0 0.0
  %924 = vmatpush1.msra.mxu0 0.0
  %925 = vmatprep.subr.mxu0 0.0
  %926 = vmatpush1.msra.mxu0 0.0
  %927 = vmatprep.subr.mxu0 0.0
  %928 = vmatpush1.msra.mxu0 0.0
  %929 = vmatprep.mubr.f32.mxu0 0.0
  %930 = vmatmul.mubr.f32.gmra.mrb[0].mxu0 %v863
  %v931 = vpop.f32.mrb[0].mxu0
  %v932 = vadd.f32 0.0, %v931
  %v933 = vpop.f32.mrb[0].mxu0
  %v934 = vadd.f32 0.0, %v933
  %935 = vdwg.mxu0
  %v938 = vrot.slane %v932, 2
  %v939 = vrot.slane %v934, 2
  %v942 = vadd.f32 %v163, %v938
  %v943 = vadd.f32 %v165, %v939
  %v944 = vmul.f32 %v942, 0.5
  %v945 = vtanh.pop %v944
  %v946 = vmul.f32 %v945, 0.5
  %v947 = vadd.f32 %v946, 0.5
  %v948 = vtanh.pop %v943
  %v949 = vmul.f32 %v943, 0.5
  %v950 = vtanh.pop %v949
  %v951 = vmul.f32 %v950, 0.5
  %v952 = vadd.f32 %v951, 0.5
  %v954 = vrot.slane %v847, 7
  %v956 = vmul.f32 %v947, %v954
  %v957 = vmul.f32 %v947, %v948
  %959 = vrot.lane.b32.xlu0 %v957, 64
  %v960 = vpop.permute.xlu0 %959
  %v962 = vadd.f32 %v956, %v960
  %v963 = vtanh.pop %v962
  %v964 = vmul.f32 %v952, %v963
  %966 = vrot.lane.b32.xlu0 %v964, 64
  %v967 = vpop.permute.xlu0 %966
  %vm969 = vcmask 260102
  %970 = vst.msk [vmem:[#allocation2] sm:$0x40] %vm969, %v967
  %971 = vrot.lane.b32.xlu0 %v964, 32
  %v972 = vpop.permute.xlu0 %971
  %974 = vst.msk [vmem:[#allocation3 - $0x5] sm:$0x40] %vm969, %v972
  %v975 = vrot.slane %v964, 6
  %976 = vrot.lane.b32.xlu0 %v975, 64
  %v977 = vpop.permute.xlu0 %976
  %v978 = vsel %vm183, %v977, 0
  %980 = vmatprep.subr.mxu0 %v168
  %981 = vmatpush1.msra.mxu0 %v167
  %982 = vmatprep.subr.mxu0 %v170
  %983 = vmatpush1.msra.mxu0 %v169
  %984 = vmatprep.subr.mxu0 %v172
  %985 = vmatpush1.msra.mxu0 %v171
  %986 = vmatprep.subr.mxu0 %v174
  %987 = vmatpush1.msra.mxu0 %v173
  %988 = vmatprep.subr.mxu0 %v176
  %989 = vmatpush1.msra.mxu0 %v175
  %990 = vmatprep.subr.mxu0 %v178
  %991 = vmatpush1.msra.mxu0 %v177
  %992 = vmatprep.subr.mxu0 %v180
  %993 = vmatpush1.msra.mxu0 %v179
  %994 = vmatprep.subr.mxu0 %v182
  %995 = vmatpush1.msra.mxu0 %v181
  %996 = vmatprep.subr.mxu0 0.0
  %997 = vmatpush1.msra.mxu0 0.0
  %998 = vmatprep.subr.mxu0 0.0
  %999 = vmatpush1.msra.mxu0 0.0
  %1000 = vmatprep.subr.mxu0 0.0
  %1001 = vmatpush1.msra.mxu0 0.0
  %1002 = vmatprep.subr.mxu0 0.0
  %1003 = vmatpush1.msra.mxu0 0.0
  %1004 = vmatprep.subr.mxu0 0.0
  %1005 = vmatpush1.msra.mxu0 0.0
  %1006 = vmatprep.subr.mxu0 0.0
  %1007 = vmatpush1.msra.mxu0 0.0
  %1008 = vmatprep.subr.mxu0 0.0
  %1009 = vmatpush1.msra.mxu0 0.0
  %1010 = vmatprep.subr.mxu0 0.0
  %1011 = vmatpush1.msra.mxu0 0.0
  %1012 = vmatprep.subr.mxu0 0.0
  %1013 = vmatpush1.msra.mxu0 0.0
  %1014 = vmatprep.subr.mxu0 0.0
  %1015 = vmatpush1.msra.mxu0 0.0
  %1016 = vmatprep.subr.mxu0 0.0
  %1017 = vmatpush1.msra.mxu0 0.0
  %1018 = vmatprep.subr.mxu0 0.0
  %1019 = vmatpush1.msra.mxu0 0.0
  %1020 = vmatprep.subr.mxu0 0.0
  %1021 = vmatpush1.msra.mxu0 0.0
  %1022 = vmatprep.subr.mxu0 0.0
  %1023 = vmatpush1.msra.mxu0 0.0
  %1024 = vmatprep.subr.mxu0 0.0
  %1025 = vmatpush1.msra.mxu0 0.0
  %1026 = vmatprep.subr.mxu0 0.0
  %1027 = vmatpush1.msra.mxu0 0.0
  %1028 = vmatprep.subr.mxu0 0.0
  %1029 = vmatpush1.msra.mxu0 0.0
  %1030 = vmatprep.subr.mxu0 0.0
  %1031 = vmatpush1.msra.mxu0 0.0
  %1032 = vmatprep.subr.mxu0 0.0
  %1033 = vmatpush1.msra.mxu0 0.0
  %1034 = vmatprep.subr.mxu0 0.0
  %1035 = vmatpush1.msra.mxu0 0.0
  %1036 = vmatprep.subr.mxu0 0.0
  %1037 = vmatpush1.msra.mxu0 0.0
  %1038 = vmatprep.subr.mxu0 0.0
  %1039 = vmatpush1.msra.mxu0 0.0
  %1040 = vmatprep.subr.mxu0 0.0
  %1041 = vmatpush1.msra.mxu0 0.0
  %1042 = vmatprep.subr.mxu0 0.0
  %1043 = vmatpush1.msra.mxu0 0.0
  %1044 = vmatprep.mubr.f32.mxu0 0.0
  %1045 = vmatmul.mubr.f32.gmra.mrb[0].mxu0 %v978
  %v1046 = vpop.f32.mrb[0].mxu0
  %v1047 = vadd.f32 0.0, %v1046
  %v1048 = vpop.f32.mrb[0].mxu0
  %v1049 = vadd.f32 0.0, %v1048
  %1050 = vdwg.mxu0
  %v1053 = vrot.slane %v1047, 1
  %v1054 = vrot.slane %v1049, 1
  %v1057 = vadd.f32 %v163, %v1053
  %v1058 = vadd.f32 %v165, %v1054
  %v1059 = vmul.f32 %v1057, 0.5
  %v1060 = vtanh.pop %v1059
  %v1061 = vmul.f32 %v1060, 0.5
  %v1062 = vadd.f32 %v1061, 0.5
  %v1063 = vtanh.pop %v1058
  %v1064 = vmul.f32 %v1058, 0.5
  %v1065 = vtanh.pop %v1064
  %v1066 = vmul.f32 %v1065, 0.5
  %v1067 = vadd.f32 %v1066, 0.5
  %v1069 = vrot.slane %v962, 7
  %v1071 = vmul.f32 %v1062, %v1069
  %v1072 = vmul.f32 %v1062, %v1063
  %1074 = vrot.lane.b32.xlu0 %v1072, 64
  %v1075 = vpop.permute.xlu0 %1074
  %v1077 = vadd.f32 %v1071, %v1075
  %v1078 = vtanh.pop %v1077
  %v1079 = vmul.f32 %v1067, %v1078
  %1081 = vrot.lane.b32.xlu0 %v1079, 64
  %v1082 = vpop.permute.xlu0 %1081
  %vm1084 = vcmask 261127
  %1085 = vst.msk [vmem:[#allocation2] sm:$0x80] %vm1084, %v1082
  %1086 = vrot.lane.b32.xlu0 %v1079, 32
  %v1087 = vpop.permute.xlu0 %1086
  %1089 = vst.msk [vmem:[#allocation3 - $0x7] sm:$0x80] %vm1084, %v1087
  %v1090 = vld [vmem:[#allocation2] sm:$0xff]
  %v1091 = vld [vmem:[#allocation3] sm:$0xff]
  %1093 = vrot.lane.b32.xlu0 %v1091, 32
  %v1094 = vpop.permute.xlu0 %1093
  %v1096 = vsel %vm92, %v1090, %v1094
  %v1097 = vld [vmem:[%s1] sm:$0xff]
  %v1098 = vld [vmem:[%s5] sm:$0xff]
  %v1099 = vld [vmem:[%s5 + $0x8] sm:$0xff]
  %v1100 = vld [vmem:[%s6] sm:$0x1]
  %v1102 = vlaneseq
  %v1103 = vshrl.u32 %v1102, 7
  %v1104 = vsub.s32 0, %v1103
  %v1105 = vrot.slane %v1100, %v1104
  %vm1107 = vcmask 130048
  %v1109 = vsel %vm1107, %v1097, 0
  %1111 = vmatprep.subr.mxu0 0.0
  %1112 = vmatpush1.msra.mxu0 %v1098
  %1113 = vmatprep.subr.mxu0 0.0
  %1114 = vmatpush1.msra.mxu0 %v1099
  %1115 = vmatprep.subr.mxu0 0.0
  %1116 = vmatpush1.msra.mxu0 0.0
  %1117 = vmatprep.subr.mxu0 0.0
  %1118 = vmatpush1.msra.mxu0 0.0
  %1119 = vmatprep.subr.mxu0 0.0
  %1120 = vmatpush1.msra.mxu0 0.0
  %1121 = vmatprep.subr.mxu0 0.0
  %1122 = vmatpush1.msra.mxu0 0.0
  %1123 = vmatprep.subr.mxu0 0.0
  %1124 = vmatpush1.msra.mxu0 0.0
  %1125 = vmatprep.subr.mxu0 0.0
  %1126 = vmatpush1.msra.mxu0 0.0
  %1127 = vmatprep.subr.mxu0 0.0
  %1128 = vmatpush1.msra.mxu0 0.0
  %1129 = vmatprep.subr.mxu0 0.0
  %1130 = vmatpush1.msra.mxu0 0.0
  %1131 = vmatprep.subr.mxu0 0.0
  %1132 = vmatpush1.msra.mxu0 0.0
  %1133 = vmatprep.subr.mxu0 0.0
  %1134 = vmatpush1.msra.mxu0 0.0
  %1135 = vmatprep.subr.mxu0 0.0
  %1136 = vmatpush1.msra.mxu0 0.0
  %1137 = vmatprep.subr.mxu0 0.0
  %1138 = vmatpush1.msra.mxu0 0.0
  %1139 = vmatprep.subr.mxu0 0.0
  %1140 = vmatpush1.msra.mxu0 0.0
  %1141 = vmatprep.subr.mxu0 0.0
  %1142 = vmatpush1.msra.mxu0 0.0
  %1143 = vmatprep.subr.mxu0 0.0
  %1144 = vmatpush1.msra.mxu0 0.0
  %1145 = vmatprep.subr.mxu0 0.0
  %1146 = vmatpush1.msra.mxu0 0.0
  %1147 = vmatprep.subr.mxu0 0.0
  %1148 = vmatpush1.msra.mxu0 0.0
  %1149 = vmatprep.subr.mxu0 0.0
  %1150 = vmatpush1.msra.mxu0 0.0
  %1151 = vmatprep.subr.mxu0 0.0
  %1152 = vmatpush1.msra.mxu0 0.0
  %1153 = vmatprep.subr.mxu0 0.0
  %1154 = vmatpush1.msra.mxu0 0.0
  %1155 = vmatprep.subr.mxu0 0.0
  %1156 = vmatpush1.msra.mxu0 0.0
  %1157 = vmatprep.subr.mxu0 0.0
  %1158 = vmatpush1.msra.mxu0 0.0
  %1159 = vmatprep.subr.mxu0 0.0
  %1160 = vmatpush1.msra.mxu0 0.0
  %1161 = vmatprep.subr.mxu0 0.0
  %1162 = vmatpush1.msra.mxu0 0.0
  %1163 = vmatprep.subr.mxu0 0.0
  %1164 = vmatpush1.msra.mxu0 0.0
  %1165 = vmatprep.subr.mxu0 0.0
  %1166 = vmatpush1.msra.mxu0 0.0
  %1167 = vmatprep.subr.mxu0 0.0
  %1168 = vmatpush1.msra.mxu0 0.0
  %1169 = vmatprep.subr.mxu0 0.0
  %1170 = vmatpush1.msra.mxu0 0.0
  %1171 = vmatprep.subr.mxu0 0.0
  %1172 = vmatpush1.msra.mxu0 0.0
  %1173 = vmatprep.subr.mxu0 0.0
  %1174 = vmatpush1.msra.mxu0 0.0
  %1175 = vmatprep.mubr.f32.mxu0 0.0
  %1176 = vmatmul.mubr.f32.gmra.mrb[0].mxu0 %v1109
  %v1177 = vpop.f32.mrb[0].mxu0
  %v1178 = vadd.f32 %v1105, %v1177
  %v1179 = vpop.f32.mrb[0].mxu0
  %1180 = vdwg.mxu0
  %v1181 = vld [vmem:[%s7] sm:$0xff]
  %v1182 = vld [vmem:[%s7 + $0x8] sm:$0xff]
  %v1183 = vld [vmem:[%s7 + $0x10] sm:$0xff]
  %v1184 = vld [vmem:[%s7 + $0x18] sm:$0xff]
  %1185 = vst.msk [vmem:[#allocation4] sm:$0xff] %vm183, 0.0
  %v1186 = vmul.f32 %v1178, 0.5
  %v1187 = vtanh.pop %v1186
  %v1188 = vmul.f32 %v1187, 0.5
  %v1189 = vadd.f32 %v1188, 0.5
  %v1190 = vtanh.pop %v1178
  %1192 = vrot.lane.b32.xlu0 %v1190, 64
  %v1193 = vpop.permute.xlu0 %1192
  %v1195 = vmul.f32 %v1189, %v1193
  %v1196 = vtanh.pop %v1195
  %1198 = vrot.lane.b32.xlu0 %v1196, 32
  %v1199 = vpop.permute.xlu0 %1198
  %v1201 = vmul.f32 %v1189, %v1199
  %1203 = vrot.lane.b32.xlu0 %v1201, 96
  %v1204 = vpop.permute.xlu0 %1203
  %1207 = vrot.lane.b32.xlu0 %v1195, 32
  %v1208 = vpop.permute.xlu0 %1207
  %v1210 = vsel %vm92, %v1204, %v1208
  %vm1211 = vcmask 519168
  %1212 = vst.msk [vmem:[#allocation4] sm:$0xf] %vm1211, %v1210
  %v1213 = vld [vmem:[%s13] sm:$0xff]
  %v1214 = vld [vmem:[%s14] sm:$0x3]
  %v1215 = vld [vmem:[%s15] sm:$0xff]
  %v1216 = vld [vmem:[#allocation4] sm:$0xff]
  %vm1217 = vcmask 64512
  %v1219 = vsel %vm1217, %v1213, 0
  %1221 = vmatprep.subr.mxu0 0.0
  %1222 = vmatpush1.msra.mxu0 %v1216
  %1223 = vmatprep.subr.mxu0 0.0
  %1224 = vmatpush1.msra.mxu0 0.0
  %1225 = vmatprep.subr.mxu0 0.0
  %1226 = vmatpush1.msra.mxu0 0.0
  %1227 = vmatprep.subr.mxu0 0.0
  %1228 = vmatpush1.msra.mxu0 0.0
  %1229 = vmatprep.subr.mxu0 0.0
  %1230 = vmatpush1.msra.mxu0 0.0
  %1231 = vmatprep.subr.mxu0 0.0
  %1232 = vmatpush1.msra.mxu0 0.0
  %1233 = vmatprep.subr.mxu0 0.0
  %1234 = vmatpush1.msra.mxu0 0.0
  %1235 = vmatprep.subr.mxu0 0.0
  %1236 = vmatpush1.msra.mxu0 0.0
  %1237 = vmatprep.subr.mxu0 0.0
  %1238 = vmatpush1.msra.mxu0 0.0
  %1239 = vmatprep.subr.mxu0 0.0
  %1240 = vmatpush1.msra.mxu0 0.0
  %1241 = vmatprep.subr.mxu0 0.0
  %1242 = vmatpush1.msra.mxu0 0.0
  %1243 = vmatprep.subr.mxu0 0.0
  %1244 = vmatpush1.msra.mxu0 0.0
  %1245 = vmatprep.subr.mxu0 0.0
  %1246 = vmatpush1.msra.mxu0 0.0
  %1247 = vmatprep.subr.mxu0 0.0
  %1248 = vmatpush1.msra.mxu0 0.0
  %1249 = vmatprep.subr.mxu0 0.0
  %1250 = vmatpush1.msra.mxu0 0.0
  %1251 = vmatprep.subr.mxu0 0.0
  %1252 = vmatpush1.msra.mxu0 0.0
  %1253 = vmatprep.subr.mxu0 0.0
  %1254 = vmatpush1.msra.mxu0 0.0
  %1255 = vmatprep.subr.mxu0 0.0
  %1256 = vmatpush1.msra.mxu0 0.0
  %1257 = vmatprep.subr.mxu0 0.0
  %1258 = vmatpush1.msra.mxu0 0.0
  %1259 = vmatprep.subr.mxu0 0.0
  %1260 = vmatpush1.msra.mxu0 0.0
  %1261 = vmatprep.subr.mxu0 0.0
  %1262 = vmatpush1.msra.mxu0 0.0
  %1263 = vmatprep.subr.mxu0 0.0
  %1264 = vmatpush1.msra.mxu0 0.0
  %1265 = vmatprep.subr.mxu0 0.0
  %1266 = vmatpush1.msra.mxu0 0.0
  %1267 = vmatprep.subr.mxu0 0.0
  %1268 = vmatpush1.msra.mxu0 0.0
  %1269 = vmatprep.subr.mxu0 0.0
  %1270 = vmatpush1.msra.mxu0 0.0
  %1271 = vmatprep.subr.mxu0 0.0
  %1272 = vmatpush1.msra.mxu0 0.0
  %1273 = vmatprep.subr.mxu0 0.0
  %1274 = vmatpush1.msra.mxu0 0.0
  %1275 = vmatprep.subr.mxu0 0.0
  %1276 = vmatpush1.msra.mxu0 0.0
  %1277 = vmatprep.subr.mxu0 0.0
  %1278 = vmatpush1.msra.mxu0 0.0
  %1279 = vmatprep.subr.mxu0 0.0
  %1280 = vmatpush1.msra.mxu0 0.0
  %1281 = vmatprep.subr.mxu0 0.0
  %1282 = vmatpush1.msra.mxu0 0.0
  %1283 = vmatprep.subr.mxu0 0.0
  %1284 = vmatpush1.msra.mxu0 0.0
  %1285 = vmatprep.mubr.f32.mxu0 0.0
  %1286 = vmatmul.mubr.f32.gmra.mrb[0].mxu0 %v1219
  %v1287 = vpop.f32.mrb[0].mxu0
  %v1288 = vadd.f32 0.0, %v1287
  %v1289 = vpop.f32.mrb[0].mxu0
  %1290 = vdwg.mxu0
  %v1292 = vsel %vm92, %v1288, 0
  %1294 = vmatprep.subr.mxu0 0.0
  %1295 = vmatpush1.msra.mxu0 %v1181
  %1296 = vmatprep.subr.mxu0 0.0
  %1297 = vmatpush1.msra.mxu0 %v1182
  %1298 = vmatprep.subr.mxu0 0.0
  %1299 = vmatpush1.msra.mxu0 %v1183
  %1300 = vmatprep.subr.mxu0 0.0
  %1301 = vmatpush1.msra.mxu0 %v1184
  %1302 = vmatprep.subr.mxu0 0.0
  %1303 = vmatpush1.msra.mxu0 0.0
  %1304 = vmatprep.subr.mxu0 0.0
  %1305 = vmatpush1.msra.mxu0 0.0
  %1306 = vmatprep.subr.mxu0 0.0
  %1307 = vmatpush1.msra.mxu0 0.0
  %1308 = vmatprep.subr.mxu0 0.0
  %1309 = vmatpush1.msra.mxu0 0.0
  %1310 = vmatprep.subr.mxu0 0.0
  %1311 = vmatpush1.msra.mxu0 0.0
  %1312 = vmatprep.subr.mxu0 0.0
  %1313 = vmatpush1.msra.mxu0 0.0
  %1314 = vmatprep.subr.mxu0 0.0
  %1315 = vmatpush1.msra.mxu0 0.0
  %1316 = vmatprep.subr.mxu0 0.0
  %1317 = vmatpush1.msra.mxu0 0.0
  %1318 = vmatprep.subr.mxu0 0.0
  %1319 = vmatpush1.msra.mxu0 0.0
  %1320 = vmatprep.subr.mxu0 0.0
  %1321 = vmatpush1.msra.mxu0 0.0
  %1322 = vmatprep.subr.mxu0 0.0
  %1323 = vmatpush1.msra.mxu0 0.0
  %1324 = vmatprep.subr.mxu0 0.0
  %1325 = vmatpush1.msra.mxu0 0.0
  %1326 = vmatprep.subr.mxu0 0.0
  %1327 = vmatpush1.msra.mxu0 0.0
  %1328 = vmatprep.subr.mxu0 0.0
  %1329 = vmatpush1.msra.mxu0 0.0
  %1330 = vmatprep.subr.mxu0 0.0
  %1331 = vmatpush1.msra.mxu0 0.0
  %1332 = vmatprep.subr.mxu0 0.0
  %1333 = vmatpush1.msra.mxu0 0.0
  %1334 = vmatprep.subr.mxu0 0.0
  %1335 = vmatpush1.msra.mxu0 0.0
  %1336 = vmatprep.subr.mxu0 0.0
  %1337 = vmatpush1.msra.mxu0 0.0
  %1338 = vmatprep.subr.mxu0 0.0
  %1339 = vmatpush1.msra.mxu0 0.0
  %1340 = vmatprep.subr.mxu0 0.0
  %1341 = vmatpush1.msra.mxu0 0.0
  %1342 = vmatprep.subr.mxu0 0.0
  %1343 = vmatpush1.msra.mxu0 0.0
  %1344 = vmatprep.subr.mxu0 0.0
  %1345 = vmatpush1.msra.mxu0 0.0
  %1346 = vmatprep.subr.mxu0 0.0
  %1347 = vmatpush1.msra.mxu0 0.0
  %1348 = vmatprep.subr.mxu0 0.0
  %1349 = vmatpush1.msra.mxu0 0.0
  %1350 = vmatprep.subr.mxu0 0.0
  %1351 = vmatpush1.msra.mxu0 0.0
  %1352 = vmatprep.subr.mxu0 0.0
  %1353 = vmatpush1.msra.mxu0 0.0
  %1354 = vmatprep.subr.mxu0 0.0
  %1355 = vmatpush1.msra.mxu0 0.0
  %1356 = vmatprep.subr.mxu0 0.0
  %1357 = vmatpush1.msra.mxu0 0.0
  %1358 = vmatprep.mubr.f32.mxu0 0.0
  %1359 = vmatmul.mubr.f32.gmra.mrb[0].mxu0 %v1292
  %v1360 = vpop.f32.mrb[0].mxu0
  %v1361 = vadd.f32 0.0, %v1360
  %v1362 = vpop.f32.mrb[0].mxu0
  %1363 = vdwg.mxu0
  %v1365 = vsel %vm1217, %v1214, 0
  %1367 = vmatprep.subr.mxu0 0.0
  %1368 = vmatpush1.msra.mxu0 %v1361
  %1369 = vmatprep.subr.mxu0 0.0
  %1370 = vmatpush1.msra.mxu0 0.0
  %1371 = vmatprep.subr.mxu0 0.0
  %1372 = vmatpush1.msra.mxu0 0.0
  %1373 = vmatprep.subr.mxu0 0.0
  %1374 = vmatpush1.msra.mxu0 0.0
  %1375 = vmatprep.subr.mxu0 0.0
  %1376 = vmatpush1.msra.mxu0 0.0
  %1377 = vmatprep.subr.mxu0 0.0
  %1378 = vmatpush1.msra.mxu0 0.0
  %1379 = vmatprep.subr.mxu0 0.0
  %1380 = vmatpush1.msra.mxu0 0.0
  %1381 = vmatprep.subr.mxu0 0.0
  %1382 = vmatpush1.msra.mxu0 0.0
  %1383 = vmatprep.subr.mxu0 0.0
  %1384 = vmatpush1.msra.mxu0 0.0
  %1385 = vmatprep.subr.mxu0 0.0
  %1386 = vmatpush1.msra.mxu0 0.0
  %1387 = vmatprep.subr.mxu0 0.0
  %1388 = vmatpush1.msra.mxu0 0.0
  %1389 = vmatprep.subr.mxu0 0.0
  %1390 = vmatpush1.msra.mxu0 0.0
  %1391 = vmatprep.subr.mxu0 0.0
  %1392 = vmatpush1.msra.mxu0 0.0
  %1393 = vmatprep.subr.mxu0 0.0
  %1394 = vmatpush1.msra.mxu0 0.0
  %1395 = vmatprep.subr.mxu0 0.0
  %1396 = vmatpush1.msra.mxu0 0.0
  %1397 = vmatprep.subr.mxu0 0.0
  %1398 = vmatpush1.msra.mxu0 0.0
  %1399 = vmatprep.subr.mxu0 0.0
  %1400 = vmatpush1.msra.mxu0 0.0
  %1401 = vmatprep.subr.mxu0 0.0
  %1402 = vmatpush1.msra.mxu0 0.0
  %1403 = vmatprep.subr.mxu0 0.0
  %1404 = vmatpush1.msra.mxu0 0.0
  %1405 = vmatprep.subr.mxu0 0.0
  %1406 = vmatpush1.msra.mxu0 0.0
  %1407 = vmatprep.subr.mxu0 0.0
  %1408 = vmatpush1.msra.mxu0 0.0
  %1409 = vmatprep.subr.mxu0 0.0
  %1410 = vmatpush1.msra.mxu0 0.0
  %1411 = vmatprep.subr.mxu0 0.0
  %1412 = vmatpush1.msra.mxu0 0.0
  %1413 = vmatprep.subr.mxu0 0.0
  %1414 = vmatpush1.msra.mxu0 0.0
  %1415 = vmatprep.subr.mxu0 0.0
  %1416 = vmatpush1.msra.mxu0 0.0
  %1417 = vmatprep.subr.mxu0 0.0
  %1418 = vmatpush1.msra.mxu0 0.0
  %1419 = vmatprep.subr.mxu0 0.0
  %1420 = vmatpush1.msra.mxu0 0.0
  %1421 = vmatprep.subr.mxu0 0.0
  %1422 = vmatpush1.msra.mxu0 0.0
  %1423 = vmatprep.subr.mxu0 0.0
  %1424 = vmatpush1.msra.mxu0 0.0
  %1425 = vmatprep.subr.mxu0 0.0
  %1426 = vmatpush1.msra.mxu0 0.0
  %1427 = vmatprep.subr.mxu0 0.0
  %1428 = vmatpush1.msra.mxu0 0.0
  %1429 = vmatprep.subr.mxu0 0.0
  %1430 = vmatpush1.msra.mxu0 0.0
  %1431 = vmatprep.mubr.f32.mxu0 0.0
  %1432 = vmatmul.mubr.f32.gmra.mrb[0].mxu0 %v1365
  %v1433 = vpop.f32.mrb[0].mxu0
  %v1434 = vadd.f32 0.0, %v1433
  %v1435 = vpop.f32.mrb[0].mxu0
  %1436 = vdwg.mxu0
  %1438 = vrot.lane.b32.xlu0 %v1178, 32
  %v1439 = vpop.permute.xlu0 %1438
  %1442 = vrot.lane.b32.xlu0 %v1361, 32
  %v1443 = vpop.permute.xlu0 %1442
  %v1446 = vsel %vm1217, %v1215, 0
  %1448 = vmatprep.subr.mxu0 0.0
  %1449 = vmatpush1.msra.mxu0 %v1439
  %1450 = vmatprep.subr.mxu0 0.0
  %1451 = vmatpush1.msra.mxu0 0.0
  %1452 = vmatprep.subr.mxu0 0.0
  %1453 = vmatpush1.msra.mxu0 0.0
  %1454 = vmatprep.subr.mxu0 0.0
  %1455 = vmatpush1.msra.mxu0 0.0
  %1456 = vmatprep.subr.mxu0 0.0
  %1457 = vmatpush1.msra.mxu0 0.0
  %1458 = vmatprep.subr.mxu0 0.0
  %1459 = vmatpush1.msra.mxu0 0.0
  %1460 = vmatprep.subr.mxu0 0.0
  %1461 = vmatpush1.msra.mxu0 0.0
  %1462 = vmatprep.subr.mxu0 0.0
  %1463 = vmatpush1.msra.mxu0 0.0
  %1464 = vmatprep.subr.mxu0 0.0
  %1465 = vmatpush1.msra.mxu0 0.0
  %1466 = vmatprep.subr.mxu0 0.0
  %1467 = vmatpush1.msra.mxu0 0.0
  %1468 = vmatprep.subr.mxu0 0.0
  %1469 = vmatpush1.msra.mxu0 0.0
  %1470 = vmatprep.subr.mxu0 0.0
  %1471 = vmatpush1.msra.mxu0 0.0
  %1472 = vmatprep.subr.mxu0 0.0
  %1473 = vmatpush1.msra.mxu0 0.0
  %1474 = vmatprep.subr.mxu0 0.0
  %1475 = vmatpush1.msra.mxu0 0.0
  %1476 = vmatprep.subr.mxu0 0.0
  %1477 = vmatpush1.msra.mxu0 0.0
  %1478 = vmatprep.subr.mxu0 0.0
  %1479 = vmatpush1.msra.mxu0 0.0
  %1480 = vmatprep.subr.mxu0 0.0
  %1481 = vmatpush1.msra.mxu0 0.0
  %1482 = vmatprep.subr.mxu0 0.0
  %1483 = vmatpush1.msra.mxu0 0.0
  %1484 = vmatprep.subr.mxu0 0.0
  %1485 = vmatpush1.msra.mxu0 0.0
  %1486 = vmatprep.subr.mxu0 0.0
  %1487 = vmatpush1.msra.mxu0 0.0
  %1488 = vmatprep.subr.mxu0 0.0
  %1489 = vmatpush1.msra.mxu0 0.0
  %1490 = vmatprep.subr.mxu0 0.0
  %1491 = vmatpush1.msra.mxu0 0.0
  %1492 = vmatprep.subr.mxu0 0.0
  %1493 = vmatpush1.msra.mxu0 0.0
  %1494 = vmatprep.subr.mxu0 0.0
  %1495 = vmatpush1.msra.mxu0 0.0
  %1496 = vmatprep.subr.mxu0 0.0
  %1497 = vmatpush1.msra.mxu0 0.0
  %1498 = vmatprep.subr.mxu0 0.0
  %1499 = vmatpush1.msra.mxu0 0.0
  %1500 = vmatprep.subr.mxu0 0.0
  %1501 = vmatpush1.msra.mxu0 0.0
  %1502 = vmatprep.subr.mxu0 0.0
  %1503 = vmatpush1.msra.mxu0 0.0
  %1504 = vmatprep.subr.mxu0 0.0
  %1505 = vmatpush1.msra.mxu0 0.0
  %1506 = vmatprep.subr.mxu0 0.0
  %1507 = vmatpush1.msra.mxu0 0.0
  %1508 = vmatprep.subr.mxu0 0.0
  %1509 = vmatpush1.msra.mxu0 0.0
  %1510 = vmatprep.subr.mxu0 0.0
  %1511 = vmatpush1.msra.mxu0 0.0
  %1512 = vmatprep.mubr.f32.mxu0 0.0
  %1513 = vmatmul.mubr.f32.gmra.mrb[0].mxu0 %v1446
  %v1514 = vpop.f32.mrb[0].mxu0
  %v1515 = vadd.f32 %v1443, %v1514
  %v1516 = vpop.f32.mrb[0].mxu0
  %1517 = vdwg.mxu0
  %v1518 = vmul.f32 %v1515, 0.5
  %v1519 = vtanh.pop %v1518
  %v1520 = vmul.f32 %v1519, 0.5
  %v1521 = vadd.f32 %v1520, 0.5
  %1522 = vrot.lane.b32.xlu0 %v1288, 96
  %v1523 = vpop.permute.xlu0 %1522
  %v1525 = vmul.f32 %v1521, %v1523
  %1526 = vmatprep.subr.mxu0 0.0
  %1527 = vmatpush1.msra.mxu0 %v1525
  %1528 = vmatprep.subr.mxu0 0.0
  %1529 = vmatpush1.msra.mxu0 0.0
  %1530 = vmatprep.subr.mxu0 0.0
  %1531 = vmatpush1.msra.mxu0 0.0
  %1532 = vmatprep.subr.mxu0 0.0
  %1533 = vmatpush1.msra.mxu0 0.0
  %1534 = vmatprep.subr.mxu0 0.0
  %1535 = vmatpush1.msra.mxu0 0.0
  %1536 = vmatprep.subr.mxu0 0.0
  %1537 = vmatpush1.msra.mxu0 0.0
  %1538 = vmatprep.subr.mxu0 0.0
  %1539 = vmatpush1.msra.mxu0 0.0
  %1540 = vmatprep.subr.mxu0 0.0
  %1541 = vmatpush1.msra.mxu0 0.0
  %1542 = vmatprep.subr.mxu0 0.0
  %1543 = vmatpush1.msra.mxu0 0.0
  %1544 = vmatprep.subr.mxu0 0.0
  %1545 = vmatpush1.msra.mxu0 0.0
  %1546 = vmatprep.subr.mxu0 0.0
  %1547 = vmatpush1.msra.mxu0 0.0
  %1548 = vmatprep.subr.mxu0 0.0
  %1549 = vmatpush1.msra.mxu0 0.0
  %1550 = vmatprep.subr.mxu0 0.0
  %1551 = vmatpush1.msra.mxu0 0.0
  %1552 = vmatprep.subr.mxu0 0.0
  %1553 = vmatpush1.msra.mxu0 0.0
  %1554 = vmatprep.subr.mxu0 0.0
  %1555 = vmatpush1.msra.mxu0 0.0
  %1556 = vmatprep.subr.mxu0 0.0
  %1557 = vmatpush1.msra.mxu0 0.0
  %1558 = vmatprep.subr.mxu0 0.0
  %1559 = vmatpush1.msra.mxu0 0.0
  %1560 = vmatprep.subr.mxu0 0.0
  %1561 = vmatpush1.msra.mxu0 0.0
  %1562 = vmatprep.subr.mxu0 0.0
  %1563 = vmatpush1.msra.mxu0 0.0
  %1564 = vmatprep.subr.mxu0 0.0
  %1565 = vmatpush1.msra.mxu0 0.0
  %1566 = vmatprep.subr.mxu0 0.0
  %1567 = vmatpush1.msra.mxu0 0.0
  %1568 = vmatprep.subr.mxu0 0.0
  %1569 = vmatpush1.msra.mxu0 0.0
  %1570 = vmatprep.subr.mxu0 0.0
  %1571 = vmatpush1.msra.mxu0 0.0
  %1572 = vmatprep.subr.mxu0 0.0
  %1573 = vmatpush1.msra.mxu0 0.0
  %1574 = vmatprep.subr.mxu0 0.0
  %1575 = vmatpush1.msra.mxu0 0.0
  %1576 = vmatprep.subr.mxu0 0.0
  %1577 = vmatpush1.msra.mxu0 0.0
  %1578 = vmatprep.subr.mxu0 0.0
  %1579 = vmatpush1.msra.mxu0 0.0
  %1580 = vmatprep.subr.mxu0 0.0
  %1581 = vmatpush1.msra.mxu0 0.0
  %1582 = vmatprep.subr.mxu0 0.0
  %1583 = vmatpush1.msra.mxu0 0.0
  %1584 = vmatprep.subr.mxu0 0.0
  %1585 = vmatpush1.msra.mxu0 0.0
  %1586 = vmatprep.subr.mxu0 0.0
  %1587 = vmatpush1.msra.mxu0 0.0
  %1588 = vmatprep.subr.mxu0 0.0
  %1589 = vmatpush1.msra.mxu0 0.0
  %1590 = vmatprep.mubr.f32.mxu0 0.0
  %1591 = vmatmul.mubr.f32.gmra.mrb[0].mxu0 %v1365
  %v1592 = vpop.f32.mrb[0].mxu0
  %v1593 = vadd.f32 0.0, %v1592
  %v1594 = vpop.f32.mrb[0].mxu0
  %1595 = vdwg.mxu0
  %v1597 = vrot.slane %v1434, 4
  %v1599 = vadd.f32 %v1178, %v1597
  %v1600 = vmul.f32 %v1599, 0.5
  %v1601 = vtanh.pop %v1600
  %v1602 = vmul.f32 %v1601, 0.5
  %v1603 = vadd.f32 %v1602, 0.5
  %v1604 = vtanh.pop %v1599
  %1606 = vrot.lane.b32.xlu0 %v1604, 64
  %v1607 = vpop.permute.xlu0 %1606
  %v1609 = vmul.f32 %v1603, %v1607
  %v1611 = vrot.slane %v1593, 4
  %v1613 = vadd.f32 %v1609, %v1611
  %v1614 = vtanh.pop %v1613
  %1616 = vrot.lane.b32.xlu0 %v1614, 32
  %v1617 = vpop.permute.xlu0 %1616
  %v1619 = vmul.f32 %v1603, %v1617
  %1621 = vrot.lane.b32.xlu0 %v1619, 96
  %v1622 = vpop.permute.xlu0 %1621
  %1625 = vrot.lane.b32.xlu0 %v1613, 32
  %v1626 = vpop.permute.xlu0 %1625
  %v1628 = vsel %vm92, %v1622, %v1626
  %vm1629 = vcmask 521220
  %1630 = vst.msk [vmem:[#allocation4] sm:$0x30] %vm1629, %v1628
  %v1631 = vld [vmem:[%s16] sm:$0xff]
  %v1632 = vld [vmem:[%s17] sm:$0x1]
  %v1633 = vld [vmem:[%s18] sm:$0xff]
  %v1634 = vld [vmem:[#allocation4] sm:$0xff]
  %v1636 = vsel %vm1217, %v1631, 0
  %1638 = vmatprep.subr.mxu0 0.0
  %1639 = vmatpush1.msra.mxu0 %v1634
  %1640 = vmatprep.subr.mxu0 0.0
  %1641 = vmatpush1.msra.mxu0 0.0
  %1642 = vmatprep.subr.mxu0 0.0
  %1643 = vmatpush1.msra.mxu0 0.0
  %1644 = vmatprep.subr.mxu0 0.0
  %1645 = vmatpush1.msra.mxu0 0.0
  %1646 = vmatprep.subr.mxu0 0.0
  %1647 = vmatpush1.msra.mxu0 0.0
  %1648 = vmatprep.subr.mxu0 0.0
  %1649 = vmatpush1.msra.mxu0 0.0
  %1650 = vmatprep.subr.mxu0 0.0
  %1651 = vmatpush1.msra.mxu0 0.0
  %1652 = vmatprep.subr.mxu0 0.0
  %1653 = vmatpush1.msra.mxu0 0.0
  %1654 = vmatprep.subr.mxu0 0.0
  %1655 = vmatpush1.msra.mxu0 0.0
  %1656 = vmatprep.subr.mxu0 0.0
  %1657 = vmatpush1.msra.mxu0 0.0
  %1658 = vmatprep.subr.mxu0 0.0
  %1659 = vmatpush1.msra.mxu0 0.0
  %1660 = vmatprep.subr.mxu0 0.0
  %1661 = vmatpush1.msra.mxu0 0.0
  %1662 = vmatprep.subr.mxu0 0.0
  %1663 = vmatpush1.msra.mxu0 0.0
  %1664 = vmatprep.subr.mxu0 0.0
  %1665 = vmatpush1.msra.mxu0 0.0
  %1666 = vmatprep.subr.mxu0 0.0
  %1667 = vmatpush1.msra.mxu0 0.0
  %1668 = vmatprep.subr.mxu0 0.0
  %1669 = vmatpush1.msra.mxu0 0.0
  %1670 = vmatprep.subr.mxu0 0.0
  %1671 = vmatpush1.msra.mxu0 0.0
  %1672 = vmatprep.subr.mxu0 0.0
  %1673 = vmatpush1.msra.mxu0 0.0
  %1674 = vmatprep.subr.mxu0 0.0
  %1675 = vmatpush1.msra.mxu0 0.0
  %1676 = vmatprep.subr.mxu0 0.0
  %1677 = vmatpush1.msra.mxu0 0.0
  %1678 = vmatprep.subr.mxu0 0.0
  %1679 = vmatpush1.msra.mxu0 0.0
  %1680 = vmatprep.subr.mxu0 0.0
  %1681 = vmatpush1.msra.mxu0 0.0
  %1682 = vmatprep.subr.mxu0 0.0
  %1683 = vmatpush1.msra.mxu0 0.0
  %1684 = vmatprep.subr.mxu0 0.0
  %1685 = vmatpush1.msra.mxu0 0.0
  %1686 = vmatprep.subr.mxu0 0.0
  %1687 = vmatpush1.msra.mxu0 0.0
  %1688 = vmatprep.subr.mxu0 0.0
  %1689 = vmatpush1.msra.mxu0 0.0
  %1690 = vmatprep.subr.mxu0 0.0
  %1691 = vmatpush1.msra.mxu0 0.0
  %1692 = vmatprep.subr.mxu0 0.0
  %1693 = vmatpush1.msra.mxu0 0.0
  %1694 = vmatprep.subr.mxu0 0.0
  %1695 = vmatpush1.msra.mxu0 0.0
  %1696 = vmatprep.subr.mxu0 0.0
  %1697 = vmatpush1.msra.mxu0 0.0
  %1698 = vmatprep.subr.mxu0 0.0
  %1699 = vmatpush1.msra.mxu0 0.0
  %1700 = vmatprep.subr.mxu0 0.0
  %1701 = vmatpush1.msra.mxu0 0.0
  %1702 = vmatprep.mubr.f32.mxu0 0.0
  %1703 = vmatmul.mubr.f32.gmra.mrb[0].mxu0 %v1636
  %v1704 = vpop.f32.mrb[0].mxu0
  %v1705 = vadd.f32 0.0, %v1704
  %v1706 = vpop.f32.mrb[0].mxu0
  %1707 = vdwg.mxu0
  %v1709 = vsel %vm92, %v1705, 0
  %1711 = vmatprep.subr.mxu0 0.0
  %1712 = vmatpush1.msra.mxu0 %v1181
  %1713 = vmatprep.subr.mxu0 0.0
  %1714 = vmatpush1.msra.mxu0 %v1182
  %1715 = vmatprep.subr.mxu0 0.0
  %1716 = vmatpush1.msra.mxu0 %v1183
  %1717 = vmatprep.subr.mxu0 0.0
  %1718 = vmatpush1.msra.mxu0 %v1184
  %1719 = vmatprep.subr.mxu0 0.0
  %1720 = vmatpush1.msra.mxu0 0.0
  %1721 = vmatprep.subr.mxu0 0.0
  %1722 = vmatpush1.msra.mxu0 0.0
  %1723 = vmatprep.subr.mxu0 0.0
  %1724 = vmatpush1.msra.mxu0 0.0
  %1725 = vmatprep.subr.mxu0 0.0
  %1726 = vmatpush1.msra.mxu0 0.0
  %1727 = vmatprep.subr.mxu0 0.0
  %1728 = vmatpush1.msra.mxu0 0.0
  %1729 = vmatprep.subr.mxu0 0.0
  %1730 = vmatpush1.msra.mxu0 0.0
  %1731 = vmatprep.subr.mxu0 0.0
  %1732 = vmatpush1.msra.mxu0 0.0
  %1733 = vmatprep.subr.mxu0 0.0
  %1734 = vmatpush1.msra.mxu0 0.0
  %1735 = vmatprep.subr.mxu0 0.0
  %1736 = vmatpush1.msra.mxu0 0.0
  %1737 = vmatprep.subr.mxu0 0.0
  %1738 = vmatpush1.msra.mxu0 0.0
  %1739 = vmatprep.subr.mxu0 0.0
  %1740 = vmatpush1.msra.mxu0 0.0
  %1741 = vmatprep.subr.mxu0 0.0
  %1742 = vmatpush1.msra.mxu0 0.0
  %1743 = vmatprep.subr.mxu0 0.0
  %1744 = vmatpush1.msra.mxu0 0.0
  %1745 = vmatprep.subr.mxu0 0.0
  %1746 = vmatpush1.msra.mxu0 0.0
  %1747 = vmatprep.subr.mxu0 0.0
  %1748 = vmatpush1.msra.mxu0 0.0
  %1749 = vmatprep.subr.mxu0 0.0
  %1750 = vmatpush1.msra.mxu0 0.0
  %1751 = vmatprep.subr.mxu0 0.0
  %1752 = vmatpush1.msra.mxu0 0.0
  %1753 = vmatprep.subr.mxu0 0.0
  %1754 = vmatpush1.msra.mxu0 0.0
  %1755 = vmatprep.subr.mxu0 0.0
  %1756 = vmatpush1.msra.mxu0 0.0
  %1757 = vmatprep.subr.mxu0 0.0
  %1758 = vmatpush1.msra.mxu0 0.0
  %1759 = vmatprep.subr.mxu0 0.0
  %1760 = vmatpush1.msra.mxu0 0.0
  %1761 = vmatprep.subr.mxu0 0.0
  %1762 = vmatpush1.msra.mxu0 0.0
  %1763 = vmatprep.subr.mxu0 0.0
  %1764 = vmatpush1.msra.mxu0 0.0
  %1765 = vmatprep.subr.mxu0 0.0
  %1766 = vmatpush1.msra.mxu0 0.0
  %1767 = vmatprep.subr.mxu0 0.0
  %1768 = vmatpush1.msra.mxu0 0.0
  %1769 = vmatprep.subr.mxu0 0.0
  %1770 = vmatpush1.msra.mxu0 0.0
  %1771 = vmatprep.subr.mxu0 0.0
  %1772 = vmatpush1.msra.mxu0 0.0
  %1773 = vmatprep.subr.mxu0 0.0
  %1774 = vmatpush1.msra.mxu0 0.0
  %1775 = vmatprep.mubr.f32.mxu0 0.0
  %1776 = vmatmul.mubr.f32.gmra.mrb[0].mxu0 %v1709
  %v1777 = vpop.f32.mrb[0].mxu0
  %v1778 = vadd.f32 0.0, %v1777
  %v1779 = vpop.f32.mrb[0].mxu0
  %1780 = vdwg.mxu0
  %v1782 = vsel %vm1217, %v1632, 0
  %1784 = vmatprep.subr.mxu0 0.0
  %1785 = vmatpush1.msra.mxu0 %v1778
  %1786 = vmatprep.subr.mxu0 0.0
  %1787 = vmatpush1.msra.mxu0 0.0
  %1788 = vmatprep.subr.mxu0 0.0
  %1789 = vmatpush1.msra.mxu0 0.0
  %1790 = vmatprep.subr.mxu0 0.0
  %1791 = vmatpush1.msra.mxu0 0.0
  %1792 = vmatprep.subr.mxu0 0.0
  %1793 = vmatpush1.msra.mxu0 0.0
  %1794 = vmatprep.subr.mxu0 0.0
  %1795 = vmatpush1.msra.mxu0 0.0
  %1796 = vmatprep.subr.mxu0 0.0
  %1797 = vmatpush1.msra.mxu0 0.0
  %1798 = vmatprep.subr.mxu0 0.0
  %1799 = vmatpush1.msra.mxu0 0.0
  %1800 = vmatprep.subr.mxu0 0.0
  %1801 = vmatpush1.msra.mxu0 0.0
  %1802 = vmatprep.subr.mxu0 0.0
  %1803 = vmatpush1.msra.mxu0 0.0
  %1804 = vmatprep.subr.mxu0 0.0
  %1805 = vmatpush1.msra.mxu0 0.0
  %1806 = vmatprep.subr.mxu0 0.0
  %1807 = vmatpush1.msra.mxu0 0.0
  %1808 = vmatprep.subr.mxu0 0.0
  %1809 = vmatpush1.msra.mxu0 0.0
  %1810 = vmatprep.subr.mxu0 0.0
  %1811 = vmatpush1.msra.mxu0 0.0
  %1812 = vmatprep.subr.mxu0 0.0
  %1813 = vmatpush1.msra.mxu0 0.0
  %1814 = vmatprep.subr.mxu0 0.0
  %1815 = vmatpush1.msra.mxu0 0.0
  %1816 = vmatprep.subr.mxu0 0.0
  %1817 = vmatpush1.msra.mxu0 0.0
  %1818 = vmatprep.subr.mxu0 0.0
  %1819 = vmatpush1.msra.mxu0 0.0
  %1820 = vmatprep.subr.mxu0 0.0
  %1821 = vmatpush1.msra.mxu0 0.0
  %1822 = vmatprep.subr.mxu0 0.0
  %1823 = vmatpush1.msra.mxu0 0.0
  %1824 = vmatprep.subr.mxu0 0.0
  %1825 = vmatpush1.msra.mxu0 0.0
  %1826 = vmatprep.subr.mxu0 0.0
  %1827 = vmatpush1.msra.mxu0 0.0
  %1828 = vmatprep.subr.mxu0 0.0
  %1829 = vmatpush1.msra.mxu0 0.0
  %1830 = vmatprep.subr.mxu0 0.0
  %1831 = vmatpush1.msra.mxu0 0.0
  %1832 = vmatprep.subr.mxu0 0.0
  %1833 = vmatpush1.msra.mxu0 0.0
  %1834 = vmatprep.subr.mxu0 0.0
  %1835 = vmatpush1.msra.mxu0 0.0
  %1836 = vmatprep.subr.mxu0 0.0
  %1837 = vmatpush1.msra.mxu0 0.0
  %1838 = vmatprep.subr.mxu0 0.0
  %1839 = vmatpush1.msra.mxu0 0.0
  %1840 = vmatprep.subr.mxu0 0.0
  %1841 = vmatpush1.msra.mxu0 0.0
  %1842 = vmatprep.subr.mxu0 0.0
  %1843 = vmatpush1.msra.mxu0 0.0
  %1844 = vmatprep.subr.mxu0 0.0
  %1845 = vmatpush1.msra.mxu0 0.0
  %1846 = vmatprep.subr.mxu0 0.0
  %1847 = vmatpush1.msra.mxu0 0.0
  %1848 = vmatprep.mubr.f32.mxu0 0.0
  %1849 = vmatmul.mubr.f32.gmra.mrb[0].mxu0 %v1782
  %v1850 = vpop.f32.mrb[0].mxu0
  %v1851 = vadd.f32 0.0, %v1850
  %v1852 = vpop.f32.mrb[0].mxu0
  %1853 = vdwg.mxu0
  %1855 = vrot.lane.b32.xlu0 %v1778, 32
  %v1856 = vpop.permute.xlu0 %1855
  %v1859 = vsel %vm1217, %v1633, 0
  %1861 = vmatprep.subr.mxu0 0.0
  %1862 = vmatpush1.msra.mxu0 %v1439
  %1863 = vmatprep.subr.mxu0 0.0
  %1864 = vmatpush1.msra.mxu0 0.0
  %1865 = vmatprep.subr.mxu0 0.0
  %1866 = vmatpush1.msra.mxu0 0.0
  %1867 = vmatprep.subr.mxu0 0.0
  %1868 = vmatpush1.msra.mxu0 0.0
  %1869 = vmatprep.subr.mxu0 0.0
  %1870 = vmatpush1.msra.mxu0 0.0
  %1871 = vmatprep.subr.mxu0 0.0
  %1872 = vmatpush1.msra.mxu0 0.0
  %1873 = vmatprep.subr.mxu0 0.0
  %1874 = vmatpush1.msra.mxu0 0.0
  %1875 = vmatprep.subr.mxu0 0.0
  %1876 = vmatpush1.msra.mxu0 0.0
  %1877 = vmatprep.subr.mxu0 0.0
  %1878 = vmatpush1.msra.mxu0 0.0
  %1879 = vmatprep.subr.mxu0 0.0
  %1880 = vmatpush1.msra.mxu0 0.0
  %1881 = vmatprep.subr.mxu0 0.0
  %1882 = vmatpush1.msra.mxu0 0.0
  %1883 = vmatprep.subr.mxu0 0.0
  %1884 = vmatpush1.msra.mxu0 0.0
  %1885 = vmatprep.subr.mxu0 0.0
  %1886 = vmatpush1.msra.mxu0 0.0
  %1887 = vmatprep.subr.mxu0 0.0
  %1888 = vmatpush1.msra.mxu0 0.0
  %1889 = vmatprep.subr.mxu0 0.0
  %1890 = vmatpush1.msra.mxu0 0.0
  %1891 = vmatprep.subr.mxu0 0.0
  %1892 = vmatpush1.msra.mxu0 0.0
  %1893 = vmatprep.subr.mxu0 0.0
  %1894 = vmatpush1.msra.mxu0 0.0
  %1895 = vmatprep.subr.mxu0 0.0
  %1896 = vmatpush1.msra.mxu0 0.0
  %1897 = vmatprep.subr.mxu0 0.0
  %1898 = vmatpush1.msra.mxu0 0.0
  %1899 = vmatprep.subr.mxu0 0.0
  %1900 = vmatpush1.msra.mxu0 0.0
  %1901 = vmatprep.subr.mxu0 0.0
  %1902 = vmatpush1.msra.mxu0 0.0
  %1903 = vmatprep.subr.mxu0 0.0
  %1904 = vmatpush1.msra.mxu0 0.0
  %1905 = vmatprep.subr.mxu0 0.0
  %1906 = vmatpush1.msra.mxu0 0.0
  %1907 = vmatprep.subr.mxu0 0.0
  %1908 = vmatpush1.msra.mxu0 0.0
  %1909 = vmatprep.subr.mxu0 0.0
  %1910 = vmatpush1.msra.mxu0 0.0
  %1911 = vmatprep.subr.mxu0 0.0
  %1912 = vmatpush1.msra.mxu0 0.0
  %1913 = vmatprep.subr.mxu0 0.0
  %1914 = vmatpush1.msra.mxu0 0.0
  %1915 = vmatprep.subr.mxu0 0.0
  %1916 = vmatpush1.msra.mxu0 0.0
  %1917 = vmatprep.subr.mxu0 0.0
  %1918 = vmatpush1.msra.mxu0 0.0
  %1919 = vmatprep.subr.mxu0 0.0
  %1920 = vmatpush1.msra.mxu0 0.0
  %1921 = vmatprep.subr.mxu0 0.0
  %1922 = vmatpush1.msra.mxu0 0.0
  %1923 = vmatprep.subr.mxu0 0.0
  %1924 = vmatpush1.msra.mxu0 0.0
  %1925 = vmatprep.mubr.f32.mxu0 0.0
  %1926 = vmatmul.mubr.f32.gmra.mrb[0].mxu0 %v1859
  %v1927 = vpop.f32.mrb[0].mxu0
  %v1928 = vadd.f32 %v1856, %v1927
  %v1929 = vpop.f32.mrb[0].mxu0
  %1930 = vdwg.mxu0
  %v1931 = vmul.f32 %v1928, 0.5
  %v1932 = vtanh.pop %v1931
  %v1933 = vmul.f32 %v1932, 0.5
  %v1934 = vadd.f32 %v1933, 0.5
  %1935 = vrot.lane.b32.xlu0 %v1705, 96
  %v1936 = vpop.permute.xlu0 %1935
  %v1938 = vmul.f32 %v1934, %v1936
  %1939 = vmatprep.subr.mxu0 0.0
  %1940 = vmatpush1.msra.mxu0 %v1938
  %1941 = vmatprep.subr.mxu0 0.0
  %1942 = vmatpush1.msra.mxu0 0.0
  %1943 = vmatprep.subr.mxu0 0.0
  %1944 = vmatpush1.msra.mxu0 0.0
  %1945 = vmatprep.subr.mxu0 0.0
  %1946 = vmatpush1.msra.mxu0 0.0
  %1947 = vmatprep.subr.mxu0 0.0
  %1948 = vmatpush1.msra.mxu0 0.0
  %1949 = vmatprep.subr.mxu0 0.0
  %1950 = vmatpush1.msra.mxu0 0.0
  %1951 = vmatprep.subr.mxu0 0.0
  %1952 = vmatpush1.msra.mxu0 0.0
  %1953 = vmatprep.subr.mxu0 0.0
  %1954 = vmatpush1.msra.mxu0 0.0
  %1955 = vmatprep.subr.mxu0 0.0
  %1956 = vmatpush1.msra.mxu0 0.0
  %1957 = vmatprep.subr.mxu0 0.0
  %1958 = vmatpush1.msra.mxu0 0.0
  %1959 = vmatprep.subr.mxu0 0.0
  %1960 = vmatpush1.msra.mxu0 0.0
  %1961 = vmatprep.subr.mxu0 0.0
  %1962 = vmatpush1.msra.mxu0 0.0
  %1963 = vmatprep.subr.mxu0 0.0
  %1964 = vmatpush1.msra.mxu0 0.0
  %1965 = vmatprep.subr.mxu0 0.0
  %1966 = vmatpush1.msra.mxu0 0.0
  %1967 = vmatprep.subr.mxu0 0.0
  %1968 = vmatpush1.msra.mxu0 0.0
  %1969 = vmatprep.subr.mxu0 0.0
  %1970 = vmatpush1.msra.mxu0 0.0
  %1971 = vmatprep.subr.mxu0 0.0
  %1972 = vmatpush1.msra.mxu0 0.0
  %1973 = vmatprep.subr.mxu0 0.0
  %1974 = vmatpush1.msra.mxu0 0.0
  %1975 = vmatprep.subr.mxu0 0.0
  %1976 = vmatpush1.msra.mxu0 0.0
  %1977 = vmatprep.subr.mxu0 0.0
  %1978 = vmatpush1.msra.mxu0 0.0
  %1979 = vmatprep.subr.mxu0 0.0
  %1980 = vmatpush1.msra.mxu0 0.0
  %1981 = vmatprep.subr.mxu0 0.0
  %1982 = vmatpush1.msra.mxu0 0.0
  %1983 = vmatprep.subr.mxu0 0.0
  %1984 = vmatpush1.msra.mxu0 0.0
  %1985 = vmatprep.subr.mxu0 0.0
  %1986 = vmatpush1.msra.mxu0 0.0
  %1987 = vmatprep.subr.mxu0 0.0
  %1988 = vmatpush1.msra.mxu0 0.0
  %1989 = vmatprep.subr.mxu0 0.0
  %1990 = vmatpush1.msra.mxu0 0.0
  %1991 = vmatprep.subr.mxu0 0.0
  %1992 = vmatpush1.msra.mxu0 0.0
  %1993 = vmatprep.subr.mxu0 0.0
  %1994 = vmatpush1.msra.mxu0 0.0
  %1995 = vmatprep.subr.mxu0 0.0
  %1996 = vmatpush1.msra.mxu0 0.0
  %1997 = vmatprep.subr.mxu0 0.0
  %1998 = vmatpush1.msra.mxu0 0.0
  %1999 = vmatprep.subr.mxu0 0.0
  %2000 = vmatpush1.msra.mxu0 0.0
  %2001 = vmatprep.subr.mxu0 0.0
  %2002 = vmatpush1.msra.mxu0 0.0
  %2003 = vmatprep.mubr.f32.mxu0 0.0
  %2004 = vmatmul.mubr.f32.gmra.mrb[0].mxu0 %v1782
  %v2005 = vpop.f32.mrb[0].mxu0
  %v2006 = vadd.f32 0.0, %v2005
  %v2007 = vpop.f32.mrb[0].mxu0
  %2008 = vdwg.mxu0
  %v2010 = vrot.slane %v1851, 2
  %v2012 = vadd.f32 %v1178, %v2010
  %v2013 = vmul.f32 %v2012, 0.5
  %v2014 = vtanh.pop %v2013
  %v2015 = vmul.f32 %v2014, 0.5
  %v2016 = vadd.f32 %v2015, 0.5
  %v2017 = vtanh.pop %v2012
  %2019 = vrot.lane.b32.xlu0 %v2017, 64
  %v2020 = vpop.permute.xlu0 %2019
  %v2022 = vmul.f32 %v2016, %v2020
  %v2024 = vrot.slane %v2006, 2
  %v2026 = vadd.f32 %v2022, %v2024
  %v2027 = vtanh.pop %v2026
  %2029 = vrot.lane.b32.xlu0 %v2027, 32
  %v2030 = vpop.permute.xlu0 %2029
  %v2032 = vmul.f32 %v2016, %v2030
  %2034 = vrot.lane.b32.xlu0 %v2032, 96
  %v2035 = vpop.permute.xlu0 %2034
  %2038 = vrot.lane.b32.xlu0 %v2026, 32
  %v2039 = vpop.permute.xlu0 %2038
  %v2041 = vsel %vm92, %v2035, %v2039
  %vm2042 = vcmask 522246
  %2043 = vst.msk [vmem:[#allocation4] sm:$0x40] %vm2042, %v2041
  %v2044 = vld [vmem:[%s19] sm:$0xff]
  %v2045 = vld [vmem:[%s20] sm:$0x1]
  %v2046 = vld [vmem:[%s21] sm:$0xff]
  %v2047 = vld [vmem:[#allocation4] sm:$0xff]
  %v2049 = vsel %vm1217, %v2044, 0
  %2051 = vmatprep.subr.mxu0 0.0
  %2052 = vmatpush1.msra.mxu0 %v2047
  %2053 = vmatprep.subr.mxu0 0.0
  %2054 = vmatpush1.msra.mxu0 0.0
  %2055 = vmatprep.subr.mxu0 0.0
  %2056 = vmatpush1.msra.mxu0 0.0
  %2057 = vmatprep.subr.mxu0 0.0
  %2058 = vmatpush1.msra.mxu0 0.0
  %2059 = vmatprep.subr.mxu0 0.0
  %2060 = vmatpush1.msra.mxu0 0.0
  %2061 = vmatprep.subr.mxu0 0.0
  %2062 = vmatpush1.msra.mxu0 0.0
  %2063 = vmatprep.subr.mxu0 0.0
  %2064 = vmatpush1.msra.mxu0 0.0
  %2065 = vmatprep.subr.mxu0 0.0
  %2066 = vmatpush1.msra.mxu0 0.0
  %2067 = vmatprep.subr.mxu0 0.0
  %2068 = vmatpush1.msra.mxu0 0.0
  %2069 = vmatprep.subr.mxu0 0.0
  %2070 = vmatpush1.msra.mxu0 0.0
  %2071 = vmatprep.subr.mxu0 0.0
  %2072 = vmatpush1.msra.mxu0 0.0
  %2073 = vmatprep.subr.mxu0 0.0
  %2074 = vmatpush1.msra.mxu0 0.0
  %2075 = vmatprep.subr.mxu0 0.0
  %2076 = vmatpush1.msra.mxu0 0.0
  %2077 = vmatprep.subr.mxu0 0.0
  %2078 = vmatpush1.msra.mxu0 0.0
  %2079 = vmatprep.subr.mxu0 0.0
  %2080 = vmatpush1.msra.mxu0 0.0
  %2081 = vmatprep.subr.mxu0 0.0
  %2082 = vmatpush1.msra.mxu0 0.0
  %2083 = vmatprep.subr.mxu0 0.0
  %2084 = vmatpush1.msra.mxu0 0.0
  %2085 = vmatprep.subr.mxu0 0.0
  %2086 = vmatpush1.msra.mxu0 0.0
  %2087 = vmatprep.subr.mxu0 0.0
  %2088 = vmatpush1.msra.mxu0 0.0
  %2089 = vmatprep.subr.mxu0 0.0
  %2090 = vmatpush1.msra.mxu0 0.0
  %2091 = vmatprep.subr.mxu0 0.0
  %2092 = vmatpush1.msra.mxu0 0.0
  %2093 = vmatprep.subr.mxu0 0.0
  %2094 = vmatpush1.msra.mxu0 0.0
  %2095 = vmatprep.subr.mxu0 0.0
  %2096 = vmatpush1.msra.mxu0 0.0
  %2097 = vmatprep.subr.mxu0 0.0
  %2098 = vmatpush1.msra.mxu0 0.0
  %2099 = vmatprep.subr.mxu0 0.0
  %2100 = vmatpush1.msra.mxu0 0.0
  %2101 = vmatprep.subr.mxu0 0.0
  %2102 = vmatpush1.msra.mxu0 0.0
  %2103 = vmatprep.subr.mxu0 0.0
  %2104 = vmatpush1.msra.mxu0 0.0
  %2105 = vmatprep.subr.mxu0 0.0
  %2106 = vmatpush1.msra.mxu0 0.0
  %2107 = vmatprep.subr.mxu0 0.0
  %2108 = vmatpush1.msra.mxu0 0.0
  %2109 = vmatprep.subr.mxu0 0.0
  %2110 = vmatpush1.msra.mxu0 0.0
  %2111 = vmatprep.subr.mxu0 0.0
  %2112 = vmatpush1.msra.mxu0 0.0
  %2113 = vmatprep.subr.mxu0 0.0
  %2114 = vmatpush1.msra.mxu0 0.0
  %2115 = vmatprep.mubr.f32.mxu0 0.0
  %2116 = vmatmul.mubr.f32.gmra.mrb[0].mxu0 %v2049
  %v2117 = vpop.f32.mrb[0].mxu0
  %v2118 = vadd.f32 0.0, %v2117
  %v2119 = vpop.f32.mrb[0].mxu0
  %2120 = vdwg.mxu0
  %v2122 = vsel %vm92, %v2118, 0
  %2124 = vmatprep.subr.mxu0 0.0
  %2125 = vmatpush1.msra.mxu0 %v1181
  %2126 = vmatprep.subr.mxu0 0.0
  %2127 = vmatpush1.msra.mxu0 %v1182
  %2128 = vmatprep.subr.mxu0 0.0
  %2129 = vmatpush1.msra.mxu0 %v1183
  %2130 = vmatprep.subr.mxu0 0.0
  %2131 = vmatpush1.msra.mxu0 %v1184
  %2132 = vmatprep.subr.mxu0 0.0
  %2133 = vmatpush1.msra.mxu0 0.0
  %2134 = vmatprep.subr.mxu0 0.0
  %2135 = vmatpush1.msra.mxu0 0.0
  %2136 = vmatprep.subr.mxu0 0.0
  %2137 = vmatpush1.msra.mxu0 0.0
  %2138 = vmatprep.subr.mxu0 0.0
  %2139 = vmatpush1.msra.mxu0 0.0
  %2140 = vmatprep.subr.mxu0 0.0
  %2141 = vmatpush1.msra.mxu0 0.0
  %2142 = vmatprep.subr.mxu0 0.0
  %2143 = vmatpush1.msra.mxu0 0.0
  %2144 = vmatprep.subr.mxu0 0.0
  %2145 = vmatpush1.msra.mxu0 0.0
  %2146 = vmatprep.subr.mxu0 0.0
  %2147 = vmatpush1.msra.mxu0 0.0
  %2148 = vmatprep.subr.mxu0 0.0
  %2149 = vmatpush1.msra.mxu0 0.0
  %2150 = vmatprep.subr.mxu0 0.0
  %2151 = vmatpush1.msra.mxu0 0.0
  %2152 = vmatprep.subr.mxu0 0.0
  %2153 = vmatpush1.msra.mxu0 0.0
  %2154 = vmatprep.subr.mxu0 0.0
  %2155 = vmatpush1.msra.mxu0 0.0
  %2156 = vmatprep.subr.mxu0 0.0
  %2157 = vmatpush1.msra.mxu0 0.0
  %2158 = vmatprep.subr.mxu0 0.0
  %2159 = vmatpush1.msra.mxu0 0.0
  %2160 = vmatprep.subr.mxu0 0.0
  %2161 = vmatpush1.msra.mxu0 0.0
  %2162 = vmatprep.subr.mxu0 0.0
  %2163 = vmatpush1.msra.mxu0 0.0
  %2164 = vmatprep.subr.mxu0 0.0
  %2165 = vmatpush1.msra.mxu0 0.0
  %2166 = vmatprep.subr.mxu0 0.0
  %2167 = vmatpush1.msra.mxu0 0.0
  %2168 = vmatprep.subr.mxu0 0.0
  %2169 = vmatpush1.msra.mxu0 0.0
  %2170 = vmatprep.subr.mxu0 0.0
  %2171 = vmatpush1.msra.mxu0 0.0
  %2172 = vmatprep.subr.mxu0 0.0
  %2173 = vmatpush1.msra.mxu0 0.0
  %2174 = vmatprep.subr.mxu0 0.0
  %2175 = vmatpush1.msra.mxu0 0.0
  %2176 = vmatprep.subr.mxu0 0.0
  %2177 = vmatpush1.msra.mxu0 0.0
  %2178 = vmatprep.subr.mxu0 0.0
  %2179 = vmatpush1.msra.mxu0 0.0
  %2180 = vmatprep.subr.mxu0 0.0
  %2181 = vmatpush1.msra.mxu0 0.0
  %2182 = vmatprep.subr.mxu0 0.0
  %2183 = vmatpush1.msra.mxu0 0.0
  %2184 = vmatprep.subr.mxu0 0.0
  %2185 = vmatpush1.msra.mxu0 0.0
  %2186 = vmatprep.subr.mxu0 0.0
  %2187 = vmatpush1.msra.mxu0 0.0
  %2188 = vmatprep.mubr.f32.mxu0 0.0
  %2189 = vmatmul.mubr.f32.gmra.mrb[0].mxu0 %v2122
  %v2190 = vpop.f32.mrb[0].mxu0
  %v2191 = vadd.f32 0.0, %v2190
  %v2192 = vpop.f32.mrb[0].mxu0
  %2193 = vdwg.mxu0
  %v2195 = vsel %vm1217, %v2045, 0
  %2197 = vmatprep.subr.mxu0 0.0
  %2198 = vmatpush1.msra.mxu0 %v2191
  %2199 = vmatprep.subr.mxu0 0.0
  %2200 = vmatpush1.msra.mxu0 0.0
  %2201 = vmatprep.subr.mxu0 0.0
  %2202 = vmatpush1.msra.mxu0 0.0
  %2203 = vmatprep.subr.mxu0 0.0
  %2204 = vmatpush1.msra.mxu0 0.0
  %2205 = vmatprep.subr.mxu0 0.0
  %2206 = vmatpush1.msra.mxu0 0.0
  %2207 = vmatprep.subr.mxu0 0.0
  %2208 = vmatpush1.msra.mxu0 0.0
  %2209 = vmatprep.subr.mxu0 0.0
  %2210 = vmatpush1.msra.mxu0 0.0
  %2211 = vmatprep.subr.mxu0 0.0
  %2212 = vmatpush1.msra.mxu0 0.0
  %2213 = vmatprep.subr.mxu0 0.0
  %2214 = vmatpush1.msra.mxu0 0.0
  %2215 = vmatprep.subr.mxu0 0.0
  %2216 = vmatpush1.msra.mxu0 0.0
  %2217 = vmatprep.subr.mxu0 0.0
  %2218 = vmatpush1.msra.mxu0 0.0
  %2219 = vmatprep.subr.mxu0 0.0
  %2220 = vmatpush1.msra.mxu0 0.0
  %2221 = vmatprep.subr.mxu0 0.0
  %2222 = vmatpush1.msra.mxu0 0.0
  %2223 = vmatprep.subr.mxu0 0.0
  %2224 = vmatpush1.msra.mxu0 0.0
  %2225 = vmatprep.subr.mxu0 0.0
  %2226 = vmatpush1.msra.mxu0 0.0
  %2227 = vmatprep.subr.mxu0 0.0
  %2228 = vmatpush1.msra.mxu0 0.0
  %2229 = vmatprep.subr.mxu0 0.0
  %2230 = vmatpush1.msra.mxu0 0.0
  %2231 = vmatprep.subr.mxu0 0.0
  %2232 = vmatpush1.msra.mxu0 0.0
  %2233 = vmatprep.subr.mxu0 0.0
  %2234 = vmatpush1.msra.mxu0 0.0
  %2235 = vmatprep.subr.mxu0 0.0
  %2236 = vmatpush1.msra.mxu0 0.0
  %2237 = vmatprep.subr.mxu0 0.0
  %2238 = vmatpush1.msra.mxu0 0.0
  %2239 = vmatprep.subr.mxu0 0.0
  %2240 = vmatpush1.msra.mxu0 0.0
  %2241 = vmatprep.subr.mxu0 0.0
  %2242 = vmatpush1.msra.mxu0 0.0
  %2243 = vmatprep.subr.mxu0 0.0
  %2244 = vmatpush1.msra.mxu0 0.0
  %2245 = vmatprep.subr.mxu0 0.0
  %2246 = vmatpush1.msra.mxu0 0.0
  %2247 = vmatprep.subr.mxu0 0.0
  %2248 = vmatpush1.msra.mxu0 0.0
  %2249 = vmatprep.subr.mxu0 0.0
  %2250 = vmatpush1.msra.mxu0 0.0
  %2251 = vmatprep.subr.mxu0 0.0
  %2252 = vmatpush1.msra.mxu0 0.0
  %2253 = vmatprep.subr.mxu0 0.0
  %2254 = vmatpush1.msra.mxu0 0.0
  %2255 = vmatprep.subr.mxu0 0.0
  %2256 = vmatpush1.msra.mxu0 0.0
  %2257 = vmatprep.subr.mxu0 0.0
  %2258 = vmatpush1.msra.mxu0 0.0
  %2259 = vmatprep.subr.mxu0 0.0
  %2260 = vmatpush1.msra.mxu0 0.0
  %2261 = vmatprep.mubr.f32.mxu0 0.0
  %2262 = vmatmul.mubr.f32.gmra.mrb[0].mxu0 %v2195
  %v2263 = vpop.f32.mrb[0].mxu0
  %v2264 = vadd.f32 0.0, %v2263
  %v2265 = vpop.f32.mrb[0].mxu0
  %2266 = vdwg.mxu0
  %2268 = vrot.lane.b32.xlu0 %v2191, 32
  %v2269 = vpop.permute.xlu0 %2268
  %v2272 = vsel %vm1217, %v2046, 0
  %2274 = vmatprep.subr.mxu0 0.0
  %2275 = vmatpush1.msra.mxu0 %v1439
  %2276 = vmatprep.subr.mxu0 0.0
  %2277 = vmatpush1.msra.mxu0 0.0
  %2278 = vmatprep.subr.mxu0 0.0
  %2279 = vmatpush1.msra.mxu0 0.0
  %2280 = vmatprep.subr.mxu0 0.0
  %2281 = vmatpush1.msra.mxu0 0.0
  %2282 = vmatprep.subr.mxu0 0.0
  %2283 = vmatpush1.msra.mxu0 0.0
  %2284 = vmatprep.subr.mxu0 0.0
  %2285 = vmatpush1.msra.mxu0 0.0
  %2286 = vmatprep.subr.mxu0 0.0
  %2287 = vmatpush1.msra.mxu0 0.0
  %2288 = vmatprep.subr.mxu0 0.0
  %2289 = vmatpush1.msra.mxu0 0.0
  %2290 = vmatprep.subr.mxu0 0.0
  %2291 = vmatpush1.msra.mxu0 0.0
  %2292 = vmatprep.subr.mxu0 0.0
  %2293 = vmatpush1.msra.mxu0 0.0
  %2294 = vmatprep.subr.mxu0 0.0
  %2295 = vmatpush1.msra.mxu0 0.0
  %2296 = vmatprep.subr.mxu0 0.0
  %2297 = vmatpush1.msra.mxu0 0.0
  %2298 = vmatprep.subr.mxu0 0.0
  %2299 = vmatpush1.msra.mxu0 0.0
  %2300 = vmatprep.subr.mxu0 0.0
  %2301 = vmatpush1.msra.mxu0 0.0
  %2302 = vmatprep.subr.mxu0 0.0
  %2303 = vmatpush1.msra.mxu0 0.0
  %2304 = vmatprep.subr.mxu0 0.0
  %2305 = vmatpush1.msra.mxu0 0.0
  %2306 = vmatprep.subr.mxu0 0.0
  %2307 = vmatpush1.msra.mxu0 0.0
  %2308 = vmatprep.subr.mxu0 0.0
  %2309 = vmatpush1.msra.mxu0 0.0
  %2310 = vmatprep.subr.mxu0 0.0
  %2311 = vmatpush1.msra.mxu0 0.0
  %2312 = vmatprep.subr.mxu0 0.0
  %2313 = vmatpush1.msra.mxu0 0.0
  %2314 = vmatprep.subr.mxu0 0.0
  %2315 = vmatpush1.msra.mxu0 0.0
  %2316 = vmatprep.subr.mxu0 0.0
  %2317 = vmatpush1.msra.mxu0 0.0
  %2318 = vmatprep.subr.mxu0 0.0
  %2319 = vmatpush1.msra.mxu0 0.0
  %2320 = vmatprep.subr.mxu0 0.0
  %2321 = vmatpush1.msra.mxu0 0.0
  %2322 = vmatprep.subr.mxu0 0.0
  %2323 = vmatpush1.msra.mxu0 0.0
  %2324 = vmatprep.subr.mxu0 0.0
  %2325 = vmatpush1.msra.mxu0 0.0
  %2326 = vmatprep.subr.mxu0 0.0
  %2327 = vmatpush1.msra.mxu0 0.0
  %2328 = vmatprep.subr.mxu0 0.0
  %2329 = vmatpush1.msra.mxu0 0.0
  %2330 = vmatprep.subr.mxu0 0.0
  %2331 = vmatpush1.msra.mxu0 0.0
  %2332 = vmatprep.subr.mxu0 0.0
  %2333 = vmatpush1.msra.mxu0 0.0
  %2334 = vmatprep.subr.mxu0 0.0
  %2335 = vmatpush1.msra.mxu0 0.0
  %2336 = vmatprep.subr.mxu0 0.0
  %2337 = vmatpush1.msra.mxu0 0.0
  %2338 = vmatprep.mubr.f32.mxu0 0.0
  %2339 = vmatmul.mubr.f32.gmra.mrb[0].mxu0 %v2272
  %v2340 = vpop.f32.mrb[0].mxu0
  %v2341 = vadd.f32 %v2269, %v2340
  %v2342 = vpop.f32.mrb[0].mxu0
  %2343 = vdwg.mxu0
  %v2344 = vmul.f32 %v2341, 0.5
  %v2345 = vtanh.pop %v2344
  %v2346 = vmul.f32 %v2345, 0.5
  %v2347 = vadd.f32 %v2346, 0.5
  %2348 = vrot.lane.b32.xlu0 %v2118, 96
  %v2349 = vpop.permute.xlu0 %2348
  %v2351 = vmul.f32 %v2347, %v2349
  %2352 = vmatprep.subr.mxu0 0.0
  %2353 = vmatpush1.msra.mxu0 %v2351
  %2354 = vmatprep.subr.mxu0 0.0
  %2355 = vmatpush1.msra.mxu0 0.0
  %2356 = vmatprep.subr.mxu0 0.0
  %2357 = vmatpush1.msra.mxu0 0.0
  %2358 = vmatprep.subr.mxu0 0.0
  %2359 = vmatpush1.msra.mxu0 0.0
  %2360 = vmatprep.subr.mxu0 0.0
  %2361 = vmatpush1.msra.mxu0 0.0
  %2362 = vmatprep.subr.mxu0 0.0
  %2363 = vmatpush1.msra.mxu0 0.0
  %2364 = vmatprep.subr.mxu0 0.0
  %2365 = vmatpush1.msra.mxu0 0.0
  %2366 = vmatprep.subr.mxu0 0.0
  %2367 = vmatpush1.msra.mxu0 0.0
  %2368 = vmatprep.subr.mxu0 0.0
  %2369 = vmatpush1.msra.mxu0 0.0
  %2370 = vmatprep.subr.mxu0 0.0
  %2371 = vmatpush1.msra.mxu0 0.0
  %2372 = vmatprep.subr.mxu0 0.0
  %2373 = vmatpush1.msra.mxu0 0.0
  %2374 = vmatprep.subr.mxu0 0.0
  %2375 = vmatpush1.msra.mxu0 0.0
  %2376 = vmatprep.subr.mxu0 0.0
  %2377 = vmatpush1.msra.mxu0 0.0
  %2378 = vmatprep.subr.mxu0 0.0
  %2379 = vmatpush1.msra.mxu0 0.0
  %2380 = vmatprep.subr.mxu0 0.0
  %2381 = vmatpush1.msra.mxu0 0.0
  %2382 = vmatprep.subr.mxu0 0.0
  %2383 = vmatpush1.msra.mxu0 0.0
  %2384 = vmatprep.subr.mxu0 0.0
  %2385 = vmatpush1.msra.mxu0 0.0
  %2386 = vmatprep.subr.mxu0 0.0
  %2387 = vmatpush1.msra.mxu0 0.0
  %2388 = vmatprep.subr.mxu0 0.0
  %2389 = vmatpush1.msra.mxu0 0.0
  %2390 = vmatprep.subr.mxu0 0.0
  %2391 = vmatpush1.msra.mxu0 0.0
  %2392 = vmatprep.subr.mxu0 0.0
  %2393 = vmatpush1.msra.mxu0 0.0
  %2394 = vmatprep.subr.mxu0 0.0
  %2395 = vmatpush1.msra.mxu0 0.0
  %2396 = vmatprep.subr.mxu0 0.0
  %2397 = vmatpush1.msra.mxu0 0.0
  %2398 = vmatprep.subr.mxu0 0.0
  %2399 = vmatpush1.msra.mxu0 0.0
  %2400 = vmatprep.subr.mxu0 0.0
  %2401 = vmatpush1.msra.mxu0 0.0
  %2402 = vmatprep.subr.mxu0 0.0
  %2403 = vmatpush1.msra.mxu0 0.0
  %2404 = vmatprep.subr.mxu0 0.0
  %2405 = vmatpush1.msra.mxu0 0.0
  %2406 = vmatprep.subr.mxu0 0.0
  %2407 = vmatpush1.msra.mxu0 0.0
  %2408 = vmatprep.subr.mxu0 0.0
  %2409 = vmatpush1.msra.mxu0 0.0
  %2410 = vmatprep.subr.mxu0 0.0
  %2411 = vmatpush1.msra.mxu0 0.0
  %2412 = vmatprep.subr.mxu0 0.0
  %2413 = vmatpush1.msra.mxu0 0.0
  %2414 = vmatprep.subr.mxu0 0.0
  %2415 = vmatpush1.msra.mxu0 0.0
  %2416 = vmatprep.mubr.f32.mxu0 0.0
  %2417 = vmatmul.mubr.f32.gmra.mrb[0].mxu0 %v2195
  %v2418 = vpop.f32.mrb[0].mxu0
  %v2419 = vadd.f32 0.0, %v2418
  %v2420 = vpop.f32.mrb[0].mxu0
  %2421 = vdwg.mxu0
  %v2423 = vrot.slane %v2264, 1
  %v2425 = vadd.f32 %v1178, %v2423
  %v2426 = vmul.f32 %v2425, 0.5
  %v2427 = vtanh.pop %v2426
  %v2428 = vmul.f32 %v2427, 0.5
  %v2429 = vadd.f32 %v2428, 0.5
  %v2430 = vtanh.pop %v2425
  %2432 = vrot.lane.b32.xlu0 %v2430, 64
  %v2433 = vpop.permute.xlu0 %2432
  %v2435 = vmul.f32 %v2429, %v2433
  %v2437 = vrot.slane %v2419, 1
  %v2439 = vadd.f32 %v2435, %v2437
  %v2440 = vtanh.pop %v2439
  %2442 = vrot.lane.b32.xlu0 %v2440, 32
  %v2443 = vpop.permute.xlu0 %2442
  %v2445 = vmul.f32 %v2429, %v2443
  %2447 = vrot.lane.b32.xlu0 %v2445, 96
  %v2448 = vpop.permute.xlu0 %2447
  %2451 = vrot.lane.b32.xlu0 %v2439, 32
  %v2452 = vpop.permute.xlu0 %2451
  %v2454 = vsel %vm92, %v2448, %v2452
  %vm2455 = vcmask 523271
  %2456 = vst.msk [vmem:[#allocation4] sm:$0x80] %vm2455, %v2454
  %v2457 = vld [vmem:[#allocation4] sm:$0xff]
  %v2458 = vld [vmem:[%s8] sm:$0xff]
  %v2460 = vsel %vm1217, %v2458, 0
  %2462 = vmatprep.subr.mxu0 0.0
  %2463 = vmatpush1.msra.mxu0 %v2457
  %2464 = vmatprep.subr.mxu0 0.0
  %2465 = vmatpush1.msra.mxu0 0.0
  %2466 = vmatprep.subr.mxu0 0.0
  %2467 = vmatpush1.msra.mxu0 0.0
  %2468 = vmatprep.subr.mxu0 0.0
  %2469 = vmatpush1.msra.mxu0 0.0
  %2470 = vmatprep.subr.mxu0 0.0
  %2471 = vmatpush1.msra.mxu0 0.0
  %2472 = vmatprep.subr.mxu0 0.0
  %2473 = vmatpush1.msra.mxu0 0.0
  %2474 = vmatprep.subr.mxu0 0.0
  %2475 = vmatpush1.msra.mxu0 0.0
  %2476 = vmatprep.subr.mxu0 0.0
  %2477 = vmatpush1.msra.mxu0 0.0
  %2478 = vmatprep.subr.mxu0 0.0
  %2479 = vmatpush1.msra.mxu0 0.0
  %2480 = vmatprep.subr.mxu0 0.0
  %2481 = vmatpush1.msra.mxu0 0.0
  %2482 = vmatprep.subr.mxu0 0.0
  %2483 = vmatpush1.msra.mxu0 0.0
  %2484 = vmatprep.subr.mxu0 0.0
  %2485 = vmatpush1.msra.mxu0 0.0
  %2486 = vmatprep.subr.mxu0 0.0
  %2487 = vmatpush1.msra.mxu0 0.0
  %2488 = vmatprep.subr.mxu0 0.0
  %2489 = vmatpush1.msra.mxu0 0.0
  %2490 = vmatprep.subr.mxu0 0.0
  %2491 = vmatpush1.msra.mxu0 0.0
  %2492 = vmatprep.subr.mxu0 0.0
  %2493 = vmatpush1.msra.mxu0 0.0
  %2494 = vmatprep.subr.mxu0 0.0
  %2495 = vmatpush1.msra.mxu0 0.0
  %2496 = vmatprep.subr.mxu0 0.0
  %2497 = vmatpush1.msra.mxu0 0.0
  %2498 = vmatprep.subr.mxu0 0.0
  %2499 = vmatpush1.msra.mxu0 0.0
  %2500 = vmatprep.subr.mxu0 0.0
  %2501 = vmatpush1.msra.mxu0 0.0
  %2502 = vmatprep.subr.mxu0 0.0
  %2503 = vmatpush1.msra.mxu0 0.0
  %2504 = vmatprep.subr.mxu0 0.0
  %2505 = vmatpush1.msra.mxu0 0.0
  %2506 = vmatprep.subr.mxu0 0.0
  %2507 = vmatpush1.msra.mxu0 0.0
  %2508 = vmatprep.subr.mxu0 0.0
  %2509 = vmatpush1.msra.mxu0 0.0
  %2510 = vmatprep.subr.mxu0 0.0
  %2511 = vmatpush1.msra.mxu0 0.0
  %2512 = vmatprep.subr.mxu0 0.0
  %2513 = vmatpush1.msra.mxu0 0.0
  %2514 = vmatprep.subr.mxu0 0.0
  %2515 = vmatpush1.msra.mxu0 0.0
  %2516 = vmatprep.subr.mxu0 0.0
  %2517 = vmatpush1.msra.mxu0 0.0
  %2518 = vmatprep.subr.mxu0 0.0
  %2519 = vmatpush1.msra.mxu0 0.0
  %2520 = vmatprep.subr.mxu0 0.0
  %2521 = vmatpush1.msra.mxu0 0.0
  %2522 = vmatprep.subr.mxu0 0.0
  %2523 = vmatpush1.msra.mxu0 0.0
  %2524 = vmatprep.subr.mxu0 0.0
  %2525 = vmatpush1.msra.mxu0 0.0
  %2526 = vmatprep.mubr.f32.mxu0 0.0
  %2527 = vmatmul.mubr.f32.gmra.mrb[0].mxu0 %v2460
  %v2528 = vpop.f32.mrb[0].mxu0
  %v2529 = vadd.f32 0.0, %v2528
  %v2530 = vpop.f32.mrb[0].mxu0
  %2531 = vdwg.mxu0
  %2533 = vrot.lane.b32.xlu0 %v1096, 32
  %v2534 = vpop.permute.xlu0 %2533
  %v2536 = vsel %vm92, %v2529, %v2534
  %v2537 = vld [vmem:[%s9] sm:$0xff]
  %v2538 = vld [vmem:[%s9 + $0x8] sm:$0xff]
  %v2539 = vld [vmem:[%s9 + $0x10] sm:$0xff]
  %v2540 = vld [vmem:[%s9 + $0x18] sm:$0xff]
  %v2541 = vld [vmem:[%s9 + $0x20] sm:$0xff]
  %v2542 = vld [vmem:[%s9 + $0x28] sm:$0xff]
  %v2543 = vld [vmem:[%s9 + $0x30] sm:$0xff]
  %v2544 = vld [vmem:[%s9 + $0x38] sm:$0xff]
  %v2545 = vld [vmem:[%s9 + $0x40] sm:$0xff]
  %v2546 = vld [vmem:[%s9 + $0x48] sm:$0xff]
  %v2547 = vld [vmem:[%s9 + $0x50] sm:$0xff]
  %v2548 = vld [vmem:[%s9 + $0x58] sm:$0xff]
  %v2549 = vld [vmem:[%s10] sm:$0x1]
  %v2551 = vlaneseq
  %v2552 = vshrl.u32 %v2551, 7
  %v2553 = vsub.s32 0, %v2552
  %v2554 = vrot.slane %v2549, %v2553
  %vm2556 = vcmask 785408
  %v2558 = vsel %vm2556, %v2536, 0
  %2560 = vmatprep.subr.mxu0 0.0
  %2561 = vmatpush1.msra.mxu0 %v2537
  %2562 = vmatprep.subr.mxu0 0.0
  %2563 = vmatpush1.msra.mxu0 %v2538
  %2564 = vmatprep.subr.mxu0 0.0
  %2565 = vmatpush1.msra.mxu0 %v2539
  %2566 = vmatprep.subr.mxu0 0.0
  %2567 = vmatpush1.msra.mxu0 %v2540
  %2568 = vmatprep.subr.mxu0 0.0
  %2569 = vmatpush1.msra.mxu0 %v2541
  %2570 = vmatprep.subr.mxu0 0.0
  %2571 = vmatpush1.msra.mxu0 %v2542
  %2572 = vmatprep.subr.mxu0 0.0
  %2573 = vmatpush1.msra.mxu0 %v2543
  %2574 = vmatprep.subr.mxu0 0.0
  %2575 = vmatpush1.msra.mxu0 %v2544
  %2576 = vmatprep.subr.mxu0 0.0
  %2577 = vmatpush1.msra.mxu0 %v2545
  %2578 = vmatprep.subr.mxu0 0.0
  %2579 = vmatpush1.msra.mxu0 %v2546
  %2580 = vmatprep.subr.mxu0 0.0
  %2581 = vmatpush1.msra.mxu0 %v2547
  %2582 = vmatprep.subr.mxu0 0.0
  %2583 = vmatpush1.msra.mxu0 %v2548
  %2584 = vmatprep.subr.mxu0 0.0
  %2585 = vmatpush1.msra.mxu0 0.0
  %2586 = vmatprep.subr.mxu0 0.0
  %2587 = vmatpush1.msra.mxu0 0.0
  %2588 = vmatprep.subr.mxu0 0.0
  %2589 = vmatpush1.msra.mxu0 0.0
  %2590 = vmatprep.subr.mxu0 0.0
  %2591 = vmatpush1.msra.mxu0 0.0
  %2592 = vmatprep.subr.mxu0 0.0
  %2593 = vmatpush1.msra.mxu0 0.0
  %2594 = vmatprep.subr.mxu0 0.0
  %2595 = vmatpush1.msra.mxu0 0.0
  %2596 = vmatprep.subr.mxu0 0.0
  %2597 = vmatpush1.msra.mxu0 0.0
  %2598 = vmatprep.subr.mxu0 0.0
  %2599 = vmatpush1.msra.mxu0 0.0
  %2600 = vmatprep.subr.mxu0 0.0
  %2601 = vmatpush1.msra.mxu0 0.0
  %2602 = vmatprep.subr.mxu0 0.0
  %2603 = vmatpush1.msra.mxu0 0.0
  %2604 = vmatprep.subr.mxu0 0.0
  %2605 = vmatpush1.msra.mxu0 0.0
  %2606 = vmatprep.subr.mxu0 0.0
  %2607 = vmatpush1.msra.mxu0 0.0
  %2608 = vmatprep.subr.mxu0 0.0
  %2609 = vmatpush1.msra.mxu0 0.0
  %2610 = vmatprep.subr.mxu0 0.0
  %2611 = vmatpush1.msra.mxu0 0.0
  %2612 = vmatprep.subr.mxu0 0.0
  %2613 = vmatpush1.msra.mxu0 0.0
  %2614 = vmatprep.subr.mxu0 0.0
  %2615 = vmatpush1.msra.mxu0 0.0
  %2616 = vmatprep.subr.mxu0 0.0
  %2617 = vmatpush1.msra.mxu0 0.0
  %2618 = vmatprep.subr.mxu0 0.0
  %2619 = vmatpush1.msra.mxu0 0.0
  %2620 = vmatprep.subr.mxu0 0.0
  %2621 = vmatpush1.msra.mxu0 0.0
  %2622 = vmatprep.subr.mxu0 0.0
  %2623 = vmatpush1.msra.mxu0 0.0
  %2624 = vmatprep.mubr.f32.mxu0 0.0
  %2625 = vmatmul.mubr.f32.gmra.mrb[0].mxu0 %v2558
  %v2626 = vpop.f32.mrb[0].mxu0
  %v2627 = vadd.f32 %v2554, %v2626
  %v2628 = vpop.f32.mrb[0].mxu0
  %2629 = vdwg.mxu0
  %v2630 = vtanh.pop %v2627
  %v2631 = vld [vmem:[%s11] sm:$0xff]
  %v2632 = vld [vmem:[%s11 + $0x8] sm:$0xff]
  %v2633 = vld [vmem:[%s11 + $0x10] sm:$0xff]
  %v2634 = vld [vmem:[%s11 + $0x18] sm:$0xff]
  %v2635 = vld [vmem:[%s12] sm:$0x1]
  %v2637 = vlaneseq
  %v2638 = vshrl.u32 %v2637, 7
  %v2639 = vsub.s32 0, %v2638
  %v2640 = vrot.slane %v2635, %v2639
  %v2643 = vsel %vm92, %v2630, 0
  %2645 = vmatprep.subr.mxu0 0.0
  %2646 = vmatpush1.msra.mxu0 %v2631
  %2647 = vmatprep.subr.mxu0 0.0
  %2648 = vmatpush1.msra.mxu0 %v2632
  %2649 = vmatprep.subr.mxu0 0.0
  %2650 = vmatpush1.msra.mxu0 %v2633
  %2651 = vmatprep.subr.mxu0 0.0
  %2652 = vmatpush1.msra.mxu0 %v2634
  %2653 = vmatprep.subr.mxu0 0.0
  %2654 = vmatpush1.msra.mxu0 0.0
  %2655 = vmatprep.subr.mxu0 0.0
  %2656 = vmatpush1.msra.mxu0 0.0
  %2657 = vmatprep.subr.mxu0 0.0
  %2658 = vmatpush1.msra.mxu0 0.0
  %2659 = vmatprep.subr.mxu0 0.0
  %2660 = vmatpush1.msra.mxu0 0.0
  %2661 = vmatprep.subr.mxu0 0.0
  %2662 = vmatpush1.msra.mxu0 0.0
  %2663 = vmatprep.subr.mxu0 0.0
  %2664 = vmatpush1.msra.mxu0 0.0
  %2665 = vmatprep.subr.mxu0 0.0
  %2666 = vmatpush1.msra.mxu0 0.0
  %2667 = vmatprep.subr.mxu0 0.0
  %2668 = vmatpush1.msra.mxu0 0.0
  %2669 = vmatprep.subr.mxu0 0.0
  %2670 = vmatpush1.msra.mxu0 0.0
  %2671 = vmatprep.subr.mxu0 0.0
  %2672 = vmatpush1.msra.mxu0 0.0
  %2673 = vmatprep.subr.mxu0 0.0
  %2674 = vmatpush1.msra.mxu0 0.0
  %2675 = vmatprep.subr.mxu0 0.0
  %2676 = vmatpush1.msra.mxu0 0.0
  %2677 = vmatprep.subr.mxu0 0.0
  %2678 = vmatpush1.msra.mxu0 0.0
  %2679 = vmatprep.subr.mxu0 0.0
  %2680 = vmatpush1.msra.mxu0 0.0
  %2681 = vmatprep.subr.mxu0 0.0
  %2682 = vmatpush1.msra.mxu0 0.0
  %2683 = vmatprep.subr.mxu0 0.0
  %2684 = vmatpush1.msra.mxu0 0.0
  %2685 = vmatprep.subr.mxu0 0.0
  %2686 = vmatpush1.msra.mxu0 0.0
  %2687 = vmatprep.subr.mxu0 0.0
  %2688 = vmatpush1.msra.mxu0 0.0
  %2689 = vmatprep.subr.mxu0 0.0
  %2690 = vmatpush1.msra.mxu0 0.0
  %2691 = vmatprep.subr.mxu0 0.0
  %2692 = vmatpush1.msra.mxu0 0.0
  %2693 = vmatprep.subr.mxu0 0.0
  %2694 = vmatpush1.msra.mxu0 0.0
  %2695 = vmatprep.subr.mxu0 0.0
  %2696 = vmatpush1.msra.mxu0 0.0
  %2697 = vmatprep.subr.mxu0 0.0
  %2698 = vmatpush1.msra.mxu0 0.0
  %2699 = vmatprep.subr.mxu0 0.0
  %2700 = vmatpush1.msra.mxu0 0.0
  %2701 = vmatprep.subr.mxu0 0.0
  %2702 = vmatpush1.msra.mxu0 0.0
  %2703 = vmatprep.subr.mxu0 0.0
  %2704 = vmatpush1.msra.mxu0 0.0
  %2705 = vmatprep.subr.mxu0 0.0
  %2706 = vmatpush1.msra.mxu0 0.0
  %2707 = vmatprep.subr.mxu0 0.0
  %2708 = vmatpush1.msra.mxu0 0.0
  %2709 = vmatprep.mubr.f32.mxu0 0.0
  %2710 = vmatmul.mubr.f32.gmra.mrb[0].mxu0 %v2643
  %v2711 = vpop.f32.mrb[0].mxu0
  %v2712 = vadd.f32 %v2640, %v2711
  %v2713 = vpop.f32.mrb[0].mxu0
  %2714 = vdwg.mxu0
  %v2715 = vrot.slane %v2712, 4
  %v2716 = vmax.f32 %v2712, %v2715
  %v2717 = vrot.slane %v2716, 2
  %v2718 = vmax.f32 %v2716, %v2717
  %v2719 = vrot.slane %v2718, 1
  %v2720 = vmax.f32 %v2718, %v2719
  %v2721 = vsub.f32 %v2712, %v2720
  %v2722 = vmul.f32 %v2721, 1.442695
  %v2723 = vpow.pop %v2722
  %v2724 = vrot.slane %v2723, 4
  %v2725 = vadd.f32 %v2723, %v2724
  %v2726 = vrot.slane %v2725, 2
  %v2727 = vadd.f32 %v2725, %v2726
  %v2728 = vrot.slane %v2727, 1
  %v2729 = vadd.f32 %v2727, %v2728
  %v2730 = vlog2.pop %v2729
  %v2731 = vmul.f32 %v2730, 0.6931472
  %v2732 = vsub.f32 %v2721, %v2731
  %2733 = vst [vmem:[%s22] sm:$0xff] %v2732
  // Predicated region
  $region90: #{forward.1} parent=0 // pred_check
    _
  $region91: #{forward.1} parent=0 // pred_check_branch
    %2735 = sbr.rel (0) target = $region93
  $region92: #{forward.1} parent=0 // pred_region
    _
  $region93: #{forward.1} parent=0 // pred_fallthru
    _
  // Predicated region
  $region94: #{forward.1} parent=0 // pred_check
    _
  $region95: #{forward.1} parent=0 // pred_check_branch
    %2737 = sbr.rel (0) target = $region97
  $region96: #{forward.1} parent=0 // pred_region
    _
  $region97: #{forward.1} parent=0 // pred_fallthru
    _

</llo_original>
